<compile_context>
chip_gen: v6e
topology: v6e:2x2x1
jax: 0.10.0
libtpu: 0.0.40
codegen_flags: <defaults>
</compile_context>

<pallas_src>
import numpy as np
import jax
import jax.numpy as jnp
from jax.experimental import pallas as pl
from jax.experimental.pallas import tpu as pltpu


# (row, col) offsets, reused for down-conv taps, convT phases and convT taps.
_OFFS = ((0, 0), (0, 1), (1, 0), (1, 1))


def _round_up(x, m):
    return (x + m - 1) // m * m


def _lane_pad(c):
    # Lane-dense (multiple-of-128) channels at production sizes; keep small
    # (toy / outer-block) channel counts unpadded so HBM traffic and MXU work
    # are not inflated 16-32x.
    return _round_up(c, 128) if c >= 128 else c


def _vmem_limit_bytes():
    try:
        cap = int(pltpu.get_tpu_info().vmem_capacity_bytes)
    except Exception:
        cap = 64 * 1024 * 1024          # assume the smallest (v7x) if query fails
    # Leave headroom for regalloc / double buffering: ~48 MiB on v7x (64 MiB
    # physical), 64 MiB on v5e/v6e (128 MiB physical).
    return min(cap * 3 // 4, 64 * 1024 * 1024)


def unet_innermost_forward(x, w_down, w_upT, gamma, beta):
    """Innermost UnetSkipConnectionBlock with BatchNorm2d (training-mode stats).

    x:      [N, Cin, H, W]        float32 (NCHW)
    w_down: [inner, Cin, 4, 4]    Conv2d(4, s=2, p=1, bias=False) weight
    w_upT:  [inner, outer, 4, 4]  ConvTranspose2d(4, s=2, p=1, bias=False) weight
    gamma, beta: [outer]          BatchNorm2d affine parameters
    returns [N, Cin + outer, H, W]
    """
    N, Cin, H, W = x.shape
    inner_nc = w_down.shape[0]
    outer_nc = w_upT.shape[1]
    assert H % 2 == 0 and W % 2 == 0, "stride-2 U-Net block needs even H, W"
    Hd, Wd = H // 2, W // 2
    Hs, Ws = Hd + 1, Wd + 1           # space-to-depth grid of the padded input
    C4 = 4 * Cin
    HWd = Hd * Wd
    inner_p = _lane_pad(inner_nc)
    outer_p = _lane_pad(outer_nc)

    # ---- host-side prep (single ~input-sized pass, fused by XLA) ---------------
    # NCHW -> NHWC once, zero-pad by 1, space-to-depth(2):
    #   xs[n, i, j, (r, c, ci)] = pad(x_nhwc)[n, 2i + r, 2j + c, ci]
    # so the 4x4/stride-2 conv window at output (oh, ow) is the 2x2 super-pixel
    # block xs[n, oh:oh+2, ow:ow+2, :] -> four shifted-slice tap matmuls in-kernel.
    x_nhwc = jnp.transpose(x, (0, 2, 3, 1))
    xp = jnp.pad(x_nhwc, ((0, 0), (1, 1), (1, 1), (0, 0)))
    xs = xp.reshape(N, Hs, 2, Ws, 2, Cin).transpose(0, 1, 3, 2, 4, 5)
    xs = xs.reshape(N, Hs, Ws, C4)                                    # f32

    # Down weight per tap (sh, sw): rows ordered (r, c, ci) with kh=2sh+r, kw=2sw+c.
    wd_t = jnp.transpose(w_down, (2, 3, 1, 0))                        # [kh,kw,Cin,inner]
    wd = jnp.stack([wd_t[2 * sh:2 * sh + 2, 2 * sw:2 * sw + 2].reshape(C4, inner_nc)
                    for sh, sw in _OFFS], axis=0)                     # [4, 4Cin, inner]
    wd = jnp.pad(wd, ((0, 0), (0, 0), (0, inner_p - inner_nc))).astype(jnp.bfloat16)

    # Up weight per phase (ph, pw) / tap (dh, dw): W[:, :, 3-ph-2dh, 3-pw-2dw]
    # (sub-pixel decomposition of ConvTranspose2d(k=4, s=2, p=1)).
    wu = jnp.stack([
        jnp.stack([w_upT[:, :, 3 - ph - 2 * dh, 3 - pw - 2 * dw] for dh, dw in _OFFS],
                  axis=0)
        for ph, pw in _OFFS], axis=0)                                 # [4,4,inner,outer]
    wu = jnp.pad(wu, ((0, 0), (0, 0), (0, inner_p - inner_nc),
                      (0, outer_p - outer_nc))).astype(jnp.bfloat16)

    # ---- fused kernel: one grid step per batch sample ("parallel" axis) --------
    def kernel(xs_ref, wd_ref, wu_ref, y_ref, stats_ref, dpad_scr):
        # down: LeakyReLU(0.2) (f32 VPU) -> 4 tap matmuls (bf16 MXU, f32 acc) -> ReLU.
        acc = jnp.zeros((HWd, inner_p), jnp.float32)
        for t, (sh, sw) in enumerate(_OFFS):
            a = xs_ref[sh:sh + Hd, sw:sw + Wd, :]                     # f32 window
            a = jnp.where(a >= 0.0, a, 0.2 * a).astype(jnp.bfloat16)  # LeakyReLU(0.2)
            acc = acc + jnp.dot(a.reshape(HWd, C4), wd_ref[t],
                                preferred_element_type=jnp.float32)
        down = jnp.maximum(acc, 0.0).astype(jnp.bfloat16).reshape(Hd, Wd, inner_p)

        # `down` never leaves VMEM: zero-pad by 1 into scratch for the convT taps.
        dpad_scr[...] = jnp.zeros_like(dpad_scr)
        dpad_scr[1:Hd + 1, 1:Wd + 1, :] = down

        # up: 4 sub-pixel phases; phase (ph, pw) produces output pixels (2a+ph, 2b+pw).
        ssum = jnp.zeros((1, outer_p), jnp.float32)
        ssq = jnp.zeros((1, outer_p), jnp.float32)
        for p, (ph, pw) in enumerate(_OFFS):
            yacc = jnp.zeros((HWd, outer_p), jnp.float32)
            for t, (dh, dw) in enumerate(_OFFS):
                tap = dpad_scr[ph + dh:ph + dh + Hd, pw + dw:pw + dw + Wd, :]
                yacc = yacc + jnp.dot(tap.reshape(HWd, inner_p), wu_ref[p, t],
                                      preferred_element_type=jnp.float32)
            y_ref[p] = yacc.astype(y_ref.dtype)            # bf16 store (halved HBM)
            ssum = ssum + jnp.sum(yacc, axis=0, keepdims=True)   # BN stats from f32 acc
            ssq = ssq + jnp.sum(yacc * yacc, axis=0, keepdims=True)

        stats_ref[0:1, :] = ssum                           # per-sample partials
        stats_ref[1:2, :] = ssq

    vmem_limit = _vmem_limit_bytes()
    vmem_need = (2 * Hs * Ws * C4 * 4                  # xs blocks (double-buffered, f32)
                 + 4 * C4 * inner_p * 2                # resident down weights (bf16)
                 + 16 * inner_p * outer_p * 2          # resident up weights (bf16)
                 + 2 * 4 * HWd * outer_p * 2           # y blocks (double-buffered, bf16)
                 + (Hd + 2) * (Wd + 2) * inner_p * 2   # padded-down scratch (bf16)
                 + HWd * (inner_p + outer_p) * 4       # f32 accumulators
                 + Hs * Ws * C4 * 2 + 8 * outer_p * 4)
    if vmem_need > vmem_limit:
        # TODO(synk): row-tiled (H-halo) fallback for large spatial sizes.
        raise NotImplementedError(
            f"per-sample working set {vmem_need / 2**20:.1f} MiB exceeds VMEM budget")

    y_up, stats = pl.pallas_call(
        kernel,
        out_shape=(jax.ShapeDtypeStruct((N, 4, HWd, outer_p), jnp.bfloat16),
                   jax.ShapeDtypeStruct((N, 2, outer_p), jnp.float32)),
        grid=(N,),
        in_specs=[pl.BlockSpec((None, Hs, Ws, C4), lambda n: (n, 0, 0, 0)),
                  pl.BlockSpec((4, C4, inner_p), lambda n: (0, 0, 0)),         # resident
                  pl.BlockSpec((4, 4, inner_p, outer_p), lambda n: (0, 0, 0, 0))],
        out_specs=(pl.BlockSpec((None, 4, HWd, outer_p), lambda n: (n, 0, 0, 0)),
                   pl.BlockSpec((None, 2, outer_p), lambda n: (n, 0, 0))),
        scratch_shapes=[pltpu.VMEM((Hd + 2, Wd + 2, inner_p), jnp.bfloat16)],
        compiler_params=pltpu.CompilerParams(
            dimension_semantics=("parallel",),
            vmem_limit_bytes=vmem_limit),
    )(xs, wd, wu)

    # ---- BatchNorm finalize + affine + depth-to-space + skip concat (XLA) -------
    # Applied here so it fuses with the epilogue transposes/concat (no extra
    # Pallas round trip over y_up).
    count = jnp.float32(N * H * W)
    ssum = jnp.sum(stats[:, 0, :outer_nc], axis=0)
    ssq = jnp.sum(stats[:, 1, :outer_nc], axis=0)
    mean = ssum / count
    # TODO(synk): shifted / Welford variance if tolerance must tighten below bf16 noise.
    var = jnp.maximum(ssq / count - mean * mean, 0.0)
    rstd = jax.lax.rsqrt(var + 1e-5)
    scale = gamma.astype(jnp.float32) * rstd
    shift = beta.astype(jnp.float32) - mean * scale

    up = y_up[..., :outer_nc].astype(jnp.float32) * scale + shift
    up = up.reshape(N, 2, 2, Hd, Wd, outer_nc).transpose(0, 3, 1, 4, 2, 5)
    up = up.reshape(N, H, W, outer_nc)
    out_nhwc = jnp.concatenate([x_nhwc, up], axis=-1)
    return jnp.transpose(out_nhwc, (0, 3, 1, 2))


# -----------------------------------------------------------------------------
# Pure NumPy reference (PyTorch semantics) for correctness check
# -----------------------------------------------------------------------------
def _np_conv2d(x, w, stride, pad):
    N, C, H, W = x.shape
    Co, _, k, _ = w.shape
    xp = np.pad(x, ((0, 0), (0, 0), (pad, pad), (pad, pad)))
    Ho = (H + 2 * pad - k) // stride + 1
    Wo = (W + 2 * pad - k) // stride + 1
    out = np.zeros((N, Co, Ho, Wo), dtype=np.float64)
    for oh in range(Ho):
        for ow in range(Wo):
            patch = xp[:, :, oh * stride:oh * stride + k, ow * stride:ow * stride + k]
            out[:, :, oh, ow] = np.einsum('ncij,ocij->no', patch, w)
    return out


def _np_convT2d(x, w, stride, pad):
    N, Ci, H, W = x.shape
    _, Co, k, _ = w.shape
    Ho = (H - 1) * stride - 2 * pad + k
    Wo = (W - 1) * stride - 2 * pad + k
    out = np.zeros((N, Co, Ho, Wo), dtype=np.float64)
    for ih in range(H):
        for iw in range(W):
            for kh in range(k):
                for kw in range(k):
                    oh = ih * stride - pad + kh
                    ow = iw * stride - pad + kw
                    if 0 <= oh < Ho and 0 <= ow < Wo:
                        out[:, :, oh, ow] += np.einsum('nc,co->no',
                                                       x[:, :, ih, iw], w[:, :, kh, kw])
    return out


def _np_forward(x, wd, wt, gamma, beta):
    h = np.where(x >= 0, x, 0.2 * x)
    h = _np_conv2d(h, wd, 2, 1)
    h = np.maximum(h, 0.0)
    h = _np_convT2d(h, wt, 2, 1)
    mean = h.mean(axis=(0, 2, 3), keepdims=True)
    var = h.var(axis=(0, 2, 3), keepdims=True)
    h = (h - mean) / np.sqrt(var + 1e-5)
    h = h * gamma.reshape(1, -1, 1, 1) + beta.reshape(1, -1, 1, 1)
    return np.concatenate([x, h], axis=1)


# -----------------------------------------------------------------------------
if __name__ == "__main__":
    N, outer_nc, inner_nc, H, W = 2, 4, 8, 16, 16   # input_nc defaults to outer_nc
    key = jax.random.PRNGKey(0)
    kx, kd, kt = jax.random.split(key, 3)

    x = jax.random.normal(kx, (N, outer_nc, H, W), dtype=jnp.float32)
    w_down = 0.1 * jax.random.normal(kd, (inner_nc, outer_nc, 4, 4), dtype=jnp.float32)
    w_upT = 0.1 * jax.random.normal(kt, (inner_nc, outer_nc, 4, 4), dtype=jnp.float32)
    gamma = jnp.ones((outer_nc,), dtype=jnp.float32)   # BatchNorm2d default affine init
    beta = jnp.zeros((outer_nc,), dtype=jnp.float32)

    fwd = jax.jit(unet_innermost_forward)
    out = jax.block_until_ready(fwd(x, w_down, w_upT, gamma, beta))
    assert out.shape == (N, 2 * outer_nc, H, W), out.shape

    ref = _np_forward(np.asarray(x, np.float64), np.asarray(w_down, np.float64),
                      np.asarray(w_upT, np.float64), np.asarray(gamma, np.float64),
                      np.asarray(beta, np.float64))
    # bf16 MXU operands / bf16 y_up store (f32 accumulation) vs float64 reference.
    np.testing.assert_allclose(np.asarray(out), ref, atol=1e-1, rtol=1e-1)

    print("KERNEL_OK")
</pallas_src>

<mosaic_0001>
module attributes {stable_mosaic.version = 11 : i64} {
  func.func @kernel(%arg0: i32, %arg1: memref<1x9x9x16xf32, #tpu.memory_space<vmem>>, %arg2: memref<4x16x8xbf16, #tpu.memory_space<vmem>>, %arg3: memref<4x4x8x4xbf16, #tpu.memory_space<vmem>>, %arg4: memref<1x4x64x4xbf16, #tpu.memory_space<vmem>>, %arg5: memref<1x2x4xf32, #tpu.memory_space<vmem>>, %arg6: memref<10x10x8xbf16, #tpu.memory_space<vmem>>) attributes {dimension_semantics = [#tpu.dimension_semantics<parallel>], iteration_bounds = array<i64: 2>, scalar_prefetch = 0 : i64, scratch_operands = 1 : i64, tpu.core_type = #tpu.core_type<tc>, window_params = [{transform_indices = @transform_0, window_bounds = array<i64: 1, 9, 9, 16>}, {pipeline_mode = #tpu.pipeline_mode<synchronous>, transform_indices = @transform_1, window_bounds = array<i64: 4, 16, 8>}, {pipeline_mode = #tpu.pipeline_mode<synchronous>, transform_indices = @transform_2, window_bounds = array<i64: 4, 4, 8, 4>}, {transform_indices = @transform_3, window_bounds = array<i64: 1, 4, 64, 4>}, {transform_indices = @transform_4, window_bounds = array<i64: 1, 2, 4>}]} {
    %cst = arith.constant 0.000000e+00 : f32
    %0 = vector.broadcast %cst : f32 to vector<64x8xf32>
    %c0 = arith.constant 0 : index
    %c0_0 = arith.constant 0 : index
    %c0_1 = arith.constant 0 : index
    %c0_2 = arith.constant 0 : index
    %1 = vector.load %arg1[%c0, %c0_0, %c0_1, %c0_2] : memref<1x9x9x16xf32, #tpu.memory_space<vmem>>, vector<1x8x8x16xf32>
    %2 = vector.shape_cast %1 : vector<1x8x8x16xf32> to vector<8x8x16xf32>
    %cst_3 = arith.constant 0.000000e+00 : f32
    %3 = vector.broadcast %cst_3 : f32 to vector<8x8x16xf32>
    %4 = arith.cmpf oge, %2, %3 : vector<8x8x16xf32>
    %cst_4 = arith.constant 2.000000e-01 : f32
    %5 = vector.broadcast %cst_4 : f32 to vector<8x8x16xf32>
    %6 = arith.mulf %5, %2 : vector<8x8x16xf32>
    %7 = arith.select %4, %2, %6 : vector<8x8x16xi1>, vector<8x8x16xf32>
    %8 = arith.truncf %7 : vector<8x8x16xf32> to vector<8x8x16xbf16>
    %9 = vector.shape_cast %8 : vector<8x8x16xbf16> to vector<64x16xbf16>
    %c0_5 = arith.constant 0 : index
    %c0_6 = arith.constant 0 : index
    %c0_7 = arith.constant 0 : index
    %10 = vector.load %arg2[%c0_5, %c0_6, %c0_7] : memref<4x16x8xbf16, #tpu.memory_space<vmem>>, vector<1x16x8xbf16>
    %11 = vector.shape_cast %10 : vector<1x16x8xbf16> to vector<16x8xbf16>
    %cst_8 = arith.constant dense<0.000000e+00> : vector<64x8xf32>
    %12 = tpu.matmul %9, %11, %cst_8 {dimension_numbers = #tpu.dot_dimension_numbers<[1], [0], [0], [1], [0, 0, 1, 1], [], []>} : vector<64x16xbf16>, vector<16x8xbf16>, vector<64x8xf32> -> vector<64x8xf32>
    %13 = arith.addf %0, %12 : vector<64x8xf32>
    %c0_9 = arith.constant 0 : index
    %c0_10 = arith.constant 0 : index
    %c1 = arith.constant 1 : index
    %c0_11 = arith.constant 0 : index
    %14 = vector.load %arg1[%c0_9, %c0_10, %c1, %c0_11] : memref<1x9x9x16xf32, #tpu.memory_space<vmem>>, vector<1x8x8x16xf32>
    %15 = vector.shape_cast %14 : vector<1x8x8x16xf32> to vector<8x8x16xf32>
    %cst_12 = arith.constant 0.000000e+00 : f32
    %16 = vector.broadcast %cst_12 : f32 to vector<8x8x16xf32>
    %17 = arith.cmpf oge, %15, %16 : vector<8x8x16xf32>
    %cst_13 = arith.constant 2.000000e-01 : f32
    %18 = vector.broadcast %cst_13 : f32 to vector<8x8x16xf32>
    %19 = arith.mulf %18, %15 : vector<8x8x16xf32>
    %20 = arith.select %17, %15, %19 : vector<8x8x16xi1>, vector<8x8x16xf32>
    %21 = arith.truncf %20 : vector<8x8x16xf32> to vector<8x8x16xbf16>
    %22 = vector.shape_cast %21 : vector<8x8x16xbf16> to vector<64x16xbf16>
    %c1_14 = arith.constant 1 : index
    %c0_15 = arith.constant 0 : index
    %c0_16 = arith.constant 0 : index
    %23 = vector.load %arg2[%c1_14, %c0_15, %c0_16] : memref<4x16x8xbf16, #tpu.memory_space<vmem>>, vector<1x16x8xbf16>
    %24 = vector.shape_cast %23 : vector<1x16x8xbf16> to vector<16x8xbf16>
    %cst_17 = arith.constant dense<0.000000e+00> : vector<64x8xf32>
    %25 = tpu.matmul %22, %24, %cst_17 {dimension_numbers = #tpu.dot_dimension_numbers<[1], [0], [0], [1], [0, 0, 1, 1], [], []>} : vector<64x16xbf16>, vector<16x8xbf16>, vector<64x8xf32> -> vector<64x8xf32>
    %26 = arith.addf %13, %25 : vector<64x8xf32>
    %c0_18 = arith.constant 0 : index
    %c1_19 = arith.constant 1 : index
    %c0_20 = arith.constant 0 : index
    %c0_21 = arith.constant 0 : index
    %27 = vector.load %arg1[%c0_18, %c1_19, %c0_20, %c0_21] : memref<1x9x9x16xf32, #tpu.memory_space<vmem>>, vector<1x8x8x16xf32>
    %28 = vector.shape_cast %27 : vector<1x8x8x16xf32> to vector<8x8x16xf32>
    %cst_22 = arith.constant 0.000000e+00 : f32
    %29 = vector.broadcast %cst_22 : f32 to vector<8x8x16xf32>
    %30 = arith.cmpf oge, %28, %29 : vector<8x8x16xf32>
    %cst_23 = arith.constant 2.000000e-01 : f32
    %31 = vector.broadcast %cst_23 : f32 to vector<8x8x16xf32>
    %32 = arith.mulf %31, %28 : vector<8x8x16xf32>
    %33 = arith.select %30, %28, %32 : vector<8x8x16xi1>, vector<8x8x16xf32>
    %34 = arith.truncf %33 : vector<8x8x16xf32> to vector<8x8x16xbf16>
    %35 = vector.shape_cast %34 : vector<8x8x16xbf16> to vector<64x16xbf16>
    %c2 = arith.constant 2 : index
    %c0_24 = arith.constant 0 : index
    %c0_25 = arith.constant 0 : index
    %36 = vector.load %arg2[%c2, %c0_24, %c0_25] : memref<4x16x8xbf16, #tpu.memory_space<vmem>>, vector<1x16x8xbf16>
    %37 = vector.shape_cast %36 : vector<1x16x8xbf16> to vector<16x8xbf16>
    %cst_26 = arith.constant dense<0.000000e+00> : vector<64x8xf32>
    %38 = tpu.matmul %35, %37, %cst_26 {dimension_numbers = #tpu.dot_dimension_numbers<[1], [0], [0], [1], [0, 0, 1, 1], [], []>} : vector<64x16xbf16>, vector<16x8xbf16>, vector<64x8xf32> -> vector<64x8xf32>
    %39 = arith.addf %26, %38 : vector<64x8xf32>
    %c0_27 = arith.constant 0 : index
    %c1_28 = arith.constant 1 : index
    %c1_29 = arith.constant 1 : index
    %c0_30 = arith.constant 0 : index
    %40 = vector.load %arg1[%c0_27, %c1_28, %c1_29, %c0_30] : memref<1x9x9x16xf32, #tpu.memory_space<vmem>>, vector<1x8x8x16xf32>
    %41 = vector.shape_cast %40 : vector<1x8x8x16xf32> to vector<8x8x16xf32>
    %cst_31 = arith.constant 0.000000e+00 : f32
    %42 = vector.broadcast %cst_31 : f32 to vector<8x8x16xf32>
    %43 = arith.cmpf oge, %41, %42 : vector<8x8x16xf32>
    %cst_32 = arith.constant 2.000000e-01 : f32
    %44 = vector.broadcast %cst_32 : f32 to vector<8x8x16xf32>
    %45 = arith.mulf %44, %41 : vector<8x8x16xf32>
    %46 = arith.select %43, %41, %45 : vector<8x8x16xi1>, vector<8x8x16xf32>
    %47 = arith.truncf %46 : vector<8x8x16xf32> to vector<8x8x16xbf16>
    %48 = vector.shape_cast %47 : vector<8x8x16xbf16> to vector<64x16xbf16>
    %c3 = arith.constant 3 : index
    %c0_33 = arith.constant 0 : index
    %c0_34 = arith.constant 0 : index
    %49 = vector.load %arg2[%c3, %c0_33, %c0_34] : memref<4x16x8xbf16, #tpu.memory_space<vmem>>, vector<1x16x8xbf16>
    %50 = vector.shape_cast %49 : vector<1x16x8xbf16> to vector<16x8xbf16>
    %cst_35 = arith.constant dense<0.000000e+00> : vector<64x8xf32>
    %51 = tpu.matmul %48, %50, %cst_35 {dimension_numbers = #tpu.dot_dimension_numbers<[1], [0], [0], [1], [0, 0, 1, 1], [], []>} : vector<64x16xbf16>, vector<16x8xbf16>, vector<64x8xf32> -> vector<64x8xf32>
    %52 = arith.addf %39, %51 : vector<64x8xf32>
    %cst_36 = arith.constant 0.000000e+00 : f32
    %53 = vector.broadcast %cst_36 : f32 to vector<64x8xf32>
    %54 = arith.maximumf %52, %53 : vector<64x8xf32>
    %55 = arith.truncf %54 : vector<64x8xf32> to vector<64x8xbf16>
    %56 = vector.shape_cast %55 : vector<64x8xbf16> to vector<8x8x8xbf16>
    %cst_37 = arith.constant 0.000000e+00 : bf16
    %57 = vector.broadcast %cst_37 : bf16 to vector<10x10x8xbf16>
    %c0_38 = arith.constant 0 : index
    %c0_39 = arith.constant 0 : index
    %c0_40 = arith.constant 0 : index
    %58 = vector.load %arg6[%c0_38, %c0_39, %c0_40] : memref<10x10x8xbf16, #tpu.memory_space<vmem>>, vector<10x10x8xbf16>
    tpu.vector_store %arg6[%c0_38, %c0_39, %c0_40], %57 {strides = array<i32>} : memref<10x10x8xbf16, #tpu.memory_space<vmem>>, vector<10x10x8xbf16>,
    %c1_41 = arith.constant 1 : index
    %c1_42 = arith.constant 1 : index
    %c0_43 = arith.constant 0 : index
    %59 = vector.load %arg6[%c1_41, %c1_42, %c0_43] : memref<10x10x8xbf16, #tpu.memory_space<vmem>>, vector<8x8x8xbf16>
    tpu.vector_store %arg6[%c1_41, %c1_42, %c0_43], %56 {strides = array<i32>} : memref<10x10x8xbf16, #tpu.memory_space<vmem>>, vector<8x8x8xbf16>,
    %cst_44 = arith.constant 0.000000e+00 : f32
    %60 = vector.broadcast %cst_44 : f32 to vector<1x4xf32>
    %cst_45 = arith.constant 0.000000e+00 : f32
    %61 = vector.broadcast %cst_45 : f32 to vector<1x4xf32>
    %cst_46 = arith.constant 0.000000e+00 : f32
    %62 = vector.broadcast %cst_46 : f32 to vector<64x4xf32>
    %c0_47 = arith.constant 0 : index
    %c0_48 = arith.constant 0 : index
    %c0_49 = arith.constant 0 : index
    %63 = vector.load %arg6[%c0_47, %c0_48, %c0_49] : memref<10x10x8xbf16, #tpu.memory_space<vmem>>, vector<8x8x8xbf16>
    %64 = vector.shape_cast %63 : vector<8x8x8xbf16> to vector<64x8xbf16>
    %c0_50 = arith.constant 0 : index
    %c0_51 = arith.constant 0 : index
    %c0_52 = arith.constant 0 : index
    %c0_53 = arith.constant 0 : index
    %65 = vector.load %arg3[%c0_50, %c0_51, %c0_52, %c0_53] : memref<4x4x8x4xbf16, #tpu.memory_space<vmem>>, vector<1x1x8x4xbf16>
    %66 = vector.shape_cast %65 : vector<1x1x8x4xbf16> to vector<8x4xbf16>
    %cst_54 = arith.constant dense<0.000000e+00> : vector<64x4xf32>
    %67 = tpu.matmul %64, %66, %cst_54 {dimension_numbers = #tpu.dot_dimension_numbers<[1], [0], [0], [1], [0, 0, 1, 1], [], []>} : vector<64x8xbf16>, vector<8x4xbf16>, vector<64x4xf32> -> vector<64x4xf32>
    %68 = arith.addf %62, %67 : vector<64x4xf32>
    %c0_55 = arith.constant 0 : index
    %c1_56 = arith.constant 1 : index
    %c0_57 = arith.constant 0 : index
    %69 = vector.load %arg6[%c0_55, %c1_56, %c0_57] : memref<10x10x8xbf16, #tpu.memory_space<vmem>>, vector<8x8x8xbf16>
    %70 = vector.shape_cast %69 : vector<8x8x8xbf16> to vector<64x8xbf16>
    %c0_58 = arith.constant 0 : index
    %c1_59 = arith.constant 1 : index
    %c0_60 = arith.constant 0 : index
    %c0_61 = arith.constant 0 : index
    %71 = vector.load %arg3[%c0_58, %c1_59, %c0_60, %c0_61] : memref<4x4x8x4xbf16, #tpu.memory_space<vmem>>, vector<1x1x8x4xbf16>
    %72 = vector.shape_cast %71 : vector<1x1x8x4xbf16> to vector<8x4xbf16>
    %cst_62 = arith.constant dense<0.000000e+00> : vector<64x4xf32>
    %73 = tpu.matmul %70, %72, %cst_62 {dimension_numbers = #tpu.dot_dimension_numbers<[1], [0], [0], [1], [0, 0, 1, 1], [], []>} : vector<64x8xbf16>, vector<8x4xbf16>, vector<64x4xf32> -> vector<64x4xf32>
    %74 = arith.addf %68, %73 : vector<64x4xf32>
    %c1_63 = arith.constant 1 : index
    %c0_64 = arith.constant 0 : index
    %c0_65 = arith.constant 0 : index
    %75 = vector.load %arg6[%c1_63, %c0_64, %c0_65] : memref<10x10x8xbf16, #tpu.memory_space<vmem>>, vector<8x8x8xbf16>
    %76 = vector.shape_cast %75 : vector<8x8x8xbf16> to vector<64x8xbf16>
    %c0_66 = arith.constant 0 : index
    %c2_67 = arith.constant 2 : index
    %c0_68 = arith.constant 0 : index
    %c0_69 = arith.constant 0 : index
    %77 = vector.load %arg3[%c0_66, %c2_67, %c0_68, %c0_69] : memref<4x4x8x4xbf16, #tpu.memory_space<vmem>>, vector<1x1x8x4xbf16>
    %78 = vector.shape_cast %77 : vector<1x1x8x4xbf16> to vector<8x4xbf16>
    %cst_70 = arith.constant dense<0.000000e+00> : vector<64x4xf32>
    %79 = tpu.matmul %76, %78, %cst_70 {dimension_numbers = #tpu.dot_dimension_numbers<[1], [0], [0], [1], [0, 0, 1, 1], [], []>} : vector<64x8xbf16>, vector<8x4xbf16>, vector<64x4xf32> -> vector<64x4xf32>
    %80 = arith.addf %74, %79 : vector<64x4xf32>
    %c1_71 = arith.constant 1 : index
    %c1_72 = arith.constant 1 : index
    %c0_73 = arith.constant 0 : index
    %81 = vector.load %arg6[%c1_71, %c1_72, %c0_73] : memref<10x10x8xbf16, #tpu.memory_space<vmem>>, vector<8x8x8xbf16>
    %82 = vector.shape_cast %81 : vector<8x8x8xbf16> to vector<64x8xbf16>
    %c0_74 = arith.constant 0 : index
    %c3_75 = arith.constant 3 : index
    %c0_76 = arith.constant 0 : index
    %c0_77 = arith.constant 0 : index
    %83 = vector.load %arg3[%c0_74, %c3_75, %c0_76, %c0_77] : memref<4x4x8x4xbf16, #tpu.memory_space<vmem>>, vector<1x1x8x4xbf16>
    %84 = vector.shape_cast %83 : vector<1x1x8x4xbf16> to vector<8x4xbf16>
    %cst_78 = arith.constant dense<0.000000e+00> : vector<64x4xf32>
    %85 = tpu.matmul %82, %84, %cst_78 {dimension_numbers = #tpu.dot_dimension_numbers<[1], [0], [0], [1], [0, 0, 1, 1], [], []>} : vector<64x8xbf16>, vector<8x4xbf16>, vector<64x4xf32> -> vector<64x4xf32>
    %86 = arith.addf %80, %85 : vector<64x4xf32>
    %87 = arith.truncf %86 : vector<64x4xf32> to vector<64x4xbf16>
    %c0_79 = arith.constant 0 : index
    %c0_80 = arith.constant 0 : index
    %c0_81 = arith.constant 0 : index
    %c0_82 = arith.constant 0 : index
    %88 = vector.load %arg4[%c0_79, %c0_80, %c0_81, %c0_82] : memref<1x4x64x4xbf16, #tpu.memory_space<vmem>>, vector<1x1x64x4xbf16>
    %89 = vector.shape_cast %88 : vector<1x1x64x4xbf16> to vector<64x4xbf16>
    %90 = vector.shape_cast %87 : vector<64x4xbf16> to vector<1x1x64x4xbf16>
    tpu.vector_store %arg4[%c0_79, %c0_80, %c0_81, %c0_82], %90 {strides = array<i32>} : memref<1x4x64x4xbf16, #tpu.memory_space<vmem>>, vector<1x1x64x4xbf16>,
    %cst_83 = arith.constant dense<0.000000e+00> : vector<4xf32>
    %91 = vector.multi_reduction <add>, %86, %cst_83 [0] : vector<64x4xf32> to vector<4xf32>
    %92 = vector.shape_cast %91 : vector<4xf32> to vector<1x4xf32>
    %93 = arith.addf %60, %92 : vector<1x4xf32>
    %94 = arith.mulf %86, %86 : vector<64x4xf32>
    %cst_84 = arith.constant dense<0.000000e+00> : vector<4xf32>
    %95 = vector.multi_reduction <add>, %94, %cst_84 [0] : vector<64x4xf32> to vector<4xf32>
    %96 = vector.shape_cast %95 : vector<4xf32> to vector<1x4xf32>
    %97 = arith.addf %61, %96 : vector<1x4xf32>
    %cst_85 = arith.constant 0.000000e+00 : f32
    %98 = vector.broadcast %cst_85 : f32 to vector<64x4xf32>
    %c0_86 = arith.constant 0 : index
    %c1_87 = arith.constant 1 : index
    %c0_88 = arith.constant 0 : index
    %99 = vector.load %arg6[%c0_86, %c1_87, %c0_88] : memref<10x10x8xbf16, #tpu.memory_space<vmem>>, vector<8x8x8xbf16>
    %100 = vector.shape_cast %99 : vector<8x8x8xbf16> to vector<64x8xbf16>
    %c1_89 = arith.constant 1 : index
    %c0_90 = arith.constant 0 : index
    %c0_91 = arith.constant 0 : index
    %c0_92 = arith.constant 0 : index
    %101 = vector.load %arg3[%c1_89, %c0_90, %c0_91, %c0_92] : memref<4x4x8x4xbf16, #tpu.memory_space<vmem>>, vector<1x1x8x4xbf16>
    %102 = vector.shape_cast %101 : vector<1x1x8x4xbf16> to vector<8x4xbf16>
    %cst_93 = arith.constant dense<0.000000e+00> : vector<64x4xf32>
    %103 = tpu.matmul %100, %102, %cst_93 {dimension_numbers = #tpu.dot_dimension_numbers<[1], [0], [0], [1], [0, 0, 1, 1], [], []>} : vector<64x8xbf16>, vector<8x4xbf16>, vector<64x4xf32> -> vector<64x4xf32>
    %104 = arith.addf %98, %103 : vector<64x4xf32>
    %c0_94 = arith.constant 0 : index
    %c2_95 = arith.constant 2 : index
    %c0_96 = arith.constant 0 : index
    %105 = vector.load %arg6[%c0_94, %c2_95, %c0_96] : memref<10x10x8xbf16, #tpu.memory_space<vmem>>, vector<8x8x8xbf16>
    %106 = vector.shape_cast %105 : vector<8x8x8xbf16> to vector<64x8xbf16>
    %c1_97 = arith.constant 1 : index
    %c1_98 = arith.constant 1 : index
    %c0_99 = arith.constant 0 : index
    %c0_100 = arith.constant 0 : index
    %107 = vector.load %arg3[%c1_97, %c1_98, %c0_99, %c0_100] : memref<4x4x8x4xbf16, #tpu.memory_space<vmem>>, vector<1x1x8x4xbf16>
    %108 = vector.shape_cast %107 : vector<1x1x8x4xbf16> to vector<8x4xbf16>
    %cst_101 = arith.constant dense<0.000000e+00> : vector<64x4xf32>
    %109 = tpu.matmul %106, %108, %cst_101 {dimension_numbers = #tpu.dot_dimension_numbers<[1], [0], [0], [1], [0, 0, 1, 1], [], []>} : vector<64x8xbf16>, vector<8x4xbf16>, vector<64x4xf32> -> vector<64x4xf32>
    %110 = arith.addf %104, %109 : vector<64x4xf32>
    %c1_102 = arith.constant 1 : index
    %c1_103 = arith.constant 1 : index
    %c0_104 = arith.constant 0 : index
    %111 = vector.load %arg6[%c1_102, %c1_103, %c0_104] : memref<10x10x8xbf16, #tpu.memory_space<vmem>>, vector<8x8x8xbf16>
    %112 = vector.shape_cast %111 : vector<8x8x8xbf16> to vector<64x8xbf16>
    %c1_105 = arith.constant 1 : index
    %c2_106 = arith.constant 2 : index
    %c0_107 = arith.constant 0 : index
    %c0_108 = arith.constant 0 : index
    %113 = vector.load %arg3[%c1_105, %c2_106, %c0_107, %c0_108] : memref<4x4x8x4xbf16, #tpu.memory_space<vmem>>, vector<1x1x8x4xbf16>
    %114 = vector.shape_cast %113 : vector<1x1x8x4xbf16> to vector<8x4xbf16>
    %cst_109 = arith.constant dense<0.000000e+00> : vector<64x4xf32>
    %115 = tpu.matmul %112, %114, %cst_109 {dimension_numbers = #tpu.dot_dimension_numbers<[1], [0], [0], [1], [0, 0, 1, 1], [], []>} : vector<64x8xbf16>, vector<8x4xbf16>, vector<64x4xf32> -> vector<64x4xf32>
    %116 = arith.addf %110, %115 : vector<64x4xf32>
    %c1_110 = arith.constant 1 : index
    %c2_111 = arith.constant 2 : index
    %c0_112 = arith.constant 0 : index
    %117 = vector.load %arg6[%c1_110, %c2_111, %c0_112] : memref<10x10x8xbf16, #tpu.memory_space<vmem>>, vector<8x8x8xbf16>
    %118 = vector.shape_cast %117 : vector<8x8x8xbf16> to vector<64x8xbf16>
    %c1_113 = arith.constant 1 : index
    %c3_114 = arith.constant 3 : index
    %c0_115 = arith.constant 0 : index
    %c0_116 = arith.constant 0 : index
    %119 = vector.load %arg3[%c1_113, %c3_114, %c0_115, %c0_116] : memref<4x4x8x4xbf16, #tpu.memory_space<vmem>>, vector<1x1x8x4xbf16>
    %120 = vector.shape_cast %119 : vector<1x1x8x4xbf16> to vector<8x4xbf16>
    %cst_117 = arith.constant dense<0.000000e+00> : vector<64x4xf32>
    %121 = tpu.matmul %118, %120, %cst_117 {dimension_numbers = #tpu.dot_dimension_numbers<[1], [0], [0], [1], [0, 0, 1, 1], [], []>} : vector<64x8xbf16>, vector<8x4xbf16>, vector<64x4xf32> -> vector<64x4xf32>
    %122 = arith.addf %116, %121 : vector<64x4xf32>
    %123 = arith.truncf %122 : vector<64x4xf32> to vector<64x4xbf16>
    %c0_118 = arith.constant 0 : index
    %c1_119 = arith.constant 1 : index
    %c0_120 = arith.constant 0 : index
    %c0_121 = arith.constant 0 : index
    %124 = vector.load %arg4[%c0_118, %c1_119, %c0_120, %c0_121] : memref<1x4x64x4xbf16, #tpu.memory_space<vmem>>, vector<1x1x64x4xbf16>
    %125 = vector.shape_cast %124 : vector<1x1x64x4xbf16> to vector<64x4xbf16>
    %126 = vector.shape_cast %123 : vector<64x4xbf16> to vector<1x1x64x4xbf16>
    tpu.vector_store %arg4[%c0_118, %c1_119, %c0_120, %c0_121], %126 {strides = array<i32>} : memref<1x4x64x4xbf16, #tpu.memory_space<vmem>>, vector<1x1x64x4xbf16>,
    %cst_122 = arith.constant dense<0.000000e+00> : vector<4xf32>
    %127 = vector.multi_reduction <add>, %122, %cst_122 [0] : vector<64x4xf32> to vector<4xf32>
    %128 = vector.shape_cast %127 : vector<4xf32> to vector<1x4xf32>
    %129 = arith.addf %93, %128 : vector<1x4xf32>
    %130 = arith.mulf %122, %122 : vector<64x4xf32>
    %cst_123 = arith.constant dense<0.000000e+00> : vector<4xf32>
    %131 = vector.multi_reduction <add>, %130, %cst_123 [0] : vector<64x4xf32> to vector<4xf32>
    %132 = vector.shape_cast %131 : vector<4xf32> to vector<1x4xf32>
    %133 = arith.addf %97, %132 : vector<1x4xf32>
    %cst_124 = arith.constant 0.000000e+00 : f32
    %134 = vector.broadcast %cst_124 : f32 to vector<64x4xf32>
    %c1_125 = arith.constant 1 : index
    %c0_126 = arith.constant 0 : index
    %c0_127 = arith.constant 0 : index
    %135 = vector.load %arg6[%c1_125, %c0_126, %c0_127] : memref<10x10x8xbf16, #tpu.memory_space<vmem>>, vector<8x8x8xbf16>
    %136 = vector.shape_cast %135 : vector<8x8x8xbf16> to vector<64x8xbf16>
    %c2_128 = arith.constant 2 : index
    %c0_129 = arith.constant 0 : index
    %c0_130 = arith.constant 0 : index
    %c0_131 = arith.constant 0 : index
    %137 = vector.load %arg3[%c2_128, %c0_129, %c0_130, %c0_131] : memref<4x4x8x4xbf16, #tpu.memory_space<vmem>>, vector<1x1x8x4xbf16>
    %138 = vector.shape_cast %137 : vector<1x1x8x4xbf16> to vector<8x4xbf16>
    %cst_132 = arith.constant dense<0.000000e+00> : vector<64x4xf32>
    %139 = tpu.matmul %136, %138, %cst_132 {dimension_numbers = #tpu.dot_dimension_numbers<[1], [0], [0], [1], [0, 0, 1, 1], [], []>} : vector<64x8xbf16>, vector<8x4xbf16>, vector<64x4xf32> -> vector<64x4xf32>
    %140 = arith.addf %134, %139 : vector<64x4xf32>
    %c1_133 = arith.constant 1 : index
    %c1_134 = arith.constant 1 : index
    %c0_135 = arith.constant 0 : index
    %141 = vector.load %arg6[%c1_133, %c1_134, %c0_135] : memref<10x10x8xbf16, #tpu.memory_space<vmem>>, vector<8x8x8xbf16>
    %142 = vector.shape_cast %141 : vector<8x8x8xbf16> to vector<64x8xbf16>
    %c2_136 = arith.constant 2 : index
    %c1_137 = arith.constant 1 : index
    %c0_138 = arith.constant 0 : index
    %c0_139 = arith.constant 0 : index
    %143 = vector.load %arg3[%c2_136, %c1_137, %c0_138, %c0_139] : memref<4x4x8x4xbf16, #tpu.memory_space<vmem>>, vector<1x1x8x4xbf16>
    %144 = vector.shape_cast %143 : vector<1x1x8x4xbf16> to vector<8x4xbf16>
    %cst_140 = arith.constant dense<0.000000e+00> : vector<64x4xf32>
    %145 = tpu.matmul %142, %144, %cst_140 {dimension_numbers = #tpu.dot_dimension_numbers<[1], [0], [0], [1], [0, 0, 1, 1], [], []>} : vector<64x8xbf16>, vector<8x4xbf16>, vector<64x4xf32> -> vector<64x4xf32>
    %146 = arith.addf %140, %145 : vector<64x4xf32>
    %c2_141 = arith.constant 2 : index
    %c0_142 = arith.constant 0 : index
    %c0_143 = arith.constant 0 : index
    %147 = vector.load %arg6[%c2_141, %c0_142, %c0_143] : memref<10x10x8xbf16, #tpu.memory_space<vmem>>, vector<8x8x8xbf16>
    %148 = vector.shape_cast %147 : vector<8x8x8xbf16> to vector<64x8xbf16>
    %c2_144 = arith.constant 2 : index
    %c2_145 = arith.constant 2 : index
    %c0_146 = arith.constant 0 : index
    %c0_147 = arith.constant 0 : index
    %149 = vector.load %arg3[%c2_144, %c2_145, %c0_146, %c0_147] : memref<4x4x8x4xbf16, #tpu.memory_space<vmem>>, vector<1x1x8x4xbf16>
    %150 = vector.shape_cast %149 : vector<1x1x8x4xbf16> to vector<8x4xbf16>
    %cst_148 = arith.constant dense<0.000000e+00> : vector<64x4xf32>
    %151 = tpu.matmul %148, %150, %cst_148 {dimension_numbers = #tpu.dot_dimension_numbers<[1], [0], [0], [1], [0, 0, 1, 1], [], []>} : vector<64x8xbf16>, vector<8x4xbf16>, vector<64x4xf32> -> vector<64x4xf32>
    %152 = arith.addf %146, %151 : vector<64x4xf32>
    %c2_149 = arith.constant 2 : index
    %c1_150 = arith.constant 1 : index
    %c0_151 = arith.constant 0 : index
    %153 = vector.load %arg6[%c2_149, %c1_150, %c0_151] : memref<10x10x8xbf16, #tpu.memory_space<vmem>>, vector<8x8x8xbf16>
    %154 = vector.shape_cast %153 : vector<8x8x8xbf16> to vector<64x8xbf16>
    %c2_152 = arith.constant 2 : index
    %c3_153 = arith.constant 3 : index
    %c0_154 = arith.constant 0 : index
    %c0_155 = arith.constant 0 : index
    %155 = vector.load %arg3[%c2_152, %c3_153, %c0_154, %c0_155] : memref<4x4x8x4xbf16, #tpu.memory_space<vmem>>, vector<1x1x8x4xbf16>
    %156 = vector.shape_cast %155 : vector<1x1x8x4xbf16> to vector<8x4xbf16>
    %cst_156 = arith.constant dense<0.000000e+00> : vector<64x4xf32>
    %157 = tpu.matmul %154, %156, %cst_156 {dimension_numbers = #tpu.dot_dimension_numbers<[1], [0], [0], [1], [0, 0, 1, 1], [], []>} : vector<64x8xbf16>, vector<8x4xbf16>, vector<64x4xf32> -> vector<64x4xf32>
    %158 = arith.addf %152, %157 : vector<64x4xf32>
    %159 = arith.truncf %158 : vector<64x4xf32> to vector<64x4xbf16>
    %c0_157 = arith.constant 0 : index
    %c2_158 = arith.constant 2 : index
    %c0_159 = arith.constant 0 : index
    %c0_160 = arith.constant 0 : index
    %160 = vector.load %arg4[%c0_157, %c2_158, %c0_159, %c0_160] : memref<1x4x64x4xbf16, #tpu.memory_space<vmem>>, vector<1x1x64x4xbf16>
    %161 = vector.shape_cast %160 : vector<1x1x64x4xbf16> to vector<64x4xbf16>
    %162 = vector.shape_cast %159 : vector<64x4xbf16> to vector<1x1x64x4xbf16>
    tpu.vector_store %arg4[%c0_157, %c2_158, %c0_159, %c0_160], %162 {strides = array<i32>} : memref<1x4x64x4xbf16, #tpu.memory_space<vmem>>, vector<1x1x64x4xbf16>,
    %cst_161 = arith.constant dense<0.000000e+00> : vector<4xf32>
    %163 = vector.multi_reduction <add>, %158, %cst_161 [0] : vector<64x4xf32> to vector<4xf32>
    %164 = vector.shape_cast %163 : vector<4xf32> to vector<1x4xf32>
    %165 = arith.addf %129, %164 : vector<1x4xf32>
    %166 = arith.mulf %158, %158 : vector<64x4xf32>
    %cst_162 = arith.constant dense<0.000000e+00> : vector<4xf32>
    %167 = vector.multi_reduction <add>, %166, %cst_162 [0] : vector<64x4xf32> to vector<4xf32>
    %168 = vector.shape_cast %167 : vector<4xf32> to vector<1x4xf32>
    %169 = arith.addf %133, %168 : vector<1x4xf32>
    %cst_163 = arith.constant 0.000000e+00 : f32
    %170 = vector.broadcast %cst_163 : f32 to vector<64x4xf32>
    %c1_164 = arith.constant 1 : index
    %c1_165 = arith.constant 1 : index
    %c0_166 = arith.constant 0 : index
    %171 = vector.load %arg6[%c1_164, %c1_165, %c0_166] : memref<10x10x8xbf16, #tpu.memory_space<vmem>>, vector<8x8x8xbf16>
    %172 = vector.shape_cast %171 : vector<8x8x8xbf16> to vector<64x8xbf16>
    %c3_167 = arith.constant 3 : index
    %c0_168 = arith.constant 0 : index
    %c0_169 = arith.constant 0 : index
    %c0_170 = arith.constant 0 : index
    %173 = vector.load %arg3[%c3_167, %c0_168, %c0_169, %c0_170] : memref<4x4x8x4xbf16, #tpu.memory_space<vmem>>, vector<1x1x8x4xbf16>
    %174 = vector.shape_cast %173 : vector<1x1x8x4xbf16> to vector<8x4xbf16>
    %cst_171 = arith.constant dense<0.000000e+00> : vector<64x4xf32>
    %175 = tpu.matmul %172, %174, %cst_171 {dimension_numbers = #tpu.dot_dimension_numbers<[1], [0], [0], [1], [0, 0, 1, 1], [], []>} : vector<64x8xbf16>, vector<8x4xbf16>, vector<64x4xf32> -> vector<64x4xf32>
    %176 = arith.addf %170, %175 : vector<64x4xf32>
    %c1_172 = arith.constant 1 : index
    %c2_173 = arith.constant 2 : index
    %c0_174 = arith.constant 0 : index
    %177 = vector.load %arg6[%c1_172, %c2_173, %c0_174] : memref<10x10x8xbf16, #tpu.memory_space<vmem>>, vector<8x8x8xbf16>
    %178 = vector.shape_cast %177 : vector<8x8x8xbf16> to vector<64x8xbf16>
    %c3_175 = arith.constant 3 : index
    %c1_176 = arith.constant 1 : index
    %c0_177 = arith.constant 0 : index
    %c0_178 = arith.constant 0 : index
    %179 = vector.load %arg3[%c3_175, %c1_176, %c0_177, %c0_178] : memref<4x4x8x4xbf16, #tpu.memory_space<vmem>>, vector<1x1x8x4xbf16>
    %180 = vector.shape_cast %179 : vector<1x1x8x4xbf16> to vector<8x4xbf16>
    %cst_179 = arith.constant dense<0.000000e+00> : vector<64x4xf32>
    %181 = tpu.matmul %178, %180, %cst_179 {dimension_numbers = #tpu.dot_dimension_numbers<[1], [0], [0], [1], [0, 0, 1, 1], [], []>} : vector<64x8xbf16>, vector<8x4xbf16>, vector<64x4xf32> -> vector<64x4xf32>
    %182 = arith.addf %176, %181 : vector<64x4xf32>
    %c2_180 = arith.constant 2 : index
    %c1_181 = arith.constant 1 : index
    %c0_182 = arith.constant 0 : index
    %183 = vector.load %arg6[%c2_180, %c1_181, %c0_182] : memref<10x10x8xbf16, #tpu.memory_space<vmem>>, vector<8x8x8xbf16>
    %184 = vector.shape_cast %183 : vector<8x8x8xbf16> to vector<64x8xbf16>
    %c3_183 = arith.constant 3 : index
    %c2_184 = arith.constant 2 : index
    %c0_185 = arith.constant 0 : index
    %c0_186 = arith.constant 0 : index
    %185 = vector.load %arg3[%c3_183, %c2_184, %c0_185, %c0_186] : memref<4x4x8x4xbf16, #tpu.memory_space<vmem>>, vector<1x1x8x4xbf16>
    %186 = vector.shape_cast %185 : vector<1x1x8x4xbf16> to vector<8x4xbf16>
    %cst_187 = arith.constant dense<0.000000e+00> : vector<64x4xf32>
    %187 = tpu.matmul %184, %186, %cst_187 {dimension_numbers = #tpu.dot_dimension_numbers<[1], [0], [0], [1], [0, 0, 1, 1], [], []>} : vector<64x8xbf16>, vector<8x4xbf16>, vector<64x4xf32> -> vector<64x4xf32>
    %188 = arith.addf %182, %187 : vector<64x4xf32>
    %c2_188 = arith.constant 2 : index
    %c2_189 = arith.constant 2 : index
    %c0_190 = arith.constant 0 : index
    %189 = vector.load %arg6[%c2_188, %c2_189, %c0_190] : memref<10x10x8xbf16, #tpu.memory_space<vmem>>, vector<8x8x8xbf16>
    %190 = vector.shape_cast %189 : vector<8x8x8xbf16> to vector<64x8xbf16>
    %c3_191 = arith.constant 3 : index
    %c3_192 = arith.constant 3 : index
    %c0_193 = arith.constant 0 : index
    %c0_194 = arith.constant 0 : index
    %191 = vector.load %arg3[%c3_191, %c3_192, %c0_193, %c0_194] : memref<4x4x8x4xbf16, #tpu.memory_space<vmem>>, vector<1x1x8x4xbf16>
    %192 = vector.shape_cast %191 : vector<1x1x8x4xbf16> to vector<8x4xbf16>
    %cst_195 = arith.constant dense<0.000000e+00> : vector<64x4xf32>
    %193 = tpu.matmul %190, %192, %cst_195 {dimension_numbers = #tpu.dot_dimension_numbers<[1], [0], [0], [1], [0, 0, 1, 1], [], []>} : vector<64x8xbf16>, vector<8x4xbf16>, vector<64x4xf32> -> vector<64x4xf32>
    %194 = arith.addf %188, %193 : vector<64x4xf32>
    %195 = arith.truncf %194 : vector<64x4xf32> to vector<64x4xbf16>
    %c0_196 = arith.constant 0 : index
    %c3_197 = arith.constant 3 : index
    %c0_198 = arith.constant 0 : index
    %c0_199 = arith.constant 0 : index
    %196 = vector.load %arg4[%c0_196, %c3_197, %c0_198, %c0_199] : memref<1x4x64x4xbf16, #tpu.memory_space<vmem>>, vector<1x1x64x4xbf16>
    %197 = vector.shape_cast %196 : vector<1x1x64x4xbf16> to vector<64x4xbf16>
    %198 = vector.shape_cast %195 : vector<64x4xbf16> to vector<1x1x64x4xbf16>
    tpu.vector_store %arg4[%c0_196, %c3_197, %c0_198, %c0_199], %198 {strides = array<i32>} : memref<1x4x64x4xbf16, #tpu.memory_space<vmem>>, vector<1x1x64x4xbf16>,
    %cst_200 = arith.constant dense<0.000000e+00> : vector<4xf32>
    %199 = vector.multi_reduction <add>, %194, %cst_200 [0] : vector<64x4xf32> to vector<4xf32>
    %200 = vector.shape_cast %199 : vector<4xf32> to vector<1x4xf32>
    %201 = arith.addf %165, %200 : vector<1x4xf32>
    %202 = arith.mulf %194, %194 : vector<64x4xf32>
    %cst_201 = arith.constant dense<0.000000e+00> : vector<4xf32>
    %203 = vector.multi_reduction <add>, %202, %cst_201 [0] : vector<64x4xf32> to vector<4xf32>
    %204 = vector.shape_cast %203 : vector<4xf32> to vector<1x4xf32>
    %205 = arith.addf %169, %204 : vector<1x4xf32>
    %c0_202 = arith.constant 0 : index
    %c0_203 = arith.constant 0 : index
    %c0_204 = arith.constant 0 : index
    %206 = vector.load %arg5[%c0_202, %c0_203, %c0_204] : memref<1x2x4xf32, #tpu.memory_space<vmem>>, vector<1x1x4xf32>
    %207 = vector.shape_cast %206 : vector<1x1x4xf32> to vector<1x4xf32>
    %208 = vector.shape_cast %201 : vector<1x4xf32> to vector<1x1x4xf32>
    tpu.vector_store %arg5[%c0_202, %c0_203, %c0_204], %208 {strides = array<i32>} : memref<1x2x4xf32, #tpu.memory_space<vmem>>, vector<1x1x4xf32>,
    %c0_205 = arith.constant 0 : index
    %c1_206 = arith.constant 1 : index
    %c0_207 = arith.constant 0 : index
    %209 = vector.load %arg5[%c0_205, %c1_206, %c0_207] : memref<1x2x4xf32, #tpu.memory_space<vmem>>, vector<1x1x4xf32>
    %210 = vector.shape_cast %209 : vector<1x1x4xf32> to vector<1x4xf32>
    %211 = vector.shape_cast %205 : vector<1x4xf32> to vector<1x1x4xf32>
    tpu.vector_store %arg5[%c0_205, %c1_206, %c0_207], %211 {strides = array<i32>} : memref<1x2x4xf32, #tpu.memory_space<vmem>>, vector<1x1x4xf32>,
    return
  }
  func.func @transform_0(%arg0: i32) -> (i32, i32, i32, i32) {
    %c0_i32 = arith.constant 0 : i32
    %c0_i32_0 = arith.constant 0 : i32
    %c0_i32_1 = arith.constant 0 : i32
    %c0_i32_2 = arith.constant 0 : i32
    return %arg0, %c0_i32, %c0_i32_0, %c0_i32_1 : i32, i32, i32, i32
  }
  func.func @transform_1(%arg0: i32) -> (i32, i32, i32) {
    %c0_i32 = arith.constant 0 : i32
    %c0_i32_0 = arith.constant 0 : i32
    %c0_i32_1 = arith.constant 0 : i32
    %c0_i32_2 = arith.constant 0 : i32
    return %c0_i32, %c0_i32_0, %c0_i32_1 : i32, i32, i32
  }
  func.func @transform_2(%arg0: i32) -> (i32, i32, i32, i32) {
    %c0_i32 = arith.constant 0 : i32
    %c0_i32_0 = arith.constant 0 : i32
    %c0_i32_1 = arith.constant 0 : i32
    %c0_i32_2 = arith.constant 0 : i32
    %c0_i32_3 = arith.constant 0 : i32
    return %c0_i32, %c0_i32_0, %c0_i32_1, %c0_i32_2 : i32, i32, i32, i32
  }
  func.func @transform_3(%arg0: i32) -> (i32, i32, i32, i32) {
    %c0_i32 = arith.constant 0 : i32
    %c0_i32_0 = arith.constant 0 : i32
    %c0_i32_1 = arith.constant 0 : i32
    %c0_i32_2 = arith.constant 0 : i32
    return %arg0, %c0_i32, %c0_i32_0, %c0_i32_1 : i32, i32, i32, i32
  }
  func.func @transform_4(%arg0: i32) -> (i32, i32, i32) {
    %c0_i32 = arith.constant 0 : i32
    %c0_i32_0 = arith.constant 0 : i32
    %c0_i32_1 = arith.constant 0 : i32
    return %arg0, %c0_i32, %c0_i32_0 : i32, i32, i32
  }
}

</mosaic_0001>

<llo_original>
// kernel: unet_innermost_forward.1
$region0: #{unet_innermost_forward.1}
  #allocation0 [shape = 'u32[]', space=smem, size = 0x4, offset = 0x4, fixed_abs, tag = 'smem constant byte address 0x4 - core index']
  #allocation1 [shape = 'u32[144,128]{1,0:T(1,128)}', space=vmem, size = 0x12000, scoped, tag = 'internal scratch']
  #allocation2 [shape = 'bf16[10,10,8]{2,1,0:T(8,128)(2,1)}', space=vmem, size = 0xa000, scoped, tag = 'scratch operand']
  %s0 = inlined_call_operand.vmem [shape: f32[2,9,9,16], index: 0, kind: input, shape index: {}]
  %s1 = inlined_call_operand.vmem [shape: bf16[4,16,8], index: 1, kind: input, shape index: {}]
  %s2 = inlined_call_operand.vmem [shape: bf16[4,4,8,4], index: 2, kind: input, shape index: {}]
  %s3 = inlined_call_operand.vmem [shape: bf16[2,4,64,4], index: 3, kind: output, shape index: {0}]
  %s4 = inlined_call_operand.vmem [shape: f32[2,2,4], index: 4, kind: output, shape index: {1}]
  %5 = xla_tuple %s3, %s4
  %s6 = sld [smem:[#allocation0]]
  $region53: #{unet_innermost_forward.1} parent=0
    _
  %s8 = ssub.s32 1, %s6
  %s9 = scalar_select 0, %s8, %s6
  loop: start=0, step=1, limit=4
  $region2: #{unet_innermost_forward.1} parent=0 // loop_pre_header
    _
  $region3: #{unet_innermost_forward.1} parent=0 // loop_header
    %s11 = sphi 0, %s15
    %p12 = scmp.ge.s32.totalorder %s11, 4
    %s21 = sphi 0, %s23
    %s24 = sphi 0, %s21
    %s25 = sphi 0, %s24
    %s41 = sphi 0, %s25
    %s45 = sphi 0, %s45
    %s47 = sphi 0, %s45
    %s48 = sphi 0, %s47
    %s62 = sphi 0, %s48
    %s66 = sphi 0, %s66
    %s68 = sphi 0, %s66
    %s69 = sphi 0, %s68
    %s83 = sphi 0, %s69
    %s89 = sphi 0, %s91
    %s92 = sphi 0, %s89
    %s93 = sphi 0, %s92
    %s109 = sphi 0, %s93
    %s115 = sphi 0, %s117
    %s118 = sphi 0, %s115
    %s119 = sphi 0, %s118
    %s135 = sphi 0, %s119
  $region4: #{unet_innermost_forward.1} parent=0 // loop_header_branch
    %14 = sbr.rel (%p12) target = $region8
  $region5: #{unet_innermost_forward.1} parent=0 // loop_body
    %s16 = ssub.s32 %s11, 1
    %s17 = ssub.s32 %s11, 2
    %s18 = sadd.s32 %s11, 1
    %s19 = ssub.s32 %s11, %s18
    %p20 = scmp.eq.s32.totalorder %s19, 0
    %s22 = sadd.s32 %s21, 1
    %s23 = scalar_select %p20, %s21, %s22
    %p26 = pneg %p20
    %p27 = scmp.eq.s32.totalorder %s11, 1
    %p28 = por %p26, %p27
    %p29 = scmp.ne.s32.totalorder %s21, %s24
    %p30 = scmp.eq.s32.totalorder %s11, 0
    %p31 = por %p29, %p30
    %p32 = scmp.ne.s32.totalorder %s21, %s24
    %p33 = scmp.eq.s32.totalorder %s16, 1
    %p34 = por %p32, %p33
    %p35 = scmp.ne.s32.totalorder %s24, %s25
    %p36 = scmp.eq.s32.totalorder %s16, 0
    %p37 = por %p35, %p36
    %p38 = scmp.ne.s32.totalorder %s24, %s25
    %p39 = scmp.eq.s32.totalorder %s17, 1
    %p40 = por %p38, %p39
    %p42 = scmp.ne.s32.totalorder %s25, %s41
    %p43 = scmp.eq.s32.totalorder %s17, 0
    %p44 = por %p42, %p43
    %s46 = sadd.s32 %s45, 1
    %p49 = scmp.eq.s32.totalorder %s11, 1
    %p50 = scmp.ne.s32.totalorder %s45, %s47
    %p51 = scmp.eq.s32.totalorder %s11, 0
    %p52 = por %p50, %p51
    %p53 = scmp.ne.s32.totalorder %s45, %s47
    %p54 = scmp.eq.s32.totalorder %s16, 1
    %p55 = por %p53, %p54
    %p56 = scmp.ne.s32.totalorder %s47, %s48
    %p57 = scmp.eq.s32.totalorder %s16, 0
    %p58 = por %p56, %p57
    %p59 = scmp.ne.s32.totalorder %s47, %s48
    %p60 = scmp.eq.s32.totalorder %s17, 1
    %p61 = por %p59, %p60
    %p63 = scmp.ne.s32.totalorder %s48, %s62
    %p64 = scmp.eq.s32.totalorder %s17, 0
    %p65 = por %p63, %p64
    %s67 = sadd.s32 %s66, 1
    %p70 = scmp.eq.s32.totalorder %s11, 1
    %p71 = scmp.ne.s32.totalorder %s66, %s68
    %p72 = scmp.eq.s32.totalorder %s11, 0
    %p73 = por %p71, %p72
    %p74 = scmp.ne.s32.totalorder %s66, %s68
    %p75 = scmp.eq.s32.totalorder %s16, 1
    %p76 = por %p74, %p75
    %p77 = scmp.ne.s32.totalorder %s68, %s69
    %p78 = scmp.eq.s32.totalorder %s16, 0
    %p79 = por %p77, %p78
    %p80 = scmp.ne.s32.totalorder %s68, %s69
    %p81 = scmp.eq.s32.totalorder %s17, 1
    %p82 = por %p80, %p81
    %p84 = scmp.ne.s32.totalorder %s69, %s83
    %p85 = scmp.eq.s32.totalorder %s17, 0
    %p86 = por %p84, %p85
    %s87 = ssub.s32 %s11, %s18
    %p88 = scmp.eq.s32.totalorder %s87, 0
    %s90 = sadd.s32 %s89, 1
    %s91 = scalar_select %p88, %s89, %s90
    %p94 = pneg %p88
    %p95 = scmp.eq.s32.totalorder %s11, 1
    %p96 = por %p94, %p95
    %p97 = scmp.ne.s32.totalorder %s89, %s92
    %p98 = scmp.eq.s32.totalorder %s11, 0
    %p99 = por %p97, %p98
    %p100 = scmp.ne.s32.totalorder %s89, %s92
    %p101 = scmp.eq.s32.totalorder %s16, 1
    %p102 = por %p100, %p101
    %p103 = scmp.ne.s32.totalorder %s92, %s93
    %p104 = scmp.eq.s32.totalorder %s16, 0
    %p105 = por %p103, %p104
    %p106 = scmp.ne.s32.totalorder %s92, %s93
    %p107 = scmp.eq.s32.totalorder %s17, 1
    %p108 = por %p106, %p107
    %p110 = scmp.ne.s32.totalorder %s93, %s109
    %p111 = scmp.eq.s32.totalorder %s17, 0
    %p112 = por %p110, %p111
    %s113 = ssub.s32 %s11, %s18
    %p114 = scmp.eq.s32.totalorder %s113, 0
    %s116 = sadd.s32 %s115, 1
    %s117 = scalar_select %p114, %s115, %s116
    %p120 = pneg %p114
    %p121 = scmp.eq.s32.totalorder %s11, 1
    %p122 = por %p120, %p121
    %p123 = scmp.ne.s32.totalorder %s115, %s118
    %p124 = scmp.eq.s32.totalorder %s11, 0
    %p125 = por %p123, %p124
    %p126 = scmp.ne.s32.totalorder %s115, %s118
    %p127 = scmp.eq.s32.totalorder %s16, 1
    %p128 = por %p126, %p127
    %p129 = scmp.ne.s32.totalorder %s118, %s119
    %p130 = scmp.eq.s32.totalorder %s16, 0
    %p131 = por %p129, %p130
    %p132 = scmp.ne.s32.totalorder %s118, %s119
    %p133 = scmp.eq.s32.totalorder %s17, 1
    %p134 = por %p132, %p133
    %p136 = scmp.ne.s32.totalorder %s119, %s135
    %p137 = scmp.eq.s32.totalorder %s17, 0
    %p138 = por %p136, %p137
    %p139 = scmp.le.s32.totalorder 1, %s11
    %p140 = scmp.lt.s32.totalorder %s11, 3
    %p141 = pnand %p139, %p140
    %p142 = pneg %p141
    // Predicated region
    $region9: #{unet_innermost_forward.1} parent=5 // pred_check
      _
    $region10: #{unet_innermost_forward.1} parent=5 // pred_check_branch
      %144 = sbr.rel (%p141) target = $region12
    $region11: #{unet_innermost_forward.1} parent=5 // pred_region
      %s145 = ssub.s32 %s11, 1
      // Predicated region
      $region13: #{unet_innermost_forward.1} parent=11 // pred_check
        %p146 = pneg %p58
      $region14: #{unet_innermost_forward.1} parent=11 // pred_check_branch
        %148 = sbr.rel (%p146) target = $region16
      $region15: #{unet_innermost_forward.1} parent=11 // pred_region
        _
      $region16: #{unet_innermost_forward.1} parent=11 // pred_fallthru
        _
      // Predicated region
      $region17: #{unet_innermost_forward.1} parent=11 // pred_check
        %p149 = pneg %p79
      $region18: #{unet_innermost_forward.1} parent=11 // pred_check_branch
        %151 = sbr.rel (%p149) target = $region20
      $region19: #{unet_innermost_forward.1} parent=11 // pred_region
        _
      $region20: #{unet_innermost_forward.1} parent=11 // pred_fallthru
        _
    $region12: #{unet_innermost_forward.1} parent=5 // pred_fallthru
      _
    %p152 = scmp.lt.s32.totalorder %s11, 2
    // Predicated region
    $region21: #{unet_innermost_forward.1} parent=5 // pred_check
      %p153 = pneg %p152
    $region22: #{unet_innermost_forward.1} parent=5 // pred_check_branch
      %155 = sbr.rel (%p153) target = $region24
    $region23: #{unet_innermost_forward.1} parent=5 // pred_region
      // Predicated region
      $region25: #{unet_innermost_forward.1} parent=23 // pred_check
        %p156 = pneg %p31
      $region26: #{unet_innermost_forward.1} parent=23 // pred_check_branch
        %158 = sbr.rel (%p156) target = $region28
      $region27: #{unet_innermost_forward.1} parent=23 // pred_region
        %p159 = scmp.lt.s32.totalorder %s11, 1
        %s160 = scalar_select %p159, %s11, 1
        %s161 = smul.addr %s160, 18
        %s162 = smul.addr %s161, 8
        %s163 = scalar_lea.vmem %s0, %s162
      $region28: #{unet_innermost_forward.1} parent=23 // pred_fallthru
        _
    $region24: #{unet_innermost_forward.1} parent=5 // pred_fallthru
      _
    %p164 = scmp.le.s32.totalorder 1, %s11
    %p165 = scmp.lt.s32.totalorder %s11, 3
    %p166 = pnand %p164, %p165
    %p167 = pneg %p166
    // Predicated region
    $region29: #{unet_innermost_forward.1} parent=5 // pred_check
      _
    $region30: #{unet_innermost_forward.1} parent=5 // pred_check_branch
      %169 = sbr.rel (%p166) target = $region32
    $region31: #{unet_innermost_forward.1} parent=5 // pred_region
      %s170 = ssub.s32 %s11, 1
      %p171 = scmp.lt.s32.totalorder %s16, 1
      %s172 = scalar_select %p171, %s16, 1
      %s173 = smul.addr %s172, 18
      %s174 = smul.addr %s173, 8
      %s175 = scalar_lea.vmem %s0, %s174
      %p176 = pneg %p37
      %p177 = pneg %p34
      %p178 = pneg %p58
      %p179 = pneg %p55
      %p180 = pneg %p79
      %p181 = pneg %p76
      %p182 = pneg %p105
      %p183 = pneg %p102
      %p184 = scmp.lt.s32.totalorder %s16, 1
      %s185 = scalar_select %p184, %s16, 1
      %s186 = smul.addr %s185, 32
      %s187 = smul.addr %s186, 4
      %s188 = scalar_lea.vmem %s3, %s187
      %p189 = pneg %p131
      %p190 = pneg %p128
      %p191 = scmp.lt.s32.totalorder %s16, 1
      %s192 = scalar_select %p191, %s16, 1
      %s193 = smul.addr %s192, 2
      %s194 = scalar_lea.vmem %s4, %s193
      %p195 = scmp.lt.s32.totalorder %s16, 1
      %s196 = scalar_select %p195, %s16, 1
      %s197 = smul.addr %s196, 18
      %s198 = smul.addr %s197, 8
      %s199 = scalar_lea.vmem %s0, %s198
      %p200 = scmp.lt.s32.totalorder %s16, 1
      %s201 = scalar_select %p200, %s16, 1
      %s202 = smul.addr %s201, 32
      %s203 = smul.addr %s202, 4
      %s204 = scalar_lea.vmem %s3, %s203
      %p205 = scmp.lt.s32.totalorder %s16, 1
      %s206 = scalar_select %p205, %s16, 1
      %s207 = smul.addr %s206, 2
      %s208 = scalar_lea.vmem %s4, %s207
      %v210 = vld [vmem:[%s199] sm:$0xff]
      %v211 = vld [vmem:[%s199 + $0x10] sm:$0xff]
      %v212 = vld [vmem:[%s199 + $0x20] sm:$0xff]
      %v213 = vld [vmem:[%s199 + $0x30] sm:$0xff]
      %v214 = vld [vmem:[%s199 + $0x40] sm:$0xff]
      %v215 = vld [vmem:[%s199 + $0x50] sm:$0xff]
      %v216 = vld [vmem:[%s199 + $0x60] sm:$0xff]
      %v217 = vld [vmem:[%s199 + $0x70] sm:$0xff]
      %vm218 = vcmp.ge.f32.partialorder %v210, 0.0
      %vm219 = vcmp.ge.f32.partialorder %v211, 0.0
      %vm220 = vcmp.ge.f32.partialorder %v212, 0.0
      %vm221 = vcmp.ge.f32.partialorder %v213, 0.0
      %vm222 = vcmp.ge.f32.partialorder %v214, 0.0
      %vm223 = vcmp.ge.f32.partialorder %v215, 0.0
      %vm224 = vcmp.ge.f32.partialorder %v216, 0.0
      %vm225 = vcmp.ge.f32.partialorder %v217, 0.0
      %v226 = vmul.f32 %v210, 0.2
      %v227 = vmul.f32 %v211, 0.2
      %v228 = vmul.f32 %v212, 0.2
      %v229 = vmul.f32 %v213, 0.2
      %v230 = vmul.f32 %v214, 0.2
      %v231 = vmul.f32 %v215, 0.2
      %v232 = vmul.f32 %v216, 0.2
      %v233 = vmul.f32 %v217, 0.2
      %v234 = vsel %vm218, %v210, %v226
      %v235 = vsel %vm219, %v211, %v227
      %v236 = vsel %vm220, %v212, %v228
      %v237 = vsel %vm221, %v213, %v229
      %v238 = vsel %vm222, %v214, %v230
      %v239 = vsel %vm223, %v215, %v231
      %v240 = vsel %vm224, %v216, %v232
      %v241 = vsel %vm225, %v217, %v233
      %v242 = vpack.c.bf16 %v234, %v234
      %v243 = vpack.c.bf16 %v235, %v235
      %v244 = vpack.c.bf16 %v236, %v236
      %v245 = vpack.c.bf16 %v237, %v237
      %v246 = vpack.c.bf16 %v238, %v238
      %v247 = vpack.c.bf16 %v239, %v239
      %v248 = vpack.c.bf16 %v240, %v240
      %v249 = vpack.c.bf16 %v241, %v241
      %v250 = vld [vmem:[%s1] sm:$0xf]
      %v251 = vld [vmem:[%s1 + $0x4] sm:$0xf]
      %v252 = vld [vmem:[%s199 + $0x1] sm:$0xff]
      %v253 = vld [vmem:[%s199 + $0x11] sm:$0xff]
      %v254 = vld [vmem:[%s199 + $0x21] sm:$0xff]
      %v255 = vld [vmem:[%s199 + $0x31] sm:$0xff]
      %v256 = vld [vmem:[%s199 + $0x41] sm:$0xff]
      %v257 = vld [vmem:[%s199 + $0x51] sm:$0xff]
      %v258 = vld [vmem:[%s199 + $0x61] sm:$0xff]
      %v259 = vld [vmem:[%s199 + $0x71] sm:$0xff]
      %vm260 = vcmp.ge.f32.partialorder %v252, 0.0
      %vm261 = vcmp.ge.f32.partialorder %v253, 0.0
      %vm262 = vcmp.ge.f32.partialorder %v254, 0.0
      %vm263 = vcmp.ge.f32.partialorder %v255, 0.0
      %vm264 = vcmp.ge.f32.partialorder %v256, 0.0
      %vm265 = vcmp.ge.f32.partialorder %v257, 0.0
      %vm266 = vcmp.ge.f32.partialorder %v258, 0.0
      %vm267 = vcmp.ge.f32.partialorder %v259, 0.0
      %v268 = vmul.f32 %v252, 0.2
      %v269 = vmul.f32 %v253, 0.2
      %v270 = vmul.f32 %v254, 0.2
      %v271 = vmul.f32 %v255, 0.2
      %v272 = vmul.f32 %v256, 0.2
      %v273 = vmul.f32 %v257, 0.2
      %v274 = vmul.f32 %v258, 0.2
      %v275 = vmul.f32 %v259, 0.2
      %v276 = vsel %vm260, %v252, %v268
      %v277 = vsel %vm261, %v253, %v269
      %v278 = vsel %vm262, %v254, %v270
      %v279 = vsel %vm263, %v255, %v271
      %v280 = vsel %vm264, %v256, %v272
      %v281 = vsel %vm265, %v257, %v273
      %v282 = vsel %vm266, %v258, %v274
      %v283 = vsel %vm267, %v259, %v275
      %v284 = vpack.c.bf16 %v276, %v276
      %v285 = vpack.c.bf16 %v277, %v277
      %v286 = vpack.c.bf16 %v278, %v278
      %v287 = vpack.c.bf16 %v279, %v279
      %v288 = vpack.c.bf16 %v280, %v280
      %v289 = vpack.c.bf16 %v281, %v281
      %v290 = vpack.c.bf16 %v282, %v282
      %v291 = vpack.c.bf16 %v283, %v283
      %s292 = scalar_lea.vmem %s1, 8
      %v293 = vld [vmem:[%s292] sm:$0xf]
      %v294 = vld [vmem:[%s292 + $0x4] sm:$0xf]
      %v303 = vunpack.c.l.b16 %v284
      %v304 = vunpack.c.l.b16 %v285
      %v305 = vunpack.c.l.b16 %v286
      %v306 = vunpack.c.l.b16 %v287
      %v307 = vunpack.c.l.b16 %v288
      %v308 = vunpack.c.l.b16 %v289
      %v309 = vunpack.c.l.b16 %v290
      %v310 = vunpack.c.l.b16 %v291
      %v311 = vpack.c.b16 %v304, %v303
      %v312 = vpack.c.b16 %v306, %v305
      %v313 = vpack.c.b16 %v308, %v307
      %v314 = vpack.c.b16 %v310, %v309
      %v317 = vunpack.c.l.b16 %v293
      %v318 = vunpack.c.l.b16 %v294
      %v319 = vpack.c.b16 %v318, %v317
      %vm321 = vcmask 130048
      %v323 = vsel %vm321, %v311, 0
      %v326 = vsel %vm321, %v312, 0
      %v329 = vsel %vm321, %v313, 0
      %v332 = vsel %vm321, %v314, 0
      %334 = vmatprep.subr.bf16.mxu0 0
      %335 = vmatpush1.bf16.msra.mxu0 0
      %336 = vmatprep.subr.bf16.mxu0 0
      %337 = vmatpush1.bf16.msra.mxu0 0
      %338 = vmatprep.subr.bf16.mxu0 0
      %339 = vmatpush1.bf16.msra.mxu0 0
      %340 = vmatprep.subr.bf16.mxu0 0
      %341 = vmatpush1.bf16.msra.mxu0 0
      %342 = vmatprep.subr.bf16.mxu0 0
      %343 = vmatpush1.bf16.msra.mxu0 0
      %344 = vmatprep.subr.bf16.mxu0 0
      %345 = vmatpush1.bf16.msra.mxu0 0
      %346 = vmatprep.subr.bf16.mxu0 0
      %347 = vmatpush1.bf16.msra.mxu0 0
      %348 = vmatprep.subr.bf16.mxu0 0
      %349 = vmatpush1.bf16.msra.mxu0 %v319
      %350 = vmatprep.subr.bf16.mxu0 0
      %351 = vmatpush2.bf16.msra.mxu0 0
      %352 = vmatprep.subr.bf16.mxu0 0
      %353 = vmatpush2.bf16.msra.mxu0 0
      %354 = vmatprep.subr.bf16.mxu0 0
      %355 = vmatpush2.bf16.msra.mxu0 0
      %356 = vmatprep.subr.bf16.mxu0 0
      %357 = vmatpush2.bf16.msra.mxu0 0
      %358 = vmatprep.subr.bf16.mxu0 0
      %359 = vmatpush2.bf16.msra.mxu0 0
      %360 = vmatprep.subr.bf16.mxu0 0
      %361 = vmatpush2.bf16.msra.mxu0 0
      %362 = vmatprep.subr.bf16.mxu0 0
      %363 = vmatpush2.bf16.msra.mxu0 0
      %364 = vmatprep.subr.bf16.mxu0 0
      %365 = vmatpush2.bf16.msra.mxu0 0
      %366 = vmatprep.mubr.bf16.mxu0 0
      %367 = vmatmul.mubr.bf16.gmra.mxu0 %v323
      %v368 = vpop.f32.mrf.mxu0
      %v369 = vadd.f32 0.0, %v368
      %v370 = vpop.f32.mrf.mxu0
      %v371 = vpop.f32.mrf.mxu0
      %v372 = vadd.f32 0.0, %v371
      %v373 = vpop.f32.mrf.mxu0
      %374 = vmatprep.mubr.bf16.mxu0 0
      %375 = vmatmul.mubr.bf16.gmra.mxu0 %v326
      %v376 = vpop.f32.mrf.mxu0
      %v377 = vadd.f32 0.0, %v376
      %v378 = vpop.f32.mrf.mxu0
      %v379 = vpop.f32.mrf.mxu0
      %v380 = vadd.f32 0.0, %v379
      %v381 = vpop.f32.mrf.mxu0
      %382 = vmatprep.mubr.bf16.mxu0 0
      %383 = vmatmul.mubr.bf16.gmra.mxu0 %v329
      %v384 = vpop.f32.mrf.mxu0
      %v385 = vadd.f32 0.0, %v384
      %v386 = vpop.f32.mrf.mxu0
      %v387 = vpop.f32.mrf.mxu0
      %v388 = vadd.f32 0.0, %v387
      %v389 = vpop.f32.mrf.mxu0
      %390 = vmatprep.mubr.bf16.mxu0 0
      %391 = vmatmul.mubr.bf16.gmra.mxu0 %v332
      %v392 = vpop.f32.mrf.mxu0
      %v393 = vadd.f32 0.0, %v392
      %v394 = vpop.f32.mrf.mxu0
      %v395 = vpop.f32.mrf.mxu0
      %v396 = vadd.f32 0.0, %v395
      %v397 = vpop.f32.mrf.mxu0
      %398 = vdwg.mxu0
      %v407 = vunpack.c.l.b16 %v242
      %v408 = vunpack.c.l.b16 %v243
      %v409 = vunpack.c.l.b16 %v244
      %v410 = vunpack.c.l.b16 %v245
      %v411 = vunpack.c.l.b16 %v246
      %v412 = vunpack.c.l.b16 %v247
      %v413 = vunpack.c.l.b16 %v248
      %v414 = vunpack.c.l.b16 %v249
      %v415 = vpack.c.b16 %v408, %v407
      %v416 = vpack.c.b16 %v410, %v409
      %v417 = vpack.c.b16 %v412, %v411
      %v418 = vpack.c.b16 %v414, %v413
      %v421 = vunpack.c.l.b16 %v250
      %v422 = vunpack.c.l.b16 %v251
      %v423 = vpack.c.b16 %v422, %v421
      %v426 = vsel %vm321, %v415, 0
      %v429 = vsel %vm321, %v416, 0
      %v432 = vsel %vm321, %v417, 0
      %v435 = vsel %vm321, %v418, 0
      %437 = vmatprep.subr.bf16.mxu0 0
      %438 = vmatpush1.bf16.msra.mxu0 0
      %439 = vmatprep.subr.bf16.mxu0 0
      %440 = vmatpush1.bf16.msra.mxu0 0
      %441 = vmatprep.subr.bf16.mxu0 0
      %442 = vmatpush1.bf16.msra.mxu0 0
      %443 = vmatprep.subr.bf16.mxu0 0
      %444 = vmatpush1.bf16.msra.mxu0 0
      %445 = vmatprep.subr.bf16.mxu0 0
      %446 = vmatpush1.bf16.msra.mxu0 0
      %447 = vmatprep.subr.bf16.mxu0 0
      %448 = vmatpush1.bf16.msra.mxu0 0
      %449 = vmatprep.subr.bf16.mxu0 0
      %450 = vmatpush1.bf16.msra.mxu0 0
      %451 = vmatprep.subr.bf16.mxu0 0
      %452 = vmatpush1.bf16.msra.mxu0 %v423
      %453 = vmatprep.subr.bf16.mxu0 0
      %454 = vmatpush2.bf16.msra.mxu0 0
      %455 = vmatprep.subr.bf16.mxu0 0
      %456 = vmatpush2.bf16.msra.mxu0 0
      %457 = vmatprep.subr.bf16.mxu0 0
      %458 = vmatpush2.bf16.msra.mxu0 0
      %459 = vmatprep.subr.bf16.mxu0 0
      %460 = vmatpush2.bf16.msra.mxu0 0
      %461 = vmatprep.subr.bf16.mxu0 0
      %462 = vmatpush2.bf16.msra.mxu0 0
      %463 = vmatprep.subr.bf16.mxu0 0
      %464 = vmatpush2.bf16.msra.mxu0 0
      %465 = vmatprep.subr.bf16.mxu0 0
      %466 = vmatpush2.bf16.msra.mxu0 0
      %467 = vmatprep.subr.bf16.mxu0 0
      %468 = vmatpush2.bf16.msra.mxu0 0
      %469 = vmatprep.mubr.bf16.mxu0 0
      %470 = vmatmul.mubr.bf16.gmra.mxu0 %v426
      %v471 = vpop.f32.mrf.mxu0
      %v472 = vadd.f32 %v369, %v471
      %v473 = vpop.f32.mrf.mxu0
      %v474 = vpop.f32.mrf.mxu0
      %v475 = vadd.f32 %v372, %v474
      %v476 = vpop.f32.mrf.mxu0
      %477 = vmatprep.mubr.bf16.mxu0 0
      %478 = vmatmul.mubr.bf16.gmra.mxu0 %v429
      %v479 = vpop.f32.mrf.mxu0
      %v480 = vadd.f32 %v377, %v479
      %v481 = vpop.f32.mrf.mxu0
      %v482 = vpop.f32.mrf.mxu0
      %v483 = vadd.f32 %v380, %v482
      %v484 = vpop.f32.mrf.mxu0
      %485 = vmatprep.mubr.bf16.mxu0 0
      %486 = vmatmul.mubr.bf16.gmra.mxu0 %v432
      %v487 = vpop.f32.mrf.mxu0
      %v488 = vadd.f32 %v385, %v487
      %v489 = vpop.f32.mrf.mxu0
      %v490 = vpop.f32.mrf.mxu0
      %v491 = vadd.f32 %v388, %v490
      %v492 = vpop.f32.mrf.mxu0
      %493 = vmatprep.mubr.bf16.mxu0 0
      %494 = vmatmul.mubr.bf16.gmra.mxu0 %v435
      %v495 = vpop.f32.mrf.mxu0
      %v496 = vadd.f32 %v393, %v495
      %v497 = vpop.f32.mrf.mxu0
      %v498 = vpop.f32.mrf.mxu0
      %v499 = vadd.f32 %v396, %v498
      %v500 = vpop.f32.mrf.mxu0
      %501 = vdwg.mxu0
      %s502 = scalar_lea.vmem %s199, 16
      %v503 = vld [vmem:[%s502] sm:$0xff]
      %v504 = vld [vmem:[%s502 + $0x10] sm:$0xff]
      %v505 = vld [vmem:[%s502 + $0x20] sm:$0xff]
      %v506 = vld [vmem:[%s502 + $0x30] sm:$0xff]
      %v507 = vld [vmem:[%s502 + $0x40] sm:$0xff]
      %v508 = vld [vmem:[%s502 + $0x50] sm:$0xff]
      %v509 = vld [vmem:[%s502 + $0x60] sm:$0xff]
      %v510 = vld [vmem:[%s502 + $0x70] sm:$0xff]
      %vm511 = vcmp.ge.f32.partialorder %v503, 0.0
      %vm512 = vcmp.ge.f32.partialorder %v504, 0.0
      %vm513 = vcmp.ge.f32.partialorder %v505, 0.0
      %vm514 = vcmp.ge.f32.partialorder %v506, 0.0
      %vm515 = vcmp.ge.f32.partialorder %v507, 0.0
      %vm516 = vcmp.ge.f32.partialorder %v508, 0.0
      %vm517 = vcmp.ge.f32.partialorder %v509, 0.0
      %vm518 = vcmp.ge.f32.partialorder %v510, 0.0
      %v519 = vmul.f32 %v503, 0.2
      %v520 = vmul.f32 %v504, 0.2
      %v521 = vmul.f32 %v505, 0.2
      %v522 = vmul.f32 %v506, 0.2
      %v523 = vmul.f32 %v507, 0.2
      %v524 = vmul.f32 %v508, 0.2
      %v525 = vmul.f32 %v509, 0.2
      %v526 = vmul.f32 %v510, 0.2
      %v527 = vsel %vm511, %v503, %v519
      %v528 = vsel %vm512, %v504, %v520
      %v529 = vsel %vm513, %v505, %v521
      %v530 = vsel %vm514, %v506, %v522
      %v531 = vsel %vm515, %v507, %v523
      %v532 = vsel %vm516, %v508, %v524
      %v533 = vsel %vm517, %v509, %v525
      %v534 = vsel %vm518, %v510, %v526
      %v535 = vpack.c.bf16 %v527, %v527
      %v536 = vpack.c.bf16 %v528, %v528
      %v537 = vpack.c.bf16 %v529, %v529
      %v538 = vpack.c.bf16 %v530, %v530
      %v539 = vpack.c.bf16 %v531, %v531
      %v540 = vpack.c.bf16 %v532, %v532
      %v541 = vpack.c.bf16 %v533, %v533
      %v542 = vpack.c.bf16 %v534, %v534
      %s543 = scalar_lea.vmem %s1, 16
      %v544 = vld [vmem:[%s543] sm:$0xf]
      %v545 = vld [vmem:[%s543 + $0x4] sm:$0xf]
      %v554 = vunpack.c.l.b16 %v535
      %v555 = vunpack.c.l.b16 %v536
      %v556 = vunpack.c.l.b16 %v537
      %v557 = vunpack.c.l.b16 %v538
      %v558 = vunpack.c.l.b16 %v539
      %v559 = vunpack.c.l.b16 %v540
      %v560 = vunpack.c.l.b16 %v541
      %v561 = vunpack.c.l.b16 %v542
      %v562 = vpack.c.b16 %v555, %v554
      %v563 = vpack.c.b16 %v557, %v556
      %v564 = vpack.c.b16 %v559, %v558
      %v565 = vpack.c.b16 %v561, %v560
      %v568 = vunpack.c.l.b16 %v544
      %v569 = vunpack.c.l.b16 %v545
      %v570 = vpack.c.b16 %v569, %v568
      %v573 = vsel %vm321, %v562, 0
      %v576 = vsel %vm321, %v563, 0
      %v579 = vsel %vm321, %v564, 0
      %v582 = vsel %vm321, %v565, 0
      %584 = vmatprep.subr.bf16.mxu0 0
      %585 = vmatpush1.bf16.msra.mxu0 0
      %586 = vmatprep.subr.bf16.mxu0 0
      %587 = vmatpush1.bf16.msra.mxu0 0
      %588 = vmatprep.subr.bf16.mxu0 0
      %589 = vmatpush1.bf16.msra.mxu0 0
      %590 = vmatprep.subr.bf16.mxu0 0
      %591 = vmatpush1.bf16.msra.mxu0 0
      %592 = vmatprep.subr.bf16.mxu0 0
      %593 = vmatpush1.bf16.msra.mxu0 0
      %594 = vmatprep.subr.bf16.mxu0 0
      %595 = vmatpush1.bf16.msra.mxu0 0
      %596 = vmatprep.subr.bf16.mxu0 0
      %597 = vmatpush1.bf16.msra.mxu0 0
      %598 = vmatprep.subr.bf16.mxu0 0
      %599 = vmatpush1.bf16.msra.mxu0 %v570
      %600 = vmatprep.subr.bf16.mxu0 0
      %601 = vmatpush2.bf16.msra.mxu0 0
      %602 = vmatprep.subr.bf16.mxu0 0
      %603 = vmatpush2.bf16.msra.mxu0 0
      %604 = vmatprep.subr.bf16.mxu0 0
      %605 = vmatpush2.bf16.msra.mxu0 0
      %606 = vmatprep.subr.bf16.mxu0 0
      %607 = vmatpush2.bf16.msra.mxu0 0
      %608 = vmatprep.subr.bf16.mxu0 0
      %609 = vmatpush2.bf16.msra.mxu0 0
      %610 = vmatprep.subr.bf16.mxu0 0
      %611 = vmatpush2.bf16.msra.mxu0 0
      %612 = vmatprep.subr.bf16.mxu0 0
      %613 = vmatpush2.bf16.msra.mxu0 0
      %614 = vmatprep.subr.bf16.mxu0 0
      %615 = vmatpush2.bf16.msra.mxu0 0
      %616 = vmatprep.mubr.bf16.mxu0 0
      %617 = vmatmul.mubr.bf16.gmra.mxu0 %v573
      %v618 = vpop.f32.mrf.mxu0
      %v619 = vadd.f32 0.0, %v618
      %v620 = vpop.f32.mrf.mxu0
      %v621 = vpop.f32.mrf.mxu0
      %v622 = vadd.f32 0.0, %v621
      %v623 = vpop.f32.mrf.mxu0
      %624 = vmatprep.mubr.bf16.mxu0 0
      %625 = vmatmul.mubr.bf16.gmra.mxu0 %v576
      %v626 = vpop.f32.mrf.mxu0
      %v627 = vadd.f32 0.0, %v626
      %v628 = vpop.f32.mrf.mxu0
      %v629 = vpop.f32.mrf.mxu0
      %v630 = vadd.f32 0.0, %v629
      %v631 = vpop.f32.mrf.mxu0
      %632 = vmatprep.mubr.bf16.mxu0 0
      %633 = vmatmul.mubr.bf16.gmra.mxu0 %v579
      %v634 = vpop.f32.mrf.mxu0
      %v635 = vadd.f32 0.0, %v634
      %v636 = vpop.f32.mrf.mxu0
      %v637 = vpop.f32.mrf.mxu0
      %v638 = vadd.f32 0.0, %v637
      %v639 = vpop.f32.mrf.mxu0
      %640 = vmatprep.mubr.bf16.mxu0 0
      %641 = vmatmul.mubr.bf16.gmra.mxu0 %v582
      %v642 = vpop.f32.mrf.mxu0
      %v643 = vadd.f32 0.0, %v642
      %v644 = vpop.f32.mrf.mxu0
      %v645 = vpop.f32.mrf.mxu0
      %v646 = vadd.f32 0.0, %v645
      %v647 = vpop.f32.mrf.mxu0
      %648 = vdwg.mxu0
      %v649 = vadd.f32 %v472, %v619
      %v650 = vadd.f32 %v475, %v622
      %v651 = vadd.f32 %v480, %v627
      %v652 = vadd.f32 %v483, %v630
      %v653 = vadd.f32 %v488, %v635
      %v654 = vadd.f32 %v491, %v638
      %v655 = vadd.f32 %v496, %v643
      %v656 = vadd.f32 %v499, %v646
      %v657 = vld [vmem:[%s502 + $0x1] sm:$0xff]
      %v658 = vld [vmem:[%s502 + $0x11] sm:$0xff]
      %v659 = vld [vmem:[%s502 + $0x21] sm:$0xff]
      %v660 = vld [vmem:[%s502 + $0x31] sm:$0xff]
      %v661 = vld [vmem:[%s502 + $0x41] sm:$0xff]
      %v662 = vld [vmem:[%s502 + $0x51] sm:$0xff]
      %v663 = vld [vmem:[%s502 + $0x61] sm:$0xff]
      %v664 = vld [vmem:[%s502 + $0x71] sm:$0xff]
      %vm665 = vcmp.ge.f32.partialorder %v657, 0.0
      %vm666 = vcmp.ge.f32.partialorder %v658, 0.0
      %vm667 = vcmp.ge.f32.partialorder %v659, 0.0
      %vm668 = vcmp.ge.f32.partialorder %v660, 0.0
      %vm669 = vcmp.ge.f32.partialorder %v661, 0.0
      %vm670 = vcmp.ge.f32.partialorder %v662, 0.0
      %vm671 = vcmp.ge.f32.partialorder %v663, 0.0
      %vm672 = vcmp.ge.f32.partialorder %v664, 0.0
      %v673 = vmul.f32 %v657, 0.2
      %v674 = vmul.f32 %v658, 0.2
      %v675 = vmul.f32 %v659, 0.2
      %v676 = vmul.f32 %v660, 0.2
      %v677 = vmul.f32 %v661, 0.2
      %v678 = vmul.f32 %v662, 0.2
      %v679 = vmul.f32 %v663, 0.2
      %v680 = vmul.f32 %v664, 0.2
      %v681 = vsel %vm665, %v657, %v673
      %v682 = vsel %vm666, %v658, %v674
      %v683 = vsel %vm667, %v659, %v675
      %v684 = vsel %vm668, %v660, %v676
      %v685 = vsel %vm669, %v661, %v677
      %v686 = vsel %vm670, %v662, %v678
      %v687 = vsel %vm671, %v663, %v679
      %v688 = vsel %vm672, %v664, %v680
      %v689 = vpack.c.bf16 %v681, %v681
      %v690 = vpack.c.bf16 %v682, %v682
      %v691 = vpack.c.bf16 %v683, %v683
      %v692 = vpack.c.bf16 %v684, %v684
      %v693 = vpack.c.bf16 %v685, %v685
      %v694 = vpack.c.bf16 %v686, %v686
      %v695 = vpack.c.bf16 %v687, %v687
      %v696 = vpack.c.bf16 %v688, %v688
      %s697 = scalar_lea.vmem %s1, 24
      %v698 = vld [vmem:[%s697] sm:$0xf]
      %v699 = vld [vmem:[%s697 + $0x4] sm:$0xf]
      %v708 = vunpack.c.l.b16 %v689
      %v709 = vunpack.c.l.b16 %v690
      %v710 = vunpack.c.l.b16 %v691
      %v711 = vunpack.c.l.b16 %v692
      %v712 = vunpack.c.l.b16 %v693
      %v713 = vunpack.c.l.b16 %v694
      %v714 = vunpack.c.l.b16 %v695
      %v715 = vunpack.c.l.b16 %v696
      %v716 = vpack.c.b16 %v709, %v708
      %v717 = vpack.c.b16 %v711, %v710
      %v718 = vpack.c.b16 %v713, %v712
      %v719 = vpack.c.b16 %v715, %v714
      %v722 = vunpack.c.l.b16 %v698
      %v723 = vunpack.c.l.b16 %v699
      %v724 = vpack.c.b16 %v723, %v722
      %v727 = vsel %vm321, %v716, 0
      %v730 = vsel %vm321, %v717, 0
      %v733 = vsel %vm321, %v718, 0
      %v736 = vsel %vm321, %v719, 0
      %738 = vmatprep.subr.bf16.mxu0 0
      %739 = vmatpush1.bf16.msra.mxu0 0
      %740 = vmatprep.subr.bf16.mxu0 0
      %741 = vmatpush1.bf16.msra.mxu0 0
      %742 = vmatprep.subr.bf16.mxu0 0
      %743 = vmatpush1.bf16.msra.mxu0 0
      %744 = vmatprep.subr.bf16.mxu0 0
      %745 = vmatpush1.bf16.msra.mxu0 0
      %746 = vmatprep.subr.bf16.mxu0 0
      %747 = vmatpush1.bf16.msra.mxu0 0
      %748 = vmatprep.subr.bf16.mxu0 0
      %749 = vmatpush1.bf16.msra.mxu0 0
      %750 = vmatprep.subr.bf16.mxu0 0
      %751 = vmatpush1.bf16.msra.mxu0 0
      %752 = vmatprep.subr.bf16.mxu0 0
      %753 = vmatpush1.bf16.msra.mxu0 %v724
      %754 = vmatprep.subr.bf16.mxu0 0
      %755 = vmatpush2.bf16.msra.mxu0 0
      %756 = vmatprep.subr.bf16.mxu0 0
      %757 = vmatpush2.bf16.msra.mxu0 0
      %758 = vmatprep.subr.bf16.mxu0 0
      %759 = vmatpush2.bf16.msra.mxu0 0
      %760 = vmatprep.subr.bf16.mxu0 0
      %761 = vmatpush2.bf16.msra.mxu0 0
      %762 = vmatprep.subr.bf16.mxu0 0
      %763 = vmatpush2.bf16.msra.mxu0 0
      %764 = vmatprep.subr.bf16.mxu0 0
      %765 = vmatpush2.bf16.msra.mxu0 0
      %766 = vmatprep.subr.bf16.mxu0 0
      %767 = vmatpush2.bf16.msra.mxu0 0
      %768 = vmatprep.subr.bf16.mxu0 0
      %769 = vmatpush2.bf16.msra.mxu0 0
      %770 = vmatprep.mubr.bf16.mxu0 0
      %771 = vmatmul.mubr.bf16.gmra.mxu0 %v727
      %v772 = vpop.f32.mrf.mxu0
      %v773 = vadd.f32 0.0, %v772
      %v774 = vpop.f32.mrf.mxu0
      %v775 = vpop.f32.mrf.mxu0
      %v776 = vadd.f32 0.0, %v775
      %v777 = vpop.f32.mrf.mxu0
      %778 = vmatprep.mubr.bf16.mxu0 0
      %779 = vmatmul.mubr.bf16.gmra.mxu0 %v730
      %v780 = vpop.f32.mrf.mxu0
      %v781 = vadd.f32 0.0, %v780
      %v782 = vpop.f32.mrf.mxu0
      %v783 = vpop.f32.mrf.mxu0
      %v784 = vadd.f32 0.0, %v783
      %v785 = vpop.f32.mrf.mxu0
      %786 = vmatprep.mubr.bf16.mxu0 0
      %787 = vmatmul.mubr.bf16.gmra.mxu0 %v733
      %v788 = vpop.f32.mrf.mxu0
      %v789 = vadd.f32 0.0, %v788
      %v790 = vpop.f32.mrf.mxu0
      %v791 = vpop.f32.mrf.mxu0
      %v792 = vadd.f32 0.0, %v791
      %v793 = vpop.f32.mrf.mxu0
      %794 = vmatprep.mubr.bf16.mxu0 0
      %795 = vmatmul.mubr.bf16.gmra.mxu0 %v736
      %v796 = vpop.f32.mrf.mxu0
      %v797 = vadd.f32 0.0, %v796
      %v798 = vpop.f32.mrf.mxu0
      %v799 = vpop.f32.mrf.mxu0
      %v800 = vadd.f32 0.0, %v799
      %v801 = vpop.f32.mrf.mxu0
      %802 = vdwg.mxu0
      %v803 = vadd.f32 %v649, %v773
      %v804 = vadd.f32 %v650, %v776
      %v805 = vadd.f32 %v651, %v781
      %v806 = vadd.f32 %v652, %v784
      %v807 = vadd.f32 %v653, %v789
      %v808 = vadd.f32 %v654, %v792
      %v809 = vadd.f32 %v655, %v797
      %v810 = vadd.f32 %v656, %v800
      %v811 = vmax.f32 %v803, 0.0
      %v812 = vmax.f32 %v804, 0.0
      %v813 = vmax.f32 %v805, 0.0
      %v814 = vmax.f32 %v806, 0.0
      %v815 = vmax.f32 %v807, 0.0
      %v816 = vmax.f32 %v808, 0.0
      %v817 = vmax.f32 %v809, 0.0
      %v818 = vmax.f32 %v810, 0.0
      %v819 = vpack.c.bf16 %v812, %v811
      %v820 = vpack.c.bf16 %v814, %v813
      %v821 = vpack.c.bf16 %v816, %v815
      %v822 = vpack.c.bf16 %v818, %v817
      %v827 = vunpack.c.l.b16 %v819
      %v828 = vunpack.c.h.b16 %v819
      %v829 = vunpack.c.l.b16 %v820
      %v830 = vunpack.c.h.b16 %v820
      %v831 = vunpack.c.l.b16 %v821
      %v832 = vunpack.c.h.b16 %v821
      %v833 = vunpack.c.l.b16 %v822
      %v834 = vunpack.c.h.b16 %v822
      %v835 = vpack.c.b16 %v827, %v827
      %v836 = vpack.c.b16 %v828, %v828
      %v837 = vpack.c.b16 %v829, %v829
      %v838 = vpack.c.b16 %v830, %v830
      %v839 = vpack.c.b16 %v831, %v831
      %v840 = vpack.c.b16 %v832, %v832
      %v841 = vpack.c.b16 %v833, %v833
      %v842 = vpack.c.b16 %v834, %v834
      %vm843 = vcmask 60416
      %844 = vst.msk [vmem:[#allocation2] sm:$0xf] %vm843, 0
      %vm845 = vcmask 57344
      %846 = vst.msk [vmem:[#allocation2 + $0x4] sm:$0x1] %vm845, 0
      %847 = vst.msk [vmem:[#allocation2 + $0x8] sm:$0xf] %vm843, 0
      %848 = vst.msk [vmem:[#allocation2 + $0xc] sm:$0x1] %vm845, 0
      %849 = vst.msk [vmem:[#allocation2 + $0x10] sm:$0xf] %vm843, 0
      %850 = vst.msk [vmem:[#allocation2 + $0x14] sm:$0x1] %vm845, 0
      %851 = vst.msk [vmem:[#allocation2 + $0x18] sm:$0xf] %vm843, 0
      %852 = vst.msk [vmem:[#allocation2 + $0x1c] sm:$0x1] %vm845, 0
      %853 = vst.msk [vmem:[#allocation2 + $0x20] sm:$0xf] %vm843, 0
      %854 = vst.msk [vmem:[#allocation2 + $0x24] sm:$0x1] %vm845, 0
      %855 = vst.msk [vmem:[#allocation2 + $0x28] sm:$0xf] %vm843, 0
      %856 = vst.msk [vmem:[#allocation2 + $0x2c] sm:$0x1] %vm845, 0
      %857 = vst.msk [vmem:[#allocation2 + $0x30] sm:$0xf] %vm843, 0
      %858 = vst.msk [vmem:[#allocation2 + $0x34] sm:$0x1] %vm845, 0
      %859 = vst.msk [vmem:[#allocation2 + $0x38] sm:$0xf] %vm843, 0
      %860 = vst.msk [vmem:[#allocation2 + $0x3c] sm:$0x1] %vm845, 0
      %861 = vst.msk [vmem:[#allocation2 + $0x40] sm:$0xf] %vm843, 0
      %862 = vst.msk [vmem:[#allocation2 + $0x44] sm:$0x1] %vm845, 0
      %863 = vst.msk [vmem:[#allocation2 + $0x48] sm:$0xf] %vm843, 0
      %864 = vst.msk [vmem:[#allocation2 + $0x4c] sm:$0x1] %vm845, 0
      %v866 = vshrl.u32 %v835, 16
      %v868 = vrot.slane %v866, 7
      %v869 = vshll.u32 %v835, 16
      %v871 = vor.u32 %v868, %v869
      %v872 = vrot.slane %v868, 4
      %v874 = vshrl.u32 %v836, 16
      %v876 = vrot.slane %v874, 7
      %v877 = vshll.u32 %v836, 16
      %v879 = vor.u32 %v876, %v877
      %v880 = vrot.slane %v876, 4
      %v882 = vshrl.u32 %v837, 16
      %v884 = vrot.slane %v882, 7
      %v885 = vshll.u32 %v837, 16
      %v887 = vor.u32 %v884, %v885
      %v888 = vrot.slane %v884, 4
      %v890 = vshrl.u32 %v838, 16
      %v892 = vrot.slane %v890, 7
      %v893 = vshll.u32 %v838, 16
      %v895 = vor.u32 %v892, %v893
      %v896 = vrot.slane %v892, 4
      %v898 = vshrl.u32 %v839, 16
      %v900 = vrot.slane %v898, 7
      %v901 = vshll.u32 %v839, 16
      %v903 = vor.u32 %v900, %v901
      %v904 = vrot.slane %v900, 4
      %v906 = vshrl.u32 %v840, 16
      %v908 = vrot.slane %v906, 7
      %v909 = vshll.u32 %v840, 16
      %v911 = vor.u32 %v908, %v909
      %v912 = vrot.slane %v908, 4
      %v914 = vshrl.u32 %v841, 16
      %v916 = vrot.slane %v914, 7
      %v917 = vshll.u32 %v841, 16
      %v919 = vor.u32 %v916, %v917
      %v920 = vrot.slane %v916, 4
      %v922 = vshrl.u32 %v842, 16
      %v924 = vrot.slane %v922, 7
      %v925 = vshll.u32 %v842, 16
      %v927 = vor.u32 %v924, %v925
      %v928 = vrot.slane %v924, 4
      %s945 = scalar_lea.vmem [#allocation2], 8
      %vm946 = vcmask 60416
      %vm947 = vsmask.f32 7938
      %vm948 = vmand %vm946, %vm947
      %v949 = vld [vmem:[%s945] sm:$0xf]
      %v950 = vsel %vm948, %v871, %v949
      %951 = vst [vmem:[%s945] sm:$0xf] %v950
      %vm952 = vcmask 57344
      %vm953 = vsmask.f32 256
      %vm954 = vmand %vm952, %vm953
      %v955 = vld [vmem:[%s945 + $0x4] sm:$0x1]
      %v956 = vsel %vm954, %v872, %v955
      %957 = vst [vmem:[%s945 + $0x4] sm:$0x1] %v956
      %v958 = vld [vmem:[%s945 + $0x8] sm:$0xf]
      %v959 = vsel %vm948, %v879, %v958
      %960 = vst [vmem:[%s945 + $0x8] sm:$0xf] %v959
      %v961 = vld [vmem:[%s945 + $0xc] sm:$0x1]
      %v962 = vsel %vm954, %v880, %v961
      %963 = vst [vmem:[%s945 + $0xc] sm:$0x1] %v962
      %v964 = vld [vmem:[%s945 + $0x10] sm:$0xf]
      %v965 = vsel %vm948, %v887, %v964
      %966 = vst [vmem:[%s945 + $0x10] sm:$0xf] %v965
      %v967 = vld [vmem:[%s945 + $0x14] sm:$0x1]
      %v968 = vsel %vm954, %v888, %v967
      %969 = vst [vmem:[%s945 + $0x14] sm:$0x1] %v968
      %v970 = vld [vmem:[%s945 + $0x18] sm:$0xf]
      %v971 = vsel %vm948, %v895, %v970
      %972 = vst [vmem:[%s945 + $0x18] sm:$0xf] %v971
      %v973 = vld [vmem:[%s945 + $0x1c] sm:$0x1]
      %v974 = vsel %vm954, %v896, %v973
      %975 = vst [vmem:[%s945 + $0x1c] sm:$0x1] %v974
      %v976 = vld [vmem:[%s945 + $0x20] sm:$0xf]
      %v977 = vsel %vm948, %v903, %v976
      %978 = vst [vmem:[%s945 + $0x20] sm:$0xf] %v977
      %v979 = vld [vmem:[%s945 + $0x24] sm:$0x1]
      %v980 = vsel %vm954, %v904, %v979
      %981 = vst [vmem:[%s945 + $0x24] sm:$0x1] %v980
      %v982 = vld [vmem:[%s945 + $0x28] sm:$0xf]
      %v983 = vsel %vm948, %v911, %v982
      %984 = vst [vmem:[%s945 + $0x28] sm:$0xf] %v983
      %v985 = vld [vmem:[%s945 + $0x2c] sm:$0x1]
      %v986 = vsel %vm954, %v912, %v985
      %987 = vst [vmem:[%s945 + $0x2c] sm:$0x1] %v986
      %v988 = vld [vmem:[%s945 + $0x30] sm:$0xf]
      %v989 = vsel %vm948, %v919, %v988
      %990 = vst [vmem:[%s945 + $0x30] sm:$0xf] %v989
      %v991 = vld [vmem:[%s945 + $0x34] sm:$0x1]
      %v992 = vsel %vm954, %v920, %v991
      %993 = vst [vmem:[%s945 + $0x34] sm:$0x1] %v992
      %v994 = vld [vmem:[%s945 + $0x38] sm:$0xf]
      %v995 = vsel %vm948, %v927, %v994
      %996 = vst [vmem:[%s945 + $0x38] sm:$0xf] %v995
      %v997 = vld [vmem:[%s945 + $0x3c] sm:$0x1]
      %v998 = vsel %vm954, %v928, %v997
      %999 = vst [vmem:[%s945 + $0x3c] sm:$0x1] %v998
      %v1000 = vld [vmem:[#allocation2] sm:$0xf]
      %v1001 = vld [vmem:[#allocation2 + $0x8] sm:$0xf]
      %v1002 = vld [vmem:[#allocation2 + $0x10] sm:$0xf]
      %v1003 = vld [vmem:[#allocation2 + $0x18] sm:$0xf]
      %v1004 = vld [vmem:[#allocation2 + $0x20] sm:$0xf]
      %v1005 = vld [vmem:[#allocation2 + $0x28] sm:$0xf]
      %v1006 = vld [vmem:[#allocation2 + $0x30] sm:$0xf]
      %v1007 = vld [vmem:[#allocation2 + $0x38] sm:$0xf]
      %v1008 = vld [vmem:[%s2] sm:$0xf]
      %v1009 = vld [vmem:[#allocation2 + $0x4] sm:$0x1]
      %v1010 = vld [vmem:[#allocation2 + $0xc] sm:$0x1]
      %v1011 = vld [vmem:[#allocation2 + $0x14] sm:$0x1]
      %v1012 = vld [vmem:[#allocation2 + $0x1c] sm:$0x1]
      %v1013 = vld [vmem:[#allocation2 + $0x24] sm:$0x1]
      %v1014 = vld [vmem:[#allocation2 + $0x2c] sm:$0x1]
      %v1015 = vld [vmem:[#allocation2 + $0x34] sm:$0x1]
      %v1016 = vld [vmem:[#allocation2 + $0x3c] sm:$0x1]
      %vm1017 = vsmask.f32 3328
      %vm1018 = vsmask.f32 7440
      %vm1019 = vmor %vm1017, %vm1018
      %v1021 = vshrl.u32 %v1000, 16
      %v1023 = vrot.slane %v1021, 4
      %v1024 = vshll.u32 %v1000, 16
      %v1026 = vrot.slane %v1024, 5
      %v1027 = vor.u32 %v1023, %v1026
      %v1028 = vrot.slane %v1027, 4
      %v1030 = vshll.u32 %v1009, 16
      %v1032 = vrot.slane %v1030, 5
      %v1033 = vsel %vm1019, %v1028, %v1032
      %v1035 = vshrl.u32 %v1001, 16
      %v1037 = vrot.slane %v1035, 4
      %v1038 = vshll.u32 %v1001, 16
      %v1040 = vrot.slane %v1038, 5
      %v1041 = vor.u32 %v1037, %v1040
      %v1042 = vrot.slane %v1041, 4
      %v1044 = vshll.u32 %v1010, 16
      %v1046 = vrot.slane %v1044, 5
      %v1047 = vsel %vm1019, %v1042, %v1046
      %v1049 = vshrl.u32 %v1002, 16
      %v1051 = vrot.slane %v1049, 4
      %v1052 = vshll.u32 %v1002, 16
      %v1054 = vrot.slane %v1052, 5
      %v1055 = vor.u32 %v1051, %v1054
      %v1056 = vrot.slane %v1055, 4
      %v1058 = vshll.u32 %v1011, 16
      %v1060 = vrot.slane %v1058, 5
      %v1061 = vsel %vm1019, %v1056, %v1060
      %v1063 = vshrl.u32 %v1003, 16
      %v1065 = vrot.slane %v1063, 4
      %v1066 = vshll.u32 %v1003, 16
      %v1068 = vrot.slane %v1066, 5
      %v1069 = vor.u32 %v1065, %v1068
      %v1070 = vrot.slane %v1069, 4
      %v1072 = vshll.u32 %v1012, 16
      %v1074 = vrot.slane %v1072, 5
      %v1075 = vsel %vm1019, %v1070, %v1074
      %v1077 = vshrl.u32 %v1004, 16
      %v1079 = vrot.slane %v1077, 4
      %v1080 = vshll.u32 %v1004, 16
      %v1082 = vrot.slane %v1080, 5
      %v1083 = vor.u32 %v1079, %v1082
      %v1084 = vrot.slane %v1083, 4
      %v1086 = vshll.u32 %v1013, 16
      %v1088 = vrot.slane %v1086, 5
      %v1089 = vsel %vm1019, %v1084, %v1088
      %v1091 = vshrl.u32 %v1005, 16
      %v1093 = vrot.slane %v1091, 4
      %v1094 = vshll.u32 %v1005, 16
      %v1096 = vrot.slane %v1094, 5
      %v1097 = vor.u32 %v1093, %v1096
      %v1098 = vrot.slane %v1097, 4
      %v1100 = vshll.u32 %v1014, 16
      %v1102 = vrot.slane %v1100, 5
      %v1103 = vsel %vm1019, %v1098, %v1102
      %v1105 = vshrl.u32 %v1006, 16
      %v1107 = vrot.slane %v1105, 4
      %v1108 = vshll.u32 %v1006, 16
      %v1110 = vrot.slane %v1108, 5
      %v1111 = vor.u32 %v1107, %v1110
      %v1112 = vrot.slane %v1111, 4
      %v1114 = vshll.u32 %v1015, 16
      %v1116 = vrot.slane %v1114, 5
      %v1117 = vsel %vm1019, %v1112, %v1116
      %v1119 = vshrl.u32 %v1007, 16
      %v1121 = vrot.slane %v1119, 4
      %v1122 = vshll.u32 %v1007, 16
      %v1124 = vrot.slane %v1122, 5
      %v1125 = vor.u32 %v1121, %v1124
      %v1126 = vrot.slane %v1125, 4
      %v1128 = vshll.u32 %v1016, 16
      %v1130 = vrot.slane %v1128, 5
      %v1131 = vsel %vm1019, %v1126, %v1130
      %s1132 = scalar_lea.vmem %s2, 4
      %v1133 = vld [vmem:[%s1132] sm:$0xf]
      %v1134 = vunpack.c.l.b16 %v1033
      %v1135 = vunpack.c.l.b16 %v1047
      %v1136 = vunpack.c.l.b16 %v1061
      %v1137 = vunpack.c.l.b16 %v1075
      %v1138 = vunpack.c.l.b16 %v1089
      %v1139 = vunpack.c.l.b16 %v1103
      %v1140 = vunpack.c.l.b16 %v1117
      %v1141 = vunpack.c.l.b16 %v1131
      %v1142 = vpack.c.b16 %v1135, %v1134
      %v1143 = vpack.c.b16 %v1137, %v1136
      %v1144 = vpack.c.b16 %v1139, %v1138
      %v1145 = vpack.c.b16 %v1141, %v1140
      %vm1146 = vcmask 64512
      %v1148 = vsel %vm1146, %v1142, 0
      %v1151 = vsel %vm1146, %v1143, 0
      %v1154 = vsel %vm1146, %v1144, 0
      %v1157 = vsel %vm1146, %v1145, 0
      %vm1159 = vcmask 1043456
      %v1161 = vsel %vm1159, %v1133, 0
      %1163 = vmatprep.subr.bf16.mxu0 0
      %1164 = vmatpush1.bf16.msra.mxu0 0
      %1165 = vmatprep.subr.bf16.mxu0 0
      %1166 = vmatpush1.bf16.msra.mxu0 0
      %1167 = vmatprep.subr.bf16.mxu0 0
      %1168 = vmatpush1.bf16.msra.mxu0 0
      %1169 = vmatprep.subr.bf16.mxu0 0
      %1170 = vmatpush1.bf16.msra.mxu0 0
      %1171 = vmatprep.subr.bf16.mxu0 0
      %1172 = vmatpush1.bf16.msra.mxu0 0
      %1173 = vmatprep.subr.bf16.mxu0 0
      %1174 = vmatpush1.bf16.msra.mxu0 0
      %1175 = vmatprep.subr.bf16.mxu0 0
      %1176 = vmatpush1.bf16.msra.mxu0 0
      %1177 = vmatprep.subr.bf16.mxu0 0
      %1178 = vmatpush1.bf16.msra.mxu0 %v1161
      %1179 = vmatprep.subr.bf16.mxu0 0
      %1180 = vmatpush2.bf16.msra.mxu0 0
      %1181 = vmatprep.subr.bf16.mxu0 0
      %1182 = vmatpush2.bf16.msra.mxu0 0
      %1183 = vmatprep.subr.bf16.mxu0 0
      %1184 = vmatpush2.bf16.msra.mxu0 0
      %1185 = vmatprep.subr.bf16.mxu0 0
      %1186 = vmatpush2.bf16.msra.mxu0 0
      %1187 = vmatprep.subr.bf16.mxu0 0
      %1188 = vmatpush2.bf16.msra.mxu0 0
      %1189 = vmatprep.subr.bf16.mxu0 0
      %1190 = vmatpush2.bf16.msra.mxu0 0
      %1191 = vmatprep.subr.bf16.mxu0 0
      %1192 = vmatpush2.bf16.msra.mxu0 0
      %1193 = vmatprep.subr.bf16.mxu0 0
      %1194 = vmatpush2.bf16.msra.mxu0 0
      %1195 = vmatprep.mubr.bf16.mxu0 0
      %1196 = vmatmul.mubr.bf16.gmra.mxu0 %v1148
      %v1197 = vpop.f32.mrf.mxu0
      %v1198 = vadd.f32 0.0, %v1197
      %v1199 = vpop.f32.mrf.mxu0
      %v1200 = vpop.f32.mrf.mxu0
      %v1201 = vadd.f32 0.0, %v1200
      %v1202 = vpop.f32.mrf.mxu0
      %1203 = vmatprep.mubr.bf16.mxu0 0
      %1204 = vmatmul.mubr.bf16.gmra.mxu0 %v1151
      %v1205 = vpop.f32.mrf.mxu0
      %v1206 = vadd.f32 0.0, %v1205
      %v1207 = vpop.f32.mrf.mxu0
      %v1208 = vpop.f32.mrf.mxu0
      %v1209 = vadd.f32 0.0, %v1208
      %v1210 = vpop.f32.mrf.mxu0
      %1211 = vmatprep.mubr.bf16.mxu0 0
      %1212 = vmatmul.mubr.bf16.gmra.mxu0 %v1154
      %v1213 = vpop.f32.mrf.mxu0
      %v1214 = vadd.f32 0.0, %v1213
      %v1215 = vpop.f32.mrf.mxu0
      %v1216 = vpop.f32.mrf.mxu0
      %v1217 = vadd.f32 0.0, %v1216
      %v1218 = vpop.f32.mrf.mxu0
      %1219 = vmatprep.mubr.bf16.mxu0 0
      %1220 = vmatmul.mubr.bf16.gmra.mxu0 %v1157
      %v1221 = vpop.f32.mrf.mxu0
      %v1222 = vadd.f32 0.0, %v1221
      %v1223 = vpop.f32.mrf.mxu0
      %v1224 = vpop.f32.mrf.mxu0
      %v1225 = vadd.f32 0.0, %v1224
      %v1226 = vpop.f32.mrf.mxu0
      %1227 = vdwg.mxu0
      %v1236 = vunpack.c.l.b16 %v1000
      %v1237 = vunpack.c.l.b16 %v1001
      %v1238 = vunpack.c.l.b16 %v1002
      %v1239 = vunpack.c.l.b16 %v1003
      %v1240 = vunpack.c.l.b16 %v1004
      %v1241 = vunpack.c.l.b16 %v1005
      %v1242 = vunpack.c.l.b16 %v1006
      %v1243 = vunpack.c.l.b16 %v1007
      %v1244 = vpack.c.b16 %v1237, %v1236
      %v1245 = vpack.c.b16 %v1239, %v1238
      %v1246 = vpack.c.b16 %v1241, %v1240
      %v1247 = vpack.c.b16 %v1243, %v1242
      %v1249 = vsel %vm1146, %v1244, 0
      %v1252 = vsel %vm1146, %v1245, 0
      %v1255 = vsel %vm1146, %v1246, 0
      %v1258 = vsel %vm1146, %v1247, 0
      %v1261 = vsel %vm1159, %v1008, 0
      %1263 = vmatprep.subr.bf16.mxu0 0
      %1264 = vmatpush1.bf16.msra.mxu0 0
      %1265 = vmatprep.subr.bf16.mxu0 0
      %1266 = vmatpush1.bf16.msra.mxu0 0
      %1267 = vmatprep.subr.bf16.mxu0 0
      %1268 = vmatpush1.bf16.msra.mxu0 0
      %1269 = vmatprep.subr.bf16.mxu0 0
      %1270 = vmatpush1.bf16.msra.mxu0 0
      %1271 = vmatprep.subr.bf16.mxu0 0
      %1272 = vmatpush1.bf16.msra.mxu0 0
      %1273 = vmatprep.subr.bf16.mxu0 0
      %1274 = vmatpush1.bf16.msra.mxu0 0
      %1275 = vmatprep.subr.bf16.mxu0 0
      %1276 = vmatpush1.bf16.msra.mxu0 0
      %1277 = vmatprep.subr.bf16.mxu0 0
      %1278 = vmatpush1.bf16.msra.mxu0 %v1261
      %1279 = vmatprep.subr.bf16.mxu0 0
      %1280 = vmatpush2.bf16.msra.mxu0 0
      %1281 = vmatprep.subr.bf16.mxu0 0
      %1282 = vmatpush2.bf16.msra.mxu0 0
      %1283 = vmatprep.subr.bf16.mxu0 0
      %1284 = vmatpush2.bf16.msra.mxu0 0
      %1285 = vmatprep.subr.bf16.mxu0 0
      %1286 = vmatpush2.bf16.msra.mxu0 0
      %1287 = vmatprep.subr.bf16.mxu0 0
      %1288 = vmatpush2.bf16.msra.mxu0 0
      %1289 = vmatprep.subr.bf16.mxu0 0
      %1290 = vmatpush2.bf16.msra.mxu0 0
      %1291 = vmatprep.subr.bf16.mxu0 0
      %1292 = vmatpush2.bf16.msra.mxu0 0
      %1293 = vmatprep.subr.bf16.mxu0 0
      %1294 = vmatpush2.bf16.msra.mxu0 0
      %1295 = vmatprep.mubr.bf16.mxu0 0
      %1296 = vmatmul.mubr.bf16.gmra.mxu0 %v1249
      %v1297 = vpop.f32.mrf.mxu0
      %v1298 = vadd.f32 %v1198, %v1297
      %v1299 = vpop.f32.mrf.mxu0
      %v1300 = vpop.f32.mrf.mxu0
      %v1301 = vadd.f32 %v1201, %v1300
      %v1302 = vpop.f32.mrf.mxu0
      %1303 = vmatprep.mubr.bf16.mxu0 0
      %1304 = vmatmul.mubr.bf16.gmra.mxu0 %v1252
      %v1305 = vpop.f32.mrf.mxu0
      %v1306 = vadd.f32 %v1206, %v1305
      %v1307 = vpop.f32.mrf.mxu0
      %v1308 = vpop.f32.mrf.mxu0
      %v1309 = vadd.f32 %v1209, %v1308
      %v1310 = vpop.f32.mrf.mxu0
      %1311 = vmatprep.mubr.bf16.mxu0 0
      %1312 = vmatmul.mubr.bf16.gmra.mxu0 %v1255
      %v1313 = vpop.f32.mrf.mxu0
      %v1314 = vadd.f32 %v1214, %v1313
      %v1315 = vpop.f32.mrf.mxu0
      %v1316 = vpop.f32.mrf.mxu0
      %v1317 = vadd.f32 %v1217, %v1316
      %v1318 = vpop.f32.mrf.mxu0
      %1319 = vmatprep.mubr.bf16.mxu0 0
      %1320 = vmatmul.mubr.bf16.gmra.mxu0 %v1258
      %v1321 = vpop.f32.mrf.mxu0
      %v1322 = vadd.f32 %v1222, %v1321
      %v1323 = vpop.f32.mrf.mxu0
      %v1324 = vpop.f32.mrf.mxu0
      %v1325 = vadd.f32 %v1225, %v1324
      %v1326 = vpop.f32.mrf.mxu0
      %1327 = vdwg.mxu0
      %v1328 = vld [vmem:[%s945] sm:$0xf]
      %v1329 = vld [vmem:[%s945 + $0x8] sm:$0xf]
      %v1330 = vld [vmem:[%s945 + $0x10] sm:$0xf]
      %v1331 = vld [vmem:[%s945 + $0x18] sm:$0xf]
      %v1332 = vld [vmem:[%s945 + $0x20] sm:$0xf]
      %v1333 = vld [vmem:[%s945 + $0x28] sm:$0xf]
      %v1334 = vld [vmem:[%s945 + $0x30] sm:$0xf]
      %v1335 = vld [vmem:[%s945 + $0x38] sm:$0xf]
      %s1336 = scalar_lea.vmem %s2, 8
      %v1337 = vld [vmem:[%s1336] sm:$0xf]
      %v1346 = vunpack.c.l.b16 %v1328
      %v1347 = vunpack.c.l.b16 %v1329
      %v1348 = vunpack.c.l.b16 %v1330
      %v1349 = vunpack.c.l.b16 %v1331
      %v1350 = vunpack.c.l.b16 %v1332
      %v1351 = vunpack.c.l.b16 %v1333
      %v1352 = vunpack.c.l.b16 %v1334
      %v1353 = vunpack.c.l.b16 %v1335
      %v1354 = vpack.c.b16 %v1347, %v1346
      %v1355 = vpack.c.b16 %v1349, %v1348
      %v1356 = vpack.c.b16 %v1351, %v1350
      %v1357 = vpack.c.b16 %v1353, %v1352
      %v1359 = vsel %vm1146, %v1354, 0
      %v1362 = vsel %vm1146, %v1355, 0
      %v1365 = vsel %vm1146, %v1356, 0
      %v1368 = vsel %vm1146, %v1357, 0
      %v1371 = vsel %vm1159, %v1337, 0
      %1373 = vmatprep.subr.bf16.mxu0 0
      %1374 = vmatpush1.bf16.msra.mxu0 0
      %1375 = vmatprep.subr.bf16.mxu0 0
      %1376 = vmatpush1.bf16.msra.mxu0 0
      %1377 = vmatprep.subr.bf16.mxu0 0
      %1378 = vmatpush1.bf16.msra.mxu0 0
      %1379 = vmatprep.subr.bf16.mxu0 0
      %1380 = vmatpush1.bf16.msra.mxu0 0
      %1381 = vmatprep.subr.bf16.mxu0 0
      %1382 = vmatpush1.bf16.msra.mxu0 0
      %1383 = vmatprep.subr.bf16.mxu0 0
      %1384 = vmatpush1.bf16.msra.mxu0 0
      %1385 = vmatprep.subr.bf16.mxu0 0
      %1386 = vmatpush1.bf16.msra.mxu0 0
      %1387 = vmatprep.subr.bf16.mxu0 0
      %1388 = vmatpush1.bf16.msra.mxu0 %v1371
      %1389 = vmatprep.subr.bf16.mxu0 0
      %1390 = vmatpush2.bf16.msra.mxu0 0
      %1391 = vmatprep.subr.bf16.mxu0 0
      %1392 = vmatpush2.bf16.msra.mxu0 0
      %1393 = vmatprep.subr.bf16.mxu0 0
      %1394 = vmatpush2.bf16.msra.mxu0 0
      %1395 = vmatprep.subr.bf16.mxu0 0
      %1396 = vmatpush2.bf16.msra.mxu0 0
      %1397 = vmatprep.subr.bf16.mxu0 0
      %1398 = vmatpush2.bf16.msra.mxu0 0
      %1399 = vmatprep.subr.bf16.mxu0 0
      %1400 = vmatpush2.bf16.msra.mxu0 0
      %1401 = vmatprep.subr.bf16.mxu0 0
      %1402 = vmatpush2.bf16.msra.mxu0 0
      %1403 = vmatprep.subr.bf16.mxu0 0
      %1404 = vmatpush2.bf16.msra.mxu0 0
      %1405 = vmatprep.mubr.bf16.mxu0 0
      %1406 = vmatmul.mubr.bf16.gmra.mxu0 %v1359
      %v1407 = vpop.f32.mrf.mxu0
      %v1408 = vadd.f32 0.0, %v1407
      %v1409 = vpop.f32.mrf.mxu0
      %v1410 = vpop.f32.mrf.mxu0
      %v1411 = vadd.f32 0.0, %v1410
      %v1412 = vpop.f32.mrf.mxu0
      %1413 = vmatprep.mubr.bf16.mxu0 0
      %1414 = vmatmul.mubr.bf16.gmra.mxu0 %v1362
      %v1415 = vpop.f32.mrf.mxu0
      %v1416 = vadd.f32 0.0, %v1415
      %v1417 = vpop.f32.mrf.mxu0
      %v1418 = vpop.f32.mrf.mxu0
      %v1419 = vadd.f32 0.0, %v1418
      %v1420 = vpop.f32.mrf.mxu0
      %1421 = vmatprep.mubr.bf16.mxu0 0
      %1422 = vmatmul.mubr.bf16.gmra.mxu0 %v1365
      %v1423 = vpop.f32.mrf.mxu0
      %v1424 = vadd.f32 0.0, %v1423
      %v1425 = vpop.f32.mrf.mxu0
      %v1426 = vpop.f32.mrf.mxu0
      %v1427 = vadd.f32 0.0, %v1426
      %v1428 = vpop.f32.mrf.mxu0
      %1429 = vmatprep.mubr.bf16.mxu0 0
      %1430 = vmatmul.mubr.bf16.gmra.mxu0 %v1368
      %v1431 = vpop.f32.mrf.mxu0
      %v1432 = vadd.f32 0.0, %v1431
      %v1433 = vpop.f32.mrf.mxu0
      %v1434 = vpop.f32.mrf.mxu0
      %v1435 = vadd.f32 0.0, %v1434
      %v1436 = vpop.f32.mrf.mxu0
      %1437 = vdwg.mxu0
      %v1438 = vadd.f32 %v1298, %v1408
      %v1439 = vadd.f32 %v1301, %v1411
      %v1440 = vadd.f32 %v1306, %v1416
      %v1441 = vadd.f32 %v1309, %v1419
      %v1442 = vadd.f32 %v1314, %v1424
      %v1443 = vadd.f32 %v1317, %v1427
      %v1444 = vadd.f32 %v1322, %v1432
      %v1445 = vadd.f32 %v1325, %v1435
      %v1446 = vld [vmem:[%s945] sm:$0xf]
      %v1447 = vld [vmem:[%s945 + $0x4] sm:$0x1]
      %v1448 = vld [vmem:[%s945 + $0x8] sm:$0xf]
      %v1449 = vld [vmem:[%s945 + $0xc] sm:$0x1]
      %v1450 = vld [vmem:[%s945 + $0x10] sm:$0xf]
      %v1451 = vld [vmem:[%s945 + $0x14] sm:$0x1]
      %v1452 = vld [vmem:[%s945 + $0x18] sm:$0xf]
      %v1453 = vld [vmem:[%s945 + $0x1c] sm:$0x1]
      %v1454 = vld [vmem:[%s945 + $0x20] sm:$0xf]
      %v1455 = vld [vmem:[%s945 + $0x24] sm:$0x1]
      %v1456 = vld [vmem:[%s945 + $0x28] sm:$0xf]
      %v1457 = vld [vmem:[%s945 + $0x2c] sm:$0x1]
      %v1458 = vld [vmem:[%s945 + $0x30] sm:$0xf]
      %v1459 = vld [vmem:[%s945 + $0x34] sm:$0x1]
      %v1460 = vld [vmem:[%s945 + $0x38] sm:$0xf]
      %v1461 = vld [vmem:[%s945 + $0x3c] sm:$0x1]
      %v1463 = vshrl.u32 %v1446, 16
      %v1465 = vrot.slane %v1463, 4
      %v1466 = vshll.u32 %v1446, 16
      %v1468 = vrot.slane %v1466, 5
      %v1469 = vor.u32 %v1465, %v1468
      %v1470 = vrot.slane %v1469, 4
      %v1472 = vshll.u32 %v1447, 16
      %v1474 = vrot.slane %v1472, 5
      %v1475 = vsel %vm1019, %v1470, %v1474
      %v1477 = vshrl.u32 %v1448, 16
      %v1479 = vrot.slane %v1477, 4
      %v1480 = vshll.u32 %v1448, 16
      %v1482 = vrot.slane %v1480, 5
      %v1483 = vor.u32 %v1479, %v1482
      %v1484 = vrot.slane %v1483, 4
      %v1486 = vshll.u32 %v1449, 16
      %v1488 = vrot.slane %v1486, 5
      %v1489 = vsel %vm1019, %v1484, %v1488
      %v1491 = vshrl.u32 %v1450, 16
      %v1493 = vrot.slane %v1491, 4
      %v1494 = vshll.u32 %v1450, 16
      %v1496 = vrot.slane %v1494, 5
      %v1497 = vor.u32 %v1493, %v1496
      %v1498 = vrot.slane %v1497, 4
      %v1500 = vshll.u32 %v1451, 16
      %v1502 = vrot.slane %v1500, 5
      %v1503 = vsel %vm1019, %v1498, %v1502
      %v1505 = vshrl.u32 %v1452, 16
      %v1507 = vrot.slane %v1505, 4
      %v1508 = vshll.u32 %v1452, 16
      %v1510 = vrot.slane %v1508, 5
      %v1511 = vor.u32 %v1507, %v1510
      %v1512 = vrot.slane %v1511, 4
      %v1514 = vshll.u32 %v1453, 16
      %v1516 = vrot.slane %v1514, 5
      %v1517 = vsel %vm1019, %v1512, %v1516
      %v1519 = vshrl.u32 %v1454, 16
      %v1521 = vrot.slane %v1519, 4
      %v1522 = vshll.u32 %v1454, 16
      %v1524 = vrot.slane %v1522, 5
      %v1525 = vor.u32 %v1521, %v1524
      %v1526 = vrot.slane %v1525, 4
      %v1528 = vshll.u32 %v1455, 16
      %v1530 = vrot.slane %v1528, 5
      %v1531 = vsel %vm1019, %v1526, %v1530
      %v1533 = vshrl.u32 %v1456, 16
      %v1535 = vrot.slane %v1533, 4
      %v1536 = vshll.u32 %v1456, 16
      %v1538 = vrot.slane %v1536, 5
      %v1539 = vor.u32 %v1535, %v1538
      %v1540 = vrot.slane %v1539, 4
      %v1542 = vshll.u32 %v1457, 16
      %v1544 = vrot.slane %v1542, 5
      %v1545 = vsel %vm1019, %v1540, %v1544
      %v1547 = vshrl.u32 %v1458, 16
      %v1549 = vrot.slane %v1547, 4
      %v1550 = vshll.u32 %v1458, 16
      %v1552 = vrot.slane %v1550, 5
      %v1553 = vor.u32 %v1549, %v1552
      %v1554 = vrot.slane %v1553, 4
      %v1556 = vshll.u32 %v1459, 16
      %v1558 = vrot.slane %v1556, 5
      %v1559 = vsel %vm1019, %v1554, %v1558
      %v1561 = vshrl.u32 %v1460, 16
      %v1563 = vrot.slane %v1561, 4
      %v1564 = vshll.u32 %v1460, 16
      %v1566 = vrot.slane %v1564, 5
      %v1567 = vor.u32 %v1563, %v1566
      %v1568 = vrot.slane %v1567, 4
      %v1570 = vshll.u32 %v1461, 16
      %v1572 = vrot.slane %v1570, 5
      %v1573 = vsel %vm1019, %v1568, %v1572
      %s1574 = scalar_lea.vmem %s2, 12
      %v1575 = vld [vmem:[%s1574] sm:$0xf]
      %v1576 = vunpack.c.l.b16 %v1475
      %v1577 = vunpack.c.l.b16 %v1489
      %v1578 = vunpack.c.l.b16 %v1503
      %v1579 = vunpack.c.l.b16 %v1517
      %v1580 = vunpack.c.l.b16 %v1531
      %v1581 = vunpack.c.l.b16 %v1545
      %v1582 = vunpack.c.l.b16 %v1559
      %v1583 = vunpack.c.l.b16 %v1573
      %v1584 = vpack.c.b16 %v1577, %v1576
      %v1585 = vpack.c.b16 %v1579, %v1578
      %v1586 = vpack.c.b16 %v1581, %v1580
      %v1587 = vpack.c.b16 %v1583, %v1582
      %v1589 = vsel %vm1146, %v1584, 0
      %v1592 = vsel %vm1146, %v1585, 0
      %v1595 = vsel %vm1146, %v1586, 0
      %v1598 = vsel %vm1146, %v1587, 0
      %v1601 = vsel %vm1159, %v1575, 0
      %1603 = vmatprep.subr.bf16.mxu0 0
      %1604 = vmatpush1.bf16.msra.mxu0 0
      %1605 = vmatprep.subr.bf16.mxu0 0
      %1606 = vmatpush1.bf16.msra.mxu0 0
      %1607 = vmatprep.subr.bf16.mxu0 0
      %1608 = vmatpush1.bf16.msra.mxu0 0
      %1609 = vmatprep.subr.bf16.mxu0 0
      %1610 = vmatpush1.bf16.msra.mxu0 0
      %1611 = vmatprep.subr.bf16.mxu0 0
      %1612 = vmatpush1.bf16.msra.mxu0 0
      %1613 = vmatprep.subr.bf16.mxu0 0
      %1614 = vmatpush1.bf16.msra.mxu0 0
      %1615 = vmatprep.subr.bf16.mxu0 0
      %1616 = vmatpush1.bf16.msra.mxu0 0
      %1617 = vmatprep.subr.bf16.mxu0 0
      %1618 = vmatpush1.bf16.msra.mxu0 %v1601
      %1619 = vmatprep.subr.bf16.mxu0 0
      %1620 = vmatpush2.bf16.msra.mxu0 0
      %1621 = vmatprep.subr.bf16.mxu0 0
      %1622 = vmatpush2.bf16.msra.mxu0 0
      %1623 = vmatprep.subr.bf16.mxu0 0
      %1624 = vmatpush2.bf16.msra.mxu0 0
      %1625 = vmatprep.subr.bf16.mxu0 0
      %1626 = vmatpush2.bf16.msra.mxu0 0
      %1627 = vmatprep.subr.bf16.mxu0 0
      %1628 = vmatpush2.bf16.msra.mxu0 0
      %1629 = vmatprep.subr.bf16.mxu0 0
      %1630 = vmatpush2.bf16.msra.mxu0 0
      %1631 = vmatprep.subr.bf16.mxu0 0
      %1632 = vmatpush2.bf16.msra.mxu0 0
      %1633 = vmatprep.subr.bf16.mxu0 0
      %1634 = vmatpush2.bf16.msra.mxu0 0
      %1635 = vmatprep.mubr.bf16.mxu0 0
      %1636 = vmatmul.mubr.bf16.gmra.mxu0 %v1589
      %v1637 = vpop.f32.mrf.mxu0
      %v1638 = vadd.f32 0.0, %v1637
      %v1639 = vpop.f32.mrf.mxu0
      %v1640 = vpop.f32.mrf.mxu0
      %v1641 = vadd.f32 0.0, %v1640
      %v1642 = vpop.f32.mrf.mxu0
      %1643 = vmatprep.mubr.bf16.mxu0 0
      %1644 = vmatmul.mubr.bf16.gmra.mxu0 %v1592
      %v1645 = vpop.f32.mrf.mxu0
      %v1646 = vadd.f32 0.0, %v1645
      %v1647 = vpop.f32.mrf.mxu0
      %v1648 = vpop.f32.mrf.mxu0
      %v1649 = vadd.f32 0.0, %v1648
      %v1650 = vpop.f32.mrf.mxu0
      %1651 = vmatprep.mubr.bf16.mxu0 0
      %1652 = vmatmul.mubr.bf16.gmra.mxu0 %v1595
      %v1653 = vpop.f32.mrf.mxu0
      %v1654 = vadd.f32 0.0, %v1653
      %v1655 = vpop.f32.mrf.mxu0
      %v1656 = vpop.f32.mrf.mxu0
      %v1657 = vadd.f32 0.0, %v1656
      %v1658 = vpop.f32.mrf.mxu0
      %1659 = vmatprep.mubr.bf16.mxu0 0
      %1660 = vmatmul.mubr.bf16.gmra.mxu0 %v1598
      %v1661 = vpop.f32.mrf.mxu0
      %v1662 = vadd.f32 0.0, %v1661
      %v1663 = vpop.f32.mrf.mxu0
      %v1664 = vpop.f32.mrf.mxu0
      %v1665 = vadd.f32 0.0, %v1664
      %v1666 = vpop.f32.mrf.mxu0
      %1667 = vdwg.mxu0
      %v1668 = vadd.f32 %v1438, %v1638
      %v1669 = vadd.f32 %v1439, %v1641
      %v1670 = vadd.f32 %v1440, %v1646
      %v1671 = vadd.f32 %v1441, %v1649
      %v1672 = vadd.f32 %v1442, %v1654
      %v1673 = vadd.f32 %v1443, %v1657
      %v1674 = vadd.f32 %v1444, %v1662
      %v1675 = vadd.f32 %v1445, %v1665
      %v1676 = vpack.c.bf16 %v1669, %v1668
      %v1677 = vpack.c.bf16 %v1671, %v1670
      %v1678 = vpack.c.bf16 %v1673, %v1672
      %v1679 = vpack.c.bf16 %v1675, %v1674
      %v1684 = vunpack.c.l.b16 %v1676
      %v1685 = vunpack.c.h.b16 %v1676
      %v1686 = vunpack.c.l.b16 %v1677
      %v1687 = vunpack.c.h.b16 %v1677
      %v1688 = vunpack.c.l.b16 %v1678
      %v1689 = vunpack.c.h.b16 %v1678
      %v1690 = vunpack.c.l.b16 %v1679
      %v1691 = vunpack.c.h.b16 %v1679
      %v1692 = vpack.c.b16 %v1684, %v1684
      %v1693 = vpack.c.b16 %v1685, %v1685
      %v1694 = vpack.c.b16 %v1686, %v1686
      %v1695 = vpack.c.b16 %v1687, %v1687
      %v1696 = vpack.c.b16 %v1688, %v1688
      %v1697 = vpack.c.b16 %v1689, %v1689
      %v1698 = vpack.c.b16 %v1690, %v1690
      %v1699 = vpack.c.b16 %v1691, %v1691
      %vm1708 = vcmask 27648
      %1709 = vst.msk [vmem:[%s204] sm:$0xf] %vm1708, %v1692
      %1710 = vst.msk [vmem:[%s204 + $0x4] sm:$0xf] %vm1708, %v1693
      %1711 = vst.msk [vmem:[%s204 + $0x8] sm:$0xf] %vm1708, %v1694
      %1712 = vst.msk [vmem:[%s204 + $0xc] sm:$0xf] %vm1708, %v1695
      %1713 = vst.msk [vmem:[%s204 + $0x10] sm:$0xf] %vm1708, %v1696
      %1714 = vst.msk [vmem:[%s204 + $0x14] sm:$0xf] %vm1708, %v1697
      %1715 = vst.msk [vmem:[%s204 + $0x18] sm:$0xf] %vm1708, %v1698
      %1716 = vst.msk [vmem:[%s204 + $0x1c] sm:$0xf] %vm1708, %v1699
      %vm1717 = vcmask 31744
      %v1718 = vsel %vm1717, %v1668, 0.0
      %v1719 = vsel %vm1717, %v1669, 0.0
      %v1720 = vadd.f32 %v1718, %v1719
      %v1721 = vsel %vm1717, %v1670, 0.0
      %v1722 = vadd.f32 %v1720, %v1721
      %v1723 = vsel %vm1717, %v1671, 0.0
      %v1724 = vadd.f32 %v1722, %v1723
      %v1725 = vsel %vm1717, %v1672, 0.0
      %v1726 = vadd.f32 %v1724, %v1725
      %v1727 = vsel %vm1717, %v1673, 0.0
      %v1728 = vadd.f32 %v1726, %v1727
      %v1729 = vsel %vm1717, %v1674, 0.0
      %v1730 = vadd.f32 %v1728, %v1729
      %v1731 = vsel %vm1717, %v1675, 0.0
      %v1732 = vadd.f32 %v1730, %v1731
      %v1733 = vrot.slane %v1732, 4
      %v1734 = vadd.f32 %v1732, %v1733
      %v1735 = vrot.slane %v1734, 2
      %v1736 = vadd.f32 %v1734, %v1735
      %v1737 = vrot.slane %v1736, 1
      %v1738 = vadd.f32 %v1736, %v1737
      %v1739 = vadd.f32 %v1738, 0.0
      %v1740 = vmul.f32 %v1668, %v1668
      %v1741 = vmul.f32 %v1669, %v1669
      %v1742 = vmul.f32 %v1670, %v1670
      %v1743 = vmul.f32 %v1671, %v1671
      %v1744 = vmul.f32 %v1672, %v1672
      %v1745 = vmul.f32 %v1673, %v1673
      %v1746 = vmul.f32 %v1674, %v1674
      %v1747 = vmul.f32 %v1675, %v1675
      %v1748 = vsel %vm1717, %v1740, 0.0
      %v1749 = vsel %vm1717, %v1741, 0.0
      %v1750 = vadd.f32 %v1748, %v1749
      %v1751 = vsel %vm1717, %v1742, 0.0
      %v1752 = vadd.f32 %v1750, %v1751
      %v1753 = vsel %vm1717, %v1743, 0.0
      %v1754 = vadd.f32 %v1752, %v1753
      %v1755 = vsel %vm1717, %v1744, 0.0
      %v1756 = vadd.f32 %v1754, %v1755
      %v1757 = vsel %vm1717, %v1745, 0.0
      %v1758 = vadd.f32 %v1756, %v1757
      %v1759 = vsel %vm1717, %v1746, 0.0
      %v1760 = vadd.f32 %v1758, %v1759
      %v1761 = vsel %vm1717, %v1747, 0.0
      %v1762 = vadd.f32 %v1760, %v1761
      %v1763 = vrot.slane %v1762, 4
      %v1764 = vadd.f32 %v1762, %v1763
      %v1765 = vrot.slane %v1764, 2
      %v1766 = vadd.f32 %v1764, %v1765
      %v1767 = vrot.slane %v1766, 1
      %v1768 = vadd.f32 %v1766, %v1767
      %v1769 = vadd.f32 %v1768, 0.0
      %v1770 = vld [vmem:[#allocation2] sm:$0xf]
      %v1771 = vld [vmem:[#allocation2 + $0x4] sm:$0x1]
      %v1772 = vld [vmem:[#allocation2 + $0x8] sm:$0xf]
      %v1773 = vld [vmem:[#allocation2 + $0xc] sm:$0x1]
      %v1774 = vld [vmem:[#allocation2 + $0x10] sm:$0xf]
      %v1775 = vld [vmem:[#allocation2 + $0x14] sm:$0x1]
      %v1776 = vld [vmem:[#allocation2 + $0x18] sm:$0xf]
      %v1777 = vld [vmem:[#allocation2 + $0x1c] sm:$0x1]
      %v1778 = vld [vmem:[#allocation2 + $0x20] sm:$0xf]
      %v1779 = vld [vmem:[#allocation2 + $0x24] sm:$0x1]
      %v1780 = vld [vmem:[#allocation2 + $0x28] sm:$0xf]
      %v1781 = vld [vmem:[#allocation2 + $0x2c] sm:$0x1]
      %v1782 = vld [vmem:[#allocation2 + $0x30] sm:$0xf]
      %v1783 = vld [vmem:[#allocation2 + $0x34] sm:$0x1]
      %v1784 = vld [vmem:[#allocation2 + $0x38] sm:$0xf]
      %v1785 = vld [vmem:[#allocation2 + $0x3c] sm:$0x1]
      %v1787 = vshrl.u32 %v1770, 16
      %v1789 = vrot.slane %v1787, 4
      %v1790 = vshll.u32 %v1770, 16
      %v1792 = vrot.slane %v1790, 5
      %v1793 = vor.u32 %v1789, %v1792
      %v1794 = vrot.slane %v1793, 4
      %v1796 = vshll.u32 %v1771, 16
      %v1798 = vrot.slane %v1796, 5
      %v1799 = vsel %vm1019, %v1794, %v1798
      %v1801 = vshrl.u32 %v1772, 16
      %v1803 = vrot.slane %v1801, 4
      %v1804 = vshll.u32 %v1772, 16
      %v1806 = vrot.slane %v1804, 5
      %v1807 = vor.u32 %v1803, %v1806
      %v1808 = vrot.slane %v1807, 4
      %v1810 = vshll.u32 %v1773, 16
      %v1812 = vrot.slane %v1810, 5
      %v1813 = vsel %vm1019, %v1808, %v1812
      %v1815 = vshrl.u32 %v1774, 16
      %v1817 = vrot.slane %v1815, 4
      %v1818 = vshll.u32 %v1774, 16
      %v1820 = vrot.slane %v1818, 5
      %v1821 = vor.u32 %v1817, %v1820
      %v1822 = vrot.slane %v1821, 4
      %v1824 = vshll.u32 %v1775, 16
      %v1826 = vrot.slane %v1824, 5
      %v1827 = vsel %vm1019, %v1822, %v1826
      %v1829 = vshrl.u32 %v1776, 16
      %v1831 = vrot.slane %v1829, 4
      %v1832 = vshll.u32 %v1776, 16
      %v1834 = vrot.slane %v1832, 5
      %v1835 = vor.u32 %v1831, %v1834
      %v1836 = vrot.slane %v1835, 4
      %v1838 = vshll.u32 %v1777, 16
      %v1840 = vrot.slane %v1838, 5
      %v1841 = vsel %vm1019, %v1836, %v1840
      %v1843 = vshrl.u32 %v1778, 16
      %v1845 = vrot.slane %v1843, 4
      %v1846 = vshll.u32 %v1778, 16
      %v1848 = vrot.slane %v1846, 5
      %v1849 = vor.u32 %v1845, %v1848
      %v1850 = vrot.slane %v1849, 4
      %v1852 = vshll.u32 %v1779, 16
      %v1854 = vrot.slane %v1852, 5
      %v1855 = vsel %vm1019, %v1850, %v1854
      %v1857 = vshrl.u32 %v1780, 16
      %v1859 = vrot.slane %v1857, 4
      %v1860 = vshll.u32 %v1780, 16
      %v1862 = vrot.slane %v1860, 5
      %v1863 = vor.u32 %v1859, %v1862
      %v1864 = vrot.slane %v1863, 4
      %v1866 = vshll.u32 %v1781, 16
      %v1868 = vrot.slane %v1866, 5
      %v1869 = vsel %vm1019, %v1864, %v1868
      %v1871 = vshrl.u32 %v1782, 16
      %v1873 = vrot.slane %v1871, 4
      %v1874 = vshll.u32 %v1782, 16
      %v1876 = vrot.slane %v1874, 5
      %v1877 = vor.u32 %v1873, %v1876
      %v1878 = vrot.slane %v1877, 4
      %v1880 = vshll.u32 %v1783, 16
      %v1882 = vrot.slane %v1880, 5
      %v1883 = vsel %vm1019, %v1878, %v1882
      %v1885 = vshrl.u32 %v1784, 16
      %v1887 = vrot.slane %v1885, 4
      %v1888 = vshll.u32 %v1784, 16
      %v1890 = vrot.slane %v1888, 5
      %v1891 = vor.u32 %v1887, %v1890
      %v1892 = vrot.slane %v1891, 4
      %v1894 = vshll.u32 %v1785, 16
      %v1896 = vrot.slane %v1894, 5
      %v1897 = vsel %vm1019, %v1892, %v1896
      %s1898 = scalar_lea.vmem %s2, 16
      %v1899 = vld [vmem:[%s1898] sm:$0xf]
      %v1900 = vld [vmem:[#allocation2] sm:$0xe]
      %v1901 = vld [vmem:[#allocation2 + $0x8] sm:$0xe]
      %v1902 = vld [vmem:[#allocation2 + $0x10] sm:$0xe]
      %v1903 = vld [vmem:[#allocation2 + $0x18] sm:$0xe]
      %v1904 = vld [vmem:[#allocation2 + $0x20] sm:$0xe]
      %v1905 = vld [vmem:[#allocation2 + $0x28] sm:$0xe]
      %v1906 = vld [vmem:[#allocation2 + $0x30] sm:$0xe]
      %v1907 = vld [vmem:[#allocation2 + $0x38] sm:$0xe]
      %vm1924 = vcmask 1042432
      %vm1925 = vcmask 1046532
      %vm1926 = vmor %vm1924, %vm1925
      %v1927 = vrot.slane %v1900, 5
      %v1928 = vrot.slane %v1927, 4
      %v1929 = vrot.slane %v1771, 5
      %v1930 = vsel %vm1926, %v1928, %v1929
      %v1931 = vrot.slane %v1901, 5
      %v1932 = vrot.slane %v1931, 4
      %v1933 = vrot.slane %v1773, 5
      %v1934 = vsel %vm1926, %v1932, %v1933
      %v1935 = vrot.slane %v1902, 5
      %v1936 = vrot.slane %v1935, 4
      %v1937 = vrot.slane %v1775, 5
      %v1938 = vsel %vm1926, %v1936, %v1937
      %v1939 = vrot.slane %v1903, 5
      %v1940 = vrot.slane %v1939, 4
      %v1941 = vrot.slane %v1777, 5
      %v1942 = vsel %vm1926, %v1940, %v1941
      %v1943 = vrot.slane %v1904, 5
      %v1944 = vrot.slane %v1943, 4
      %v1945 = vrot.slane %v1779, 5
      %v1946 = vsel %vm1926, %v1944, %v1945
      %v1947 = vrot.slane %v1905, 5
      %v1948 = vrot.slane %v1947, 4
      %v1949 = vrot.slane %v1781, 5
      %v1950 = vsel %vm1926, %v1948, %v1949
      %v1951 = vrot.slane %v1906, 5
      %v1952 = vrot.slane %v1951, 4
      %v1953 = vrot.slane %v1783, 5
      %v1954 = vsel %vm1926, %v1952, %v1953
      %v1955 = vrot.slane %v1907, 5
      %v1956 = vrot.slane %v1955, 4
      %v1957 = vrot.slane %v1785, 5
      %v1958 = vsel %vm1926, %v1956, %v1957
      %s1959 = scalar_lea.vmem %s2, 20
      %v1960 = vld [vmem:[%s1959] sm:$0xf]
      %v1961 = vunpack.c.l.b16 %v1930
      %v1962 = vunpack.c.l.b16 %v1934
      %v1963 = vunpack.c.l.b16 %v1938
      %v1964 = vunpack.c.l.b16 %v1942
      %v1965 = vunpack.c.l.b16 %v1946
      %v1966 = vunpack.c.l.b16 %v1950
      %v1967 = vunpack.c.l.b16 %v1954
      %v1968 = vunpack.c.l.b16 %v1958
      %v1969 = vpack.c.b16 %v1962, %v1961
      %v1970 = vpack.c.b16 %v1964, %v1963
      %v1971 = vpack.c.b16 %v1966, %v1965
      %v1972 = vpack.c.b16 %v1968, %v1967
      %v1974 = vsel %vm1146, %v1969, 0
      %v1977 = vsel %vm1146, %v1970, 0
      %v1980 = vsel %vm1146, %v1971, 0
      %v1983 = vsel %vm1146, %v1972, 0
      %v1986 = vsel %vm1159, %v1960, 0
      %1988 = vmatprep.subr.bf16.mxu0 0
      %1989 = vmatpush1.bf16.msra.mxu0 0
      %1990 = vmatprep.subr.bf16.mxu0 0
      %1991 = vmatpush1.bf16.msra.mxu0 0
      %1992 = vmatprep.subr.bf16.mxu0 0
      %1993 = vmatpush1.bf16.msra.mxu0 0
      %1994 = vmatprep.subr.bf16.mxu0 0
      %1995 = vmatpush1.bf16.msra.mxu0 0
      %1996 = vmatprep.subr.bf16.mxu0 0
      %1997 = vmatpush1.bf16.msra.mxu0 0
      %1998 = vmatprep.subr.bf16.mxu0 0
      %1999 = vmatpush1.bf16.msra.mxu0 0
      %2000 = vmatprep.subr.bf16.mxu0 0
      %2001 = vmatpush1.bf16.msra.mxu0 0
      %2002 = vmatprep.subr.bf16.mxu0 0
      %2003 = vmatpush1.bf16.msra.mxu0 %v1986
      %2004 = vmatprep.subr.bf16.mxu0 0
      %2005 = vmatpush2.bf16.msra.mxu0 0
      %2006 = vmatprep.subr.bf16.mxu0 0
      %2007 = vmatpush2.bf16.msra.mxu0 0
      %2008 = vmatprep.subr.bf16.mxu0 0
      %2009 = vmatpush2.bf16.msra.mxu0 0
      %2010 = vmatprep.subr.bf16.mxu0 0
      %2011 = vmatpush2.bf16.msra.mxu0 0
      %2012 = vmatprep.subr.bf16.mxu0 0
      %2013 = vmatpush2.bf16.msra.mxu0 0
      %2014 = vmatprep.subr.bf16.mxu0 0
      %2015 = vmatpush2.bf16.msra.mxu0 0
      %2016 = vmatprep.subr.bf16.mxu0 0
      %2017 = vmatpush2.bf16.msra.mxu0 0
      %2018 = vmatprep.subr.bf16.mxu0 0
      %2019 = vmatpush2.bf16.msra.mxu0 0
      %2020 = vmatprep.mubr.bf16.mxu0 0
      %2021 = vmatmul.mubr.bf16.gmra.mxu0 %v1974
      %v2022 = vpop.f32.mrf.mxu0
      %v2023 = vadd.f32 0.0, %v2022
      %v2024 = vpop.f32.mrf.mxu0
      %v2025 = vpop.f32.mrf.mxu0
      %v2026 = vadd.f32 0.0, %v2025
      %v2027 = vpop.f32.mrf.mxu0
      %2028 = vmatprep.mubr.bf16.mxu0 0
      %2029 = vmatmul.mubr.bf16.gmra.mxu0 %v1977
      %v2030 = vpop.f32.mrf.mxu0
      %v2031 = vadd.f32 0.0, %v2030
      %v2032 = vpop.f32.mrf.mxu0
      %v2033 = vpop.f32.mrf.mxu0
      %v2034 = vadd.f32 0.0, %v2033
      %v2035 = vpop.f32.mrf.mxu0
      %2036 = vmatprep.mubr.bf16.mxu0 0
      %2037 = vmatmul.mubr.bf16.gmra.mxu0 %v1980
      %v2038 = vpop.f32.mrf.mxu0
      %v2039 = vadd.f32 0.0, %v2038
      %v2040 = vpop.f32.mrf.mxu0
      %v2041 = vpop.f32.mrf.mxu0
      %v2042 = vadd.f32 0.0, %v2041
      %v2043 = vpop.f32.mrf.mxu0
      %2044 = vmatprep.mubr.bf16.mxu0 0
      %2045 = vmatmul.mubr.bf16.gmra.mxu0 %v1983
      %v2046 = vpop.f32.mrf.mxu0
      %v2047 = vadd.f32 0.0, %v2046
      %v2048 = vpop.f32.mrf.mxu0
      %v2049 = vpop.f32.mrf.mxu0
      %v2050 = vadd.f32 0.0, %v2049
      %v2051 = vpop.f32.mrf.mxu0
      %2052 = vdwg.mxu0
      %v2053 = vunpack.c.l.b16 %v1799
      %v2054 = vunpack.c.l.b16 %v1813
      %v2055 = vunpack.c.l.b16 %v1827
      %v2056 = vunpack.c.l.b16 %v1841
      %v2057 = vunpack.c.l.b16 %v1855
      %v2058 = vunpack.c.l.b16 %v1869
      %v2059 = vunpack.c.l.b16 %v1883
      %v2060 = vunpack.c.l.b16 %v1897
      %v2061 = vpack.c.b16 %v2054, %v2053
      %v2062 = vpack.c.b16 %v2056, %v2055
      %v2063 = vpack.c.b16 %v2058, %v2057
      %v2064 = vpack.c.b16 %v2060, %v2059
      %v2066 = vsel %vm1146, %v2061, 0
      %v2069 = vsel %vm1146, %v2062, 0
      %v2072 = vsel %vm1146, %v2063, 0
      %v2075 = vsel %vm1146, %v2064, 0
      %v2078 = vsel %vm1159, %v1899, 0
      %2080 = vmatprep.subr.bf16.mxu0 0
      %2081 = vmatpush1.bf16.msra.mxu0 0
      %2082 = vmatprep.subr.bf16.mxu0 0
      %2083 = vmatpush1.bf16.msra.mxu0 0
      %2084 = vmatprep.subr.bf16.mxu0 0
      %2085 = vmatpush1.bf16.msra.mxu0 0
      %2086 = vmatprep.subr.bf16.mxu0 0
      %2087 = vmatpush1.bf16.msra.mxu0 0
      %2088 = vmatprep.subr.bf16.mxu0 0
      %2089 = vmatpush1.bf16.msra.mxu0 0
      %2090 = vmatprep.subr.bf16.mxu0 0
      %2091 = vmatpush1.bf16.msra.mxu0 0
      %2092 = vmatprep.subr.bf16.mxu0 0
      %2093 = vmatpush1.bf16.msra.mxu0 0
      %2094 = vmatprep.subr.bf16.mxu0 0
      %2095 = vmatpush1.bf16.msra.mxu0 %v2078
      %2096 = vmatprep.subr.bf16.mxu0 0
      %2097 = vmatpush2.bf16.msra.mxu0 0
      %2098 = vmatprep.subr.bf16.mxu0 0
      %2099 = vmatpush2.bf16.msra.mxu0 0
      %2100 = vmatprep.subr.bf16.mxu0 0
      %2101 = vmatpush2.bf16.msra.mxu0 0
      %2102 = vmatprep.subr.bf16.mxu0 0
      %2103 = vmatpush2.bf16.msra.mxu0 0
      %2104 = vmatprep.subr.bf16.mxu0 0
      %2105 = vmatpush2.bf16.msra.mxu0 0
      %2106 = vmatprep.subr.bf16.mxu0 0
      %2107 = vmatpush2.bf16.msra.mxu0 0
      %2108 = vmatprep.subr.bf16.mxu0 0
      %2109 = vmatpush2.bf16.msra.mxu0 0
      %2110 = vmatprep.subr.bf16.mxu0 0
      %2111 = vmatpush2.bf16.msra.mxu0 0
      %2112 = vmatprep.mubr.bf16.mxu0 0
      %2113 = vmatmul.mubr.bf16.gmra.mxu0 %v2066
      %v2114 = vpop.f32.mrf.mxu0
      %v2115 = vadd.f32 %v2023, %v2114
      %v2116 = vpop.f32.mrf.mxu0
      %v2117 = vpop.f32.mrf.mxu0
      %v2118 = vadd.f32 %v2026, %v2117
      %v2119 = vpop.f32.mrf.mxu0
      %2120 = vmatprep.mubr.bf16.mxu0 0
      %2121 = vmatmul.mubr.bf16.gmra.mxu0 %v2069
      %v2122 = vpop.f32.mrf.mxu0
      %v2123 = vadd.f32 %v2031, %v2122
      %v2124 = vpop.f32.mrf.mxu0
      %v2125 = vpop.f32.mrf.mxu0
      %v2126 = vadd.f32 %v2034, %v2125
      %v2127 = vpop.f32.mrf.mxu0
      %2128 = vmatprep.mubr.bf16.mxu0 0
      %2129 = vmatmul.mubr.bf16.gmra.mxu0 %v2072
      %v2130 = vpop.f32.mrf.mxu0
      %v2131 = vadd.f32 %v2039, %v2130
      %v2132 = vpop.f32.mrf.mxu0
      %v2133 = vpop.f32.mrf.mxu0
      %v2134 = vadd.f32 %v2042, %v2133
      %v2135 = vpop.f32.mrf.mxu0
      %2136 = vmatprep.mubr.bf16.mxu0 0
      %2137 = vmatmul.mubr.bf16.gmra.mxu0 %v2075
      %v2138 = vpop.f32.mrf.mxu0
      %v2139 = vadd.f32 %v2047, %v2138
      %v2140 = vpop.f32.mrf.mxu0
      %v2141 = vpop.f32.mrf.mxu0
      %v2142 = vadd.f32 %v2050, %v2141
      %v2143 = vpop.f32.mrf.mxu0
      %2144 = vdwg.mxu0
      %v2145 = vld [vmem:[%s945] sm:$0xf]
      %v2146 = vld [vmem:[%s945 + $0x4] sm:$0x1]
      %v2147 = vld [vmem:[%s945 + $0x8] sm:$0xf]
      %v2148 = vld [vmem:[%s945 + $0xc] sm:$0x1]
      %v2149 = vld [vmem:[%s945 + $0x10] sm:$0xf]
      %v2150 = vld [vmem:[%s945 + $0x14] sm:$0x1]
      %v2151 = vld [vmem:[%s945 + $0x18] sm:$0xf]
      %v2152 = vld [vmem:[%s945 + $0x1c] sm:$0x1]
      %v2153 = vld [vmem:[%s945 + $0x20] sm:$0xf]
      %v2154 = vld [vmem:[%s945 + $0x24] sm:$0x1]
      %v2155 = vld [vmem:[%s945 + $0x28] sm:$0xf]
      %v2156 = vld [vmem:[%s945 + $0x2c] sm:$0x1]
      %v2157 = vld [vmem:[%s945 + $0x30] sm:$0xf]
      %v2158 = vld [vmem:[%s945 + $0x34] sm:$0x1]
      %v2159 = vld [vmem:[%s945 + $0x38] sm:$0xf]
      %v2160 = vld [vmem:[%s945 + $0x3c] sm:$0x1]
      %v2162 = vshrl.u32 %v2145, 16
      %v2164 = vrot.slane %v2162, 4
      %v2165 = vshll.u32 %v2145, 16
      %v2167 = vrot.slane %v2165, 5
      %v2168 = vor.u32 %v2164, %v2167
      %v2169 = vrot.slane %v2168, 4
      %v2171 = vshll.u32 %v2146, 16
      %v2173 = vrot.slane %v2171, 5
      %v2174 = vsel %vm1019, %v2169, %v2173
      %v2176 = vshrl.u32 %v2147, 16
      %v2178 = vrot.slane %v2176, 4
      %v2179 = vshll.u32 %v2147, 16
      %v2181 = vrot.slane %v2179, 5
      %v2182 = vor.u32 %v2178, %v2181
      %v2183 = vrot.slane %v2182, 4
      %v2185 = vshll.u32 %v2148, 16
      %v2187 = vrot.slane %v2185, 5
      %v2188 = vsel %vm1019, %v2183, %v2187
      %v2190 = vshrl.u32 %v2149, 16
      %v2192 = vrot.slane %v2190, 4
      %v2193 = vshll.u32 %v2149, 16
      %v2195 = vrot.slane %v2193, 5
      %v2196 = vor.u32 %v2192, %v2195
      %v2197 = vrot.slane %v2196, 4
      %v2199 = vshll.u32 %v2150, 16
      %v2201 = vrot.slane %v2199, 5
      %v2202 = vsel %vm1019, %v2197, %v2201
      %v2204 = vshrl.u32 %v2151, 16
      %v2206 = vrot.slane %v2204, 4
      %v2207 = vshll.u32 %v2151, 16
      %v2209 = vrot.slane %v2207, 5
      %v2210 = vor.u32 %v2206, %v2209
      %v2211 = vrot.slane %v2210, 4
      %v2213 = vshll.u32 %v2152, 16
      %v2215 = vrot.slane %v2213, 5
      %v2216 = vsel %vm1019, %v2211, %v2215
      %v2218 = vshrl.u32 %v2153, 16
      %v2220 = vrot.slane %v2218, 4
      %v2221 = vshll.u32 %v2153, 16
      %v2223 = vrot.slane %v2221, 5
      %v2224 = vor.u32 %v2220, %v2223
      %v2225 = vrot.slane %v2224, 4
      %v2227 = vshll.u32 %v2154, 16
      %v2229 = vrot.slane %v2227, 5
      %v2230 = vsel %vm1019, %v2225, %v2229
      %v2232 = vshrl.u32 %v2155, 16
      %v2234 = vrot.slane %v2232, 4
      %v2235 = vshll.u32 %v2155, 16
      %v2237 = vrot.slane %v2235, 5
      %v2238 = vor.u32 %v2234, %v2237
      %v2239 = vrot.slane %v2238, 4
      %v2241 = vshll.u32 %v2156, 16
      %v2243 = vrot.slane %v2241, 5
      %v2244 = vsel %vm1019, %v2239, %v2243
      %v2246 = vshrl.u32 %v2157, 16
      %v2248 = vrot.slane %v2246, 4
      %v2249 = vshll.u32 %v2157, 16
      %v2251 = vrot.slane %v2249, 5
      %v2252 = vor.u32 %v2248, %v2251
      %v2253 = vrot.slane %v2252, 4
      %v2255 = vshll.u32 %v2158, 16
      %v2257 = vrot.slane %v2255, 5
      %v2258 = vsel %vm1019, %v2253, %v2257
      %v2260 = vshrl.u32 %v2159, 16
      %v2262 = vrot.slane %v2260, 4
      %v2263 = vshll.u32 %v2159, 16
      %v2265 = vrot.slane %v2263, 5
      %v2266 = vor.u32 %v2262, %v2265
      %v2267 = vrot.slane %v2266, 4
      %v2269 = vshll.u32 %v2160, 16
      %v2271 = vrot.slane %v2269, 5
      %v2272 = vsel %vm1019, %v2267, %v2271
      %s2273 = scalar_lea.vmem %s2, 24
      %v2274 = vld [vmem:[%s2273] sm:$0xf]
      %v2275 = vunpack.c.l.b16 %v2174
      %v2276 = vunpack.c.l.b16 %v2188
      %v2277 = vunpack.c.l.b16 %v2202
      %v2278 = vunpack.c.l.b16 %v2216
      %v2279 = vunpack.c.l.b16 %v2230
      %v2280 = vunpack.c.l.b16 %v2244
      %v2281 = vunpack.c.l.b16 %v2258
      %v2282 = vunpack.c.l.b16 %v2272
      %v2283 = vpack.c.b16 %v2276, %v2275
      %v2284 = vpack.c.b16 %v2278, %v2277
      %v2285 = vpack.c.b16 %v2280, %v2279
      %v2286 = vpack.c.b16 %v2282, %v2281
      %v2288 = vsel %vm1146, %v2283, 0
      %v2291 = vsel %vm1146, %v2284, 0
      %v2294 = vsel %vm1146, %v2285, 0
      %v2297 = vsel %vm1146, %v2286, 0
      %v2300 = vsel %vm1159, %v2274, 0
      %2302 = vmatprep.subr.bf16.mxu0 0
      %2303 = vmatpush1.bf16.msra.mxu0 0
      %2304 = vmatprep.subr.bf16.mxu0 0
      %2305 = vmatpush1.bf16.msra.mxu0 0
      %2306 = vmatprep.subr.bf16.mxu0 0
      %2307 = vmatpush1.bf16.msra.mxu0 0
      %2308 = vmatprep.subr.bf16.mxu0 0
      %2309 = vmatpush1.bf16.msra.mxu0 0
      %2310 = vmatprep.subr.bf16.mxu0 0
      %2311 = vmatpush1.bf16.msra.mxu0 0
      %2312 = vmatprep.subr.bf16.mxu0 0
      %2313 = vmatpush1.bf16.msra.mxu0 0
      %2314 = vmatprep.subr.bf16.mxu0 0
      %2315 = vmatpush1.bf16.msra.mxu0 0
      %2316 = vmatprep.subr.bf16.mxu0 0
      %2317 = vmatpush1.bf16.msra.mxu0 %v2300
      %2318 = vmatprep.subr.bf16.mxu0 0
      %2319 = vmatpush2.bf16.msra.mxu0 0
      %2320 = vmatprep.subr.bf16.mxu0 0
      %2321 = vmatpush2.bf16.msra.mxu0 0
      %2322 = vmatprep.subr.bf16.mxu0 0
      %2323 = vmatpush2.bf16.msra.mxu0 0
      %2324 = vmatprep.subr.bf16.mxu0 0
      %2325 = vmatpush2.bf16.msra.mxu0 0
      %2326 = vmatprep.subr.bf16.mxu0 0
      %2327 = vmatpush2.bf16.msra.mxu0 0
      %2328 = vmatprep.subr.bf16.mxu0 0
      %2329 = vmatpush2.bf16.msra.mxu0 0
      %2330 = vmatprep.subr.bf16.mxu0 0
      %2331 = vmatpush2.bf16.msra.mxu0 0
      %2332 = vmatprep.subr.bf16.mxu0 0
      %2333 = vmatpush2.bf16.msra.mxu0 0
      %2334 = vmatprep.mubr.bf16.mxu0 0
      %2335 = vmatmul.mubr.bf16.gmra.mxu0 %v2288
      %v2336 = vpop.f32.mrf.mxu0
      %v2337 = vadd.f32 0.0, %v2336
      %v2338 = vpop.f32.mrf.mxu0
      %v2339 = vpop.f32.mrf.mxu0
      %v2340 = vadd.f32 0.0, %v2339
      %v2341 = vpop.f32.mrf.mxu0
      %2342 = vmatprep.mubr.bf16.mxu0 0
      %2343 = vmatmul.mubr.bf16.gmra.mxu0 %v2291
      %v2344 = vpop.f32.mrf.mxu0
      %v2345 = vadd.f32 0.0, %v2344
      %v2346 = vpop.f32.mrf.mxu0
      %v2347 = vpop.f32.mrf.mxu0
      %v2348 = vadd.f32 0.0, %v2347
      %v2349 = vpop.f32.mrf.mxu0
      %2350 = vmatprep.mubr.bf16.mxu0 0
      %2351 = vmatmul.mubr.bf16.gmra.mxu0 %v2294
      %v2352 = vpop.f32.mrf.mxu0
      %v2353 = vadd.f32 0.0, %v2352
      %v2354 = vpop.f32.mrf.mxu0
      %v2355 = vpop.f32.mrf.mxu0
      %v2356 = vadd.f32 0.0, %v2355
      %v2357 = vpop.f32.mrf.mxu0
      %2358 = vmatprep.mubr.bf16.mxu0 0
      %2359 = vmatmul.mubr.bf16.gmra.mxu0 %v2297
      %v2360 = vpop.f32.mrf.mxu0
      %v2361 = vadd.f32 0.0, %v2360
      %v2362 = vpop.f32.mrf.mxu0
      %v2363 = vpop.f32.mrf.mxu0
      %v2364 = vadd.f32 0.0, %v2363
      %v2365 = vpop.f32.mrf.mxu0
      %2366 = vdwg.mxu0
      %v2367 = vadd.f32 %v2115, %v2337
      %v2368 = vadd.f32 %v2118, %v2340
      %v2369 = vadd.f32 %v2123, %v2345
      %v2370 = vadd.f32 %v2126, %v2348
      %v2371 = vadd.f32 %v2131, %v2353
      %v2372 = vadd.f32 %v2134, %v2356
      %v2373 = vadd.f32 %v2139, %v2361
      %v2374 = vadd.f32 %v2142, %v2364
      %v2375 = vld [vmem:[%s945] sm:$0xe]
      %v2376 = vld [vmem:[%s945 + $0x8] sm:$0xe]
      %v2377 = vld [vmem:[%s945 + $0x10] sm:$0xe]
      %v2378 = vld [vmem:[%s945 + $0x18] sm:$0xe]
      %v2379 = vld [vmem:[%s945 + $0x20] sm:$0xe]
      %v2380 = vld [vmem:[%s945 + $0x28] sm:$0xe]
      %v2381 = vld [vmem:[%s945 + $0x30] sm:$0xe]
      %v2382 = vld [vmem:[%s945 + $0x38] sm:$0xe]
      %v2399 = vrot.slane %v2375, 5
      %v2400 = vrot.slane %v2399, 4
      %v2401 = vrot.slane %v2146, 5
      %v2402 = vsel %vm1926, %v2400, %v2401
      %v2403 = vrot.slane %v2376, 5
      %v2404 = vrot.slane %v2403, 4
      %v2405 = vrot.slane %v2148, 5
      %v2406 = vsel %vm1926, %v2404, %v2405
      %v2407 = vrot.slane %v2377, 5
      %v2408 = vrot.slane %v2407, 4
      %v2409 = vrot.slane %v2150, 5
      %v2410 = vsel %vm1926, %v2408, %v2409
      %v2411 = vrot.slane %v2378, 5
      %v2412 = vrot.slane %v2411, 4
      %v2413 = vrot.slane %v2152, 5
      %v2414 = vsel %vm1926, %v2412, %v2413
      %v2415 = vrot.slane %v2379, 5
      %v2416 = vrot.slane %v2415, 4
      %v2417 = vrot.slane %v2154, 5
      %v2418 = vsel %vm1926, %v2416, %v2417
      %v2419 = vrot.slane %v2380, 5
      %v2420 = vrot.slane %v2419, 4
      %v2421 = vrot.slane %v2156, 5
      %v2422 = vsel %vm1926, %v2420, %v2421
      %v2423 = vrot.slane %v2381, 5
      %v2424 = vrot.slane %v2423, 4
      %v2425 = vrot.slane %v2158, 5
      %v2426 = vsel %vm1926, %v2424, %v2425
      %v2427 = vrot.slane %v2382, 5
      %v2428 = vrot.slane %v2427, 4
      %v2429 = vrot.slane %v2160, 5
      %v2430 = vsel %vm1926, %v2428, %v2429
      %s2431 = scalar_lea.vmem %s2, 28
      %v2432 = vld [vmem:[%s2431] sm:$0xf]
      %v2433 = vunpack.c.l.b16 %v2402
      %v2434 = vunpack.c.l.b16 %v2406
      %v2435 = vunpack.c.l.b16 %v2410
      %v2436 = vunpack.c.l.b16 %v2414
      %v2437 = vunpack.c.l.b16 %v2418
      %v2438 = vunpack.c.l.b16 %v2422
      %v2439 = vunpack.c.l.b16 %v2426
      %v2440 = vunpack.c.l.b16 %v2430
      %v2441 = vpack.c.b16 %v2434, %v2433
      %v2442 = vpack.c.b16 %v2436, %v2435
      %v2443 = vpack.c.b16 %v2438, %v2437
      %v2444 = vpack.c.b16 %v2440, %v2439
      %v2446 = vsel %vm1146, %v2441, 0
      %v2449 = vsel %vm1146, %v2442, 0
      %v2452 = vsel %vm1146, %v2443, 0
      %v2455 = vsel %vm1146, %v2444, 0
      %v2458 = vsel %vm1159, %v2432, 0
      %2460 = vmatprep.subr.bf16.mxu0 0
      %2461 = vmatpush1.bf16.msra.mxu0 0
      %2462 = vmatprep.subr.bf16.mxu0 0
      %2463 = vmatpush1.bf16.msra.mxu0 0
      %2464 = vmatprep.subr.bf16.mxu0 0
      %2465 = vmatpush1.bf16.msra.mxu0 0
      %2466 = vmatprep.subr.bf16.mxu0 0
      %2467 = vmatpush1.bf16.msra.mxu0 0
      %2468 = vmatprep.subr.bf16.mxu0 0
      %2469 = vmatpush1.bf16.msra.mxu0 0
      %2470 = vmatprep.subr.bf16.mxu0 0
      %2471 = vmatpush1.bf16.msra.mxu0 0
      %2472 = vmatprep.subr.bf16.mxu0 0
      %2473 = vmatpush1.bf16.msra.mxu0 0
      %2474 = vmatprep.subr.bf16.mxu0 0
      %2475 = vmatpush1.bf16.msra.mxu0 %v2458
      %2476 = vmatprep.subr.bf16.mxu0 0
      %2477 = vmatpush2.bf16.msra.mxu0 0
      %2478 = vmatprep.subr.bf16.mxu0 0
      %2479 = vmatpush2.bf16.msra.mxu0 0
      %2480 = vmatprep.subr.bf16.mxu0 0
      %2481 = vmatpush2.bf16.msra.mxu0 0
      %2482 = vmatprep.subr.bf16.mxu0 0
      %2483 = vmatpush2.bf16.msra.mxu0 0
      %2484 = vmatprep.subr.bf16.mxu0 0
      %2485 = vmatpush2.bf16.msra.mxu0 0
      %2486 = vmatprep.subr.bf16.mxu0 0
      %2487 = vmatpush2.bf16.msra.mxu0 0
      %2488 = vmatprep.subr.bf16.mxu0 0
      %2489 = vmatpush2.bf16.msra.mxu0 0
      %2490 = vmatprep.subr.bf16.mxu0 0
      %2491 = vmatpush2.bf16.msra.mxu0 0
      %2492 = vmatprep.mubr.bf16.mxu0 0
      %2493 = vmatmul.mubr.bf16.gmra.mxu0 %v2446
      %v2494 = vpop.f32.mrf.mxu0
      %v2495 = vadd.f32 0.0, %v2494
      %v2496 = vpop.f32.mrf.mxu0
      %v2497 = vpop.f32.mrf.mxu0
      %v2498 = vadd.f32 0.0, %v2497
      %v2499 = vpop.f32.mrf.mxu0
      %2500 = vmatprep.mubr.bf16.mxu0 0
      %2501 = vmatmul.mubr.bf16.gmra.mxu0 %v2449
      %v2502 = vpop.f32.mrf.mxu0
      %v2503 = vadd.f32 0.0, %v2502
      %v2504 = vpop.f32.mrf.mxu0
      %v2505 = vpop.f32.mrf.mxu0
      %v2506 = vadd.f32 0.0, %v2505
      %v2507 = vpop.f32.mrf.mxu0
      %2508 = vmatprep.mubr.bf16.mxu0 0
      %2509 = vmatmul.mubr.bf16.gmra.mxu0 %v2452
      %v2510 = vpop.f32.mrf.mxu0
      %v2511 = vadd.f32 0.0, %v2510
      %v2512 = vpop.f32.mrf.mxu0
      %v2513 = vpop.f32.mrf.mxu0
      %v2514 = vadd.f32 0.0, %v2513
      %v2515 = vpop.f32.mrf.mxu0
      %2516 = vmatprep.mubr.bf16.mxu0 0
      %2517 = vmatmul.mubr.bf16.gmra.mxu0 %v2455
      %v2518 = vpop.f32.mrf.mxu0
      %v2519 = vadd.f32 0.0, %v2518
      %v2520 = vpop.f32.mrf.mxu0
      %v2521 = vpop.f32.mrf.mxu0
      %v2522 = vadd.f32 0.0, %v2521
      %v2523 = vpop.f32.mrf.mxu0
      %2524 = vdwg.mxu0
      %v2525 = vadd.f32 %v2367, %v2495
      %v2526 = vadd.f32 %v2368, %v2498
      %v2527 = vadd.f32 %v2369, %v2503
      %v2528 = vadd.f32 %v2370, %v2506
      %v2529 = vadd.f32 %v2371, %v2511
      %v2530 = vadd.f32 %v2372, %v2514
      %v2531 = vadd.f32 %v2373, %v2519
      %v2532 = vadd.f32 %v2374, %v2522
      %v2533 = vpack.c.bf16 %v2526, %v2525
      %v2534 = vpack.c.bf16 %v2528, %v2527
      %v2535 = vpack.c.bf16 %v2530, %v2529
      %v2536 = vpack.c.bf16 %v2532, %v2531
      %v2541 = vunpack.c.l.b16 %v2533
      %v2542 = vunpack.c.h.b16 %v2533
      %v2543 = vunpack.c.l.b16 %v2534
      %v2544 = vunpack.c.h.b16 %v2534
      %v2545 = vunpack.c.l.b16 %v2535
      %v2546 = vunpack.c.h.b16 %v2535
      %v2547 = vunpack.c.l.b16 %v2536
      %v2548 = vunpack.c.h.b16 %v2536
      %v2549 = vpack.c.b16 %v2541, %v2541
      %v2550 = vpack.c.b16 %v2542, %v2542
      %v2551 = vpack.c.b16 %v2543, %v2543
      %v2552 = vpack.c.b16 %v2544, %v2544
      %v2553 = vpack.c.b16 %v2545, %v2545
      %v2554 = vpack.c.b16 %v2546, %v2546
      %v2555 = vpack.c.b16 %v2547, %v2547
      %v2556 = vpack.c.b16 %v2548, %v2548
      %s2565 = scalar_lea.vmem %s204, 32
      %2566 = vst.msk [vmem:[%s2565] sm:$0xf] %vm1708, %v2549
      %2567 = vst.msk [vmem:[%s2565 + $0x4] sm:$0xf] %vm1708, %v2550
      %2568 = vst.msk [vmem:[%s2565 + $0x8] sm:$0xf] %vm1708, %v2551
      %2569 = vst.msk [vmem:[%s2565 + $0xc] sm:$0xf] %vm1708, %v2552
      %2570 = vst.msk [vmem:[%s2565 + $0x10] sm:$0xf] %vm1708, %v2553
      %2571 = vst.msk [vmem:[%s2565 + $0x14] sm:$0xf] %vm1708, %v2554
      %2572 = vst.msk [vmem:[%s2565 + $0x18] sm:$0xf] %vm1708, %v2555
      %2573 = vst.msk [vmem:[%s2565 + $0x1c] sm:$0xf] %vm1708, %v2556
      %v2574 = vsel %vm1717, %v2525, 0.0
      %v2575 = vsel %vm1717, %v2526, 0.0
      %v2576 = vadd.f32 %v2574, %v2575
      %v2577 = vsel %vm1717, %v2527, 0.0
      %v2578 = vadd.f32 %v2576, %v2577
      %v2579 = vsel %vm1717, %v2528, 0.0
      %v2580 = vadd.f32 %v2578, %v2579
      %v2581 = vsel %vm1717, %v2529, 0.0
      %v2582 = vadd.f32 %v2580, %v2581
      %v2583 = vsel %vm1717, %v2530, 0.0
      %v2584 = vadd.f32 %v2582, %v2583
      %v2585 = vsel %vm1717, %v2531, 0.0
      %v2586 = vadd.f32 %v2584, %v2585
      %v2587 = vsel %vm1717, %v2532, 0.0
      %v2588 = vadd.f32 %v2586, %v2587
      %v2589 = vrot.slane %v2588, 4
      %v2590 = vadd.f32 %v2588, %v2589
      %v2591 = vrot.slane %v2590, 2
      %v2592 = vadd.f32 %v2590, %v2591
      %v2593 = vrot.slane %v2592, 1
      %v2594 = vadd.f32 %v2592, %v2593
      %v2595 = vadd.f32 %v1739, %v2594
      %v2596 = vmul.f32 %v2525, %v2525
      %v2597 = vmul.f32 %v2526, %v2526
      %v2598 = vmul.f32 %v2527, %v2527
      %v2599 = vmul.f32 %v2528, %v2528
      %v2600 = vmul.f32 %v2529, %v2529
      %v2601 = vmul.f32 %v2530, %v2530
      %v2602 = vmul.f32 %v2531, %v2531
      %v2603 = vmul.f32 %v2532, %v2532
      %v2604 = vsel %vm1717, %v2596, 0.0
      %v2605 = vsel %vm1717, %v2597, 0.0
      %v2606 = vadd.f32 %v2604, %v2605
      %v2607 = vsel %vm1717, %v2598, 0.0
      %v2608 = vadd.f32 %v2606, %v2607
      %v2609 = vsel %vm1717, %v2599, 0.0
      %v2610 = vadd.f32 %v2608, %v2609
      %v2611 = vsel %vm1717, %v2600, 0.0
      %v2612 = vadd.f32 %v2610, %v2611
      %v2613 = vsel %vm1717, %v2601, 0.0
      %v2614 = vadd.f32 %v2612, %v2613
      %v2615 = vsel %vm1717, %v2602, 0.0
      %v2616 = vadd.f32 %v2614, %v2615
      %v2617 = vsel %vm1717, %v2603, 0.0
      %v2618 = vadd.f32 %v2616, %v2617
      %v2619 = vrot.slane %v2618, 4
      %v2620 = vadd.f32 %v2618, %v2619
      %v2621 = vrot.slane %v2620, 2
      %v2622 = vadd.f32 %v2620, %v2621
      %v2623 = vrot.slane %v2622, 1
      %v2624 = vadd.f32 %v2622, %v2623
      %v2625 = vadd.f32 %v1769, %v2624
      %v2626 = vld [vmem:[%s945] sm:$0xf]
      %v2627 = vld [vmem:[%s945 + $0x8] sm:$0xf]
      %v2628 = vld [vmem:[%s945 + $0x10] sm:$0xf]
      %v2629 = vld [vmem:[%s945 + $0x18] sm:$0xf]
      %v2630 = vld [vmem:[%s945 + $0x20] sm:$0xf]
      %v2631 = vld [vmem:[%s945 + $0x28] sm:$0xf]
      %v2632 = vld [vmem:[%s945 + $0x30] sm:$0xf]
      %v2633 = vld [vmem:[%s945 + $0x38] sm:$0xf]
      %s2634 = scalar_lea.vmem %s2, 32
      %v2635 = vld [vmem:[%s2634] sm:$0xf]
      %v2636 = vld [vmem:[%s945 + $0x4] sm:$0x1]
      %v2637 = vld [vmem:[%s945 + $0xc] sm:$0x1]
      %v2638 = vld [vmem:[%s945 + $0x14] sm:$0x1]
      %v2639 = vld [vmem:[%s945 + $0x1c] sm:$0x1]
      %v2640 = vld [vmem:[%s945 + $0x24] sm:$0x1]
      %v2641 = vld [vmem:[%s945 + $0x2c] sm:$0x1]
      %v2642 = vld [vmem:[%s945 + $0x34] sm:$0x1]
      %v2643 = vld [vmem:[%s945 + $0x3c] sm:$0x1]
      %v2645 = vshrl.u32 %v2626, 16
      %v2647 = vrot.slane %v2645, 4
      %v2648 = vshll.u32 %v2626, 16
      %v2650 = vrot.slane %v2648, 5
      %v2651 = vor.u32 %v2647, %v2650
      %v2652 = vrot.slane %v2651, 4
      %v2654 = vshll.u32 %v2636, 16
      %v2656 = vrot.slane %v2654, 5
      %v2657 = vsel %vm1019, %v2652, %v2656
      %v2659 = vshrl.u32 %v2627, 16
      %v2661 = vrot.slane %v2659, 4
      %v2662 = vshll.u32 %v2627, 16
      %v2664 = vrot.slane %v2662, 5
      %v2665 = vor.u32 %v2661, %v2664
      %v2666 = vrot.slane %v2665, 4
      %v2668 = vshll.u32 %v2637, 16
      %v2670 = vrot.slane %v2668, 5
      %v2671 = vsel %vm1019, %v2666, %v2670
      %v2673 = vshrl.u32 %v2628, 16
      %v2675 = vrot.slane %v2673, 4
      %v2676 = vshll.u32 %v2628, 16
      %v2678 = vrot.slane %v2676, 5
      %v2679 = vor.u32 %v2675, %v2678
      %v2680 = vrot.slane %v2679, 4
      %v2682 = vshll.u32 %v2638, 16
      %v2684 = vrot.slane %v2682, 5
      %v2685 = vsel %vm1019, %v2680, %v2684
      %v2687 = vshrl.u32 %v2629, 16
      %v2689 = vrot.slane %v2687, 4
      %v2690 = vshll.u32 %v2629, 16
      %v2692 = vrot.slane %v2690, 5
      %v2693 = vor.u32 %v2689, %v2692
      %v2694 = vrot.slane %v2693, 4
      %v2696 = vshll.u32 %v2639, 16
      %v2698 = vrot.slane %v2696, 5
      %v2699 = vsel %vm1019, %v2694, %v2698
      %v2701 = vshrl.u32 %v2630, 16
      %v2703 = vrot.slane %v2701, 4
      %v2704 = vshll.u32 %v2630, 16
      %v2706 = vrot.slane %v2704, 5
      %v2707 = vor.u32 %v2703, %v2706
      %v2708 = vrot.slane %v2707, 4
      %v2710 = vshll.u32 %v2640, 16
      %v2712 = vrot.slane %v2710, 5
      %v2713 = vsel %vm1019, %v2708, %v2712
      %v2715 = vshrl.u32 %v2631, 16
      %v2717 = vrot.slane %v2715, 4
      %v2718 = vshll.u32 %v2631, 16
      %v2720 = vrot.slane %v2718, 5
      %v2721 = vor.u32 %v2717, %v2720
      %v2722 = vrot.slane %v2721, 4
      %v2724 = vshll.u32 %v2641, 16
      %v2726 = vrot.slane %v2724, 5
      %v2727 = vsel %vm1019, %v2722, %v2726
      %v2729 = vshrl.u32 %v2632, 16
      %v2731 = vrot.slane %v2729, 4
      %v2732 = vshll.u32 %v2632, 16
      %v2734 = vrot.slane %v2732, 5
      %v2735 = vor.u32 %v2731, %v2734
      %v2736 = vrot.slane %v2735, 4
      %v2738 = vshll.u32 %v2642, 16
      %v2740 = vrot.slane %v2738, 5
      %v2741 = vsel %vm1019, %v2736, %v2740
      %v2743 = vshrl.u32 %v2633, 16
      %v2745 = vrot.slane %v2743, 4
      %v2746 = vshll.u32 %v2633, 16
      %v2748 = vrot.slane %v2746, 5
      %v2749 = vor.u32 %v2745, %v2748
      %v2750 = vrot.slane %v2749, 4
      %v2752 = vshll.u32 %v2643, 16
      %v2754 = vrot.slane %v2752, 5
      %v2755 = vsel %vm1019, %v2750, %v2754
      %s2756 = scalar_lea.vmem %s2, 36
      %v2757 = vld [vmem:[%s2756] sm:$0xf]
      %v2758 = vunpack.c.l.b16 %v2657
      %v2759 = vunpack.c.l.b16 %v2671
      %v2760 = vunpack.c.l.b16 %v2685
      %v2761 = vunpack.c.l.b16 %v2699
      %v2762 = vunpack.c.l.b16 %v2713
      %v2763 = vunpack.c.l.b16 %v2727
      %v2764 = vunpack.c.l.b16 %v2741
      %v2765 = vunpack.c.l.b16 %v2755
      %v2766 = vpack.c.b16 %v2759, %v2758
      %v2767 = vpack.c.b16 %v2761, %v2760
      %v2768 = vpack.c.b16 %v2763, %v2762
      %v2769 = vpack.c.b16 %v2765, %v2764
      %v2771 = vsel %vm1146, %v2766, 0
      %v2774 = vsel %vm1146, %v2767, 0
      %v2777 = vsel %vm1146, %v2768, 0
      %v2780 = vsel %vm1146, %v2769, 0
      %v2783 = vsel %vm1159, %v2757, 0
      %2785 = vmatprep.subr.bf16.mxu0 0
      %2786 = vmatpush1.bf16.msra.mxu0 0
      %2787 = vmatprep.subr.bf16.mxu0 0
      %2788 = vmatpush1.bf16.msra.mxu0 0
      %2789 = vmatprep.subr.bf16.mxu0 0
      %2790 = vmatpush1.bf16.msra.mxu0 0
      %2791 = vmatprep.subr.bf16.mxu0 0
      %2792 = vmatpush1.bf16.msra.mxu0 0
      %2793 = vmatprep.subr.bf16.mxu0 0
      %2794 = vmatpush1.bf16.msra.mxu0 0
      %2795 = vmatprep.subr.bf16.mxu0 0
      %2796 = vmatpush1.bf16.msra.mxu0 0
      %2797 = vmatprep.subr.bf16.mxu0 0
      %2798 = vmatpush1.bf16.msra.mxu0 0
      %2799 = vmatprep.subr.bf16.mxu0 0
      %2800 = vmatpush1.bf16.msra.mxu0 %v2783
      %2801 = vmatprep.subr.bf16.mxu0 0
      %2802 = vmatpush2.bf16.msra.mxu0 0
      %2803 = vmatprep.subr.bf16.mxu0 0
      %2804 = vmatpush2.bf16.msra.mxu0 0
      %2805 = vmatprep.subr.bf16.mxu0 0
      %2806 = vmatpush2.bf16.msra.mxu0 0
      %2807 = vmatprep.subr.bf16.mxu0 0
      %2808 = vmatpush2.bf16.msra.mxu0 0
      %2809 = vmatprep.subr.bf16.mxu0 0
      %2810 = vmatpush2.bf16.msra.mxu0 0
      %2811 = vmatprep.subr.bf16.mxu0 0
      %2812 = vmatpush2.bf16.msra.mxu0 0
      %2813 = vmatprep.subr.bf16.mxu0 0
      %2814 = vmatpush2.bf16.msra.mxu0 0
      %2815 = vmatprep.subr.bf16.mxu0 0
      %2816 = vmatpush2.bf16.msra.mxu0 0
      %2817 = vmatprep.mubr.bf16.mxu0 0
      %2818 = vmatmul.mubr.bf16.gmra.mxu0 %v2771
      %v2819 = vpop.f32.mrf.mxu0
      %v2820 = vadd.f32 0.0, %v2819
      %v2821 = vpop.f32.mrf.mxu0
      %v2822 = vpop.f32.mrf.mxu0
      %v2823 = vadd.f32 0.0, %v2822
      %v2824 = vpop.f32.mrf.mxu0
      %2825 = vmatprep.mubr.bf16.mxu0 0
      %2826 = vmatmul.mubr.bf16.gmra.mxu0 %v2774
      %v2827 = vpop.f32.mrf.mxu0
      %v2828 = vadd.f32 0.0, %v2827
      %v2829 = vpop.f32.mrf.mxu0
      %v2830 = vpop.f32.mrf.mxu0
      %v2831 = vadd.f32 0.0, %v2830
      %v2832 = vpop.f32.mrf.mxu0
      %2833 = vmatprep.mubr.bf16.mxu0 0
      %2834 = vmatmul.mubr.bf16.gmra.mxu0 %v2777
      %v2835 = vpop.f32.mrf.mxu0
      %v2836 = vadd.f32 0.0, %v2835
      %v2837 = vpop.f32.mrf.mxu0
      %v2838 = vpop.f32.mrf.mxu0
      %v2839 = vadd.f32 0.0, %v2838
      %v2840 = vpop.f32.mrf.mxu0
      %2841 = vmatprep.mubr.bf16.mxu0 0
      %2842 = vmatmul.mubr.bf16.gmra.mxu0 %v2780
      %v2843 = vpop.f32.mrf.mxu0
      %v2844 = vadd.f32 0.0, %v2843
      %v2845 = vpop.f32.mrf.mxu0
      %v2846 = vpop.f32.mrf.mxu0
      %v2847 = vadd.f32 0.0, %v2846
      %v2848 = vpop.f32.mrf.mxu0
      %2849 = vdwg.mxu0
      %v2858 = vunpack.c.l.b16 %v2626
      %v2859 = vunpack.c.l.b16 %v2627
      %v2860 = vunpack.c.l.b16 %v2628
      %v2861 = vunpack.c.l.b16 %v2629
      %v2862 = vunpack.c.l.b16 %v2630
      %v2863 = vunpack.c.l.b16 %v2631
      %v2864 = vunpack.c.l.b16 %v2632
      %v2865 = vunpack.c.l.b16 %v2633
      %v2866 = vpack.c.b16 %v2859, %v2858
      %v2867 = vpack.c.b16 %v2861, %v2860
      %v2868 = vpack.c.b16 %v2863, %v2862
      %v2869 = vpack.c.b16 %v2865, %v2864
      %v2871 = vsel %vm1146, %v2866, 0
      %v2874 = vsel %vm1146, %v2867, 0
      %v2877 = vsel %vm1146, %v2868, 0
      %v2880 = vsel %vm1146, %v2869, 0
      %v2883 = vsel %vm1159, %v2635, 0
      %2885 = vmatprep.subr.bf16.mxu0 0
      %2886 = vmatpush1.bf16.msra.mxu0 0
      %2887 = vmatprep.subr.bf16.mxu0 0
      %2888 = vmatpush1.bf16.msra.mxu0 0
      %2889 = vmatprep.subr.bf16.mxu0 0
      %2890 = vmatpush1.bf16.msra.mxu0 0
      %2891 = vmatprep.subr.bf16.mxu0 0
      %2892 = vmatpush1.bf16.msra.mxu0 0
      %2893 = vmatprep.subr.bf16.mxu0 0
      %2894 = vmatpush1.bf16.msra.mxu0 0
      %2895 = vmatprep.subr.bf16.mxu0 0
      %2896 = vmatpush1.bf16.msra.mxu0 0
      %2897 = vmatprep.subr.bf16.mxu0 0
      %2898 = vmatpush1.bf16.msra.mxu0 0
      %2899 = vmatprep.subr.bf16.mxu0 0
      %2900 = vmatpush1.bf16.msra.mxu0 %v2883
      %2901 = vmatprep.subr.bf16.mxu0 0
      %2902 = vmatpush2.bf16.msra.mxu0 0
      %2903 = vmatprep.subr.bf16.mxu0 0
      %2904 = vmatpush2.bf16.msra.mxu0 0
      %2905 = vmatprep.subr.bf16.mxu0 0
      %2906 = vmatpush2.bf16.msra.mxu0 0
      %2907 = vmatprep.subr.bf16.mxu0 0
      %2908 = vmatpush2.bf16.msra.mxu0 0
      %2909 = vmatprep.subr.bf16.mxu0 0
      %2910 = vmatpush2.bf16.msra.mxu0 0
      %2911 = vmatprep.subr.bf16.mxu0 0
      %2912 = vmatpush2.bf16.msra.mxu0 0
      %2913 = vmatprep.subr.bf16.mxu0 0
      %2914 = vmatpush2.bf16.msra.mxu0 0
      %2915 = vmatprep.subr.bf16.mxu0 0
      %2916 = vmatpush2.bf16.msra.mxu0 0
      %2917 = vmatprep.mubr.bf16.mxu0 0
      %2918 = vmatmul.mubr.bf16.gmra.mxu0 %v2871
      %v2919 = vpop.f32.mrf.mxu0
      %v2920 = vadd.f32 %v2820, %v2919
      %v2921 = vpop.f32.mrf.mxu0
      %v2922 = vpop.f32.mrf.mxu0
      %v2923 = vadd.f32 %v2823, %v2922
      %v2924 = vpop.f32.mrf.mxu0
      %2925 = vmatprep.mubr.bf16.mxu0 0
      %2926 = vmatmul.mubr.bf16.gmra.mxu0 %v2874
      %v2927 = vpop.f32.mrf.mxu0
      %v2928 = vadd.f32 %v2828, %v2927
      %v2929 = vpop.f32.mrf.mxu0
      %v2930 = vpop.f32.mrf.mxu0
      %v2931 = vadd.f32 %v2831, %v2930
      %v2932 = vpop.f32.mrf.mxu0
      %2933 = vmatprep.mubr.bf16.mxu0 0
      %2934 = vmatmul.mubr.bf16.gmra.mxu0 %v2877
      %v2935 = vpop.f32.mrf.mxu0
      %v2936 = vadd.f32 %v2836, %v2935
      %v2937 = vpop.f32.mrf.mxu0
      %v2938 = vpop.f32.mrf.mxu0
      %v2939 = vadd.f32 %v2839, %v2938
      %v2940 = vpop.f32.mrf.mxu0
      %2941 = vmatprep.mubr.bf16.mxu0 0
      %2942 = vmatmul.mubr.bf16.gmra.mxu0 %v2880
      %v2943 = vpop.f32.mrf.mxu0
      %v2944 = vadd.f32 %v2844, %v2943
      %v2945 = vpop.f32.mrf.mxu0
      %v2946 = vpop.f32.mrf.mxu0
      %v2947 = vadd.f32 %v2847, %v2946
      %v2948 = vpop.f32.mrf.mxu0
      %2949 = vdwg.mxu0
      %s2950 = scalar_lea.vmem [#allocation2], 16
      %v2951 = vld [vmem:[%s2950] sm:$0xf]
      %v2952 = vld [vmem:[%s2950 + $0x8] sm:$0xf]
      %v2953 = vld [vmem:[%s2950 + $0x10] sm:$0xf]
      %v2954 = vld [vmem:[%s2950 + $0x18] sm:$0xf]
      %v2955 = vld [vmem:[%s2950 + $0x20] sm:$0xf]
      %v2956 = vld [vmem:[%s2950 + $0x28] sm:$0xf]
      %v2957 = vld [vmem:[%s2950 + $0x30] sm:$0xf]
      %v2958 = vld [vmem:[%s2950 + $0x38] sm:$0xf]
      %s2959 = scalar_lea.vmem %s2, 40
      %v2960 = vld [vmem:[%s2959] sm:$0xf]
      %v2969 = vunpack.c.l.b16 %v2951
      %v2970 = vunpack.c.l.b16 %v2952
      %v2971 = vunpack.c.l.b16 %v2953
      %v2972 = vunpack.c.l.b16 %v2954
      %v2973 = vunpack.c.l.b16 %v2955
      %v2974 = vunpack.c.l.b16 %v2956
      %v2975 = vunpack.c.l.b16 %v2957
      %v2976 = vunpack.c.l.b16 %v2958
      %v2977 = vpack.c.b16 %v2970, %v2969
      %v2978 = vpack.c.b16 %v2972, %v2971
      %v2979 = vpack.c.b16 %v2974, %v2973
      %v2980 = vpack.c.b16 %v2976, %v2975
      %v2982 = vsel %vm1146, %v2977, 0
      %v2985 = vsel %vm1146, %v2978, 0
      %v2988 = vsel %vm1146, %v2979, 0
      %v2991 = vsel %vm1146, %v2980, 0
      %v2994 = vsel %vm1159, %v2960, 0
      %2996 = vmatprep.subr.bf16.mxu0 0
      %2997 = vmatpush1.bf16.msra.mxu0 0
      %2998 = vmatprep.subr.bf16.mxu0 0
      %2999 = vmatpush1.bf16.msra.mxu0 0
      %3000 = vmatprep.subr.bf16.mxu0 0
      %3001 = vmatpush1.bf16.msra.mxu0 0
      %3002 = vmatprep.subr.bf16.mxu0 0
      %3003 = vmatpush1.bf16.msra.mxu0 0
      %3004 = vmatprep.subr.bf16.mxu0 0
      %3005 = vmatpush1.bf16.msra.mxu0 0
      %3006 = vmatprep.subr.bf16.mxu0 0
      %3007 = vmatpush1.bf16.msra.mxu0 0
      %3008 = vmatprep.subr.bf16.mxu0 0
      %3009 = vmatpush1.bf16.msra.mxu0 0
      %3010 = vmatprep.subr.bf16.mxu0 0
      %3011 = vmatpush1.bf16.msra.mxu0 %v2994
      %3012 = vmatprep.subr.bf16.mxu0 0
      %3013 = vmatpush2.bf16.msra.mxu0 0
      %3014 = vmatprep.subr.bf16.mxu0 0
      %3015 = vmatpush2.bf16.msra.mxu0 0
      %3016 = vmatprep.subr.bf16.mxu0 0
      %3017 = vmatpush2.bf16.msra.mxu0 0
      %3018 = vmatprep.subr.bf16.mxu0 0
      %3019 = vmatpush2.bf16.msra.mxu0 0
      %3020 = vmatprep.subr.bf16.mxu0 0
      %3021 = vmatpush2.bf16.msra.mxu0 0
      %3022 = vmatprep.subr.bf16.mxu0 0
      %3023 = vmatpush2.bf16.msra.mxu0 0
      %3024 = vmatprep.subr.bf16.mxu0 0
      %3025 = vmatpush2.bf16.msra.mxu0 0
      %3026 = vmatprep.subr.bf16.mxu0 0
      %3027 = vmatpush2.bf16.msra.mxu0 0
      %3028 = vmatprep.mubr.bf16.mxu0 0
      %3029 = vmatmul.mubr.bf16.gmra.mxu0 %v2982
      %v3030 = vpop.f32.mrf.mxu0
      %v3031 = vadd.f32 0.0, %v3030
      %v3032 = vpop.f32.mrf.mxu0
      %v3033 = vpop.f32.mrf.mxu0
      %v3034 = vadd.f32 0.0, %v3033
      %v3035 = vpop.f32.mrf.mxu0
      %3036 = vmatprep.mubr.bf16.mxu0 0
      %3037 = vmatmul.mubr.bf16.gmra.mxu0 %v2985
      %v3038 = vpop.f32.mrf.mxu0
      %v3039 = vadd.f32 0.0, %v3038
      %v3040 = vpop.f32.mrf.mxu0
      %v3041 = vpop.f32.mrf.mxu0
      %v3042 = vadd.f32 0.0, %v3041
      %v3043 = vpop.f32.mrf.mxu0
      %3044 = vmatprep.mubr.bf16.mxu0 0
      %3045 = vmatmul.mubr.bf16.gmra.mxu0 %v2988
      %v3046 = vpop.f32.mrf.mxu0
      %v3047 = vadd.f32 0.0, %v3046
      %v3048 = vpop.f32.mrf.mxu0
      %v3049 = vpop.f32.mrf.mxu0
      %v3050 = vadd.f32 0.0, %v3049
      %v3051 = vpop.f32.mrf.mxu0
      %3052 = vmatprep.mubr.bf16.mxu0 0
      %3053 = vmatmul.mubr.bf16.gmra.mxu0 %v2991
      %v3054 = vpop.f32.mrf.mxu0
      %v3055 = vadd.f32 0.0, %v3054
      %v3056 = vpop.f32.mrf.mxu0
      %v3057 = vpop.f32.mrf.mxu0
      %v3058 = vadd.f32 0.0, %v3057
      %v3059 = vpop.f32.mrf.mxu0
      %3060 = vdwg.mxu0
      %v3061 = vadd.f32 %v2920, %v3031
      %v3062 = vadd.f32 %v2923, %v3034
      %v3063 = vadd.f32 %v2928, %v3039
      %v3064 = vadd.f32 %v2931, %v3042
      %v3065 = vadd.f32 %v2936, %v3047
      %v3066 = vadd.f32 %v2939, %v3050
      %v3067 = vadd.f32 %v2944, %v3055
      %v3068 = vadd.f32 %v2947, %v3058
      %v3069 = vld [vmem:[%s2950] sm:$0xf]
      %v3070 = vld [vmem:[%s2950 + $0x4] sm:$0x1]
      %v3071 = vld [vmem:[%s2950 + $0x8] sm:$0xf]
      %v3072 = vld [vmem:[%s2950 + $0xc] sm:$0x1]
      %v3073 = vld [vmem:[%s2950 + $0x10] sm:$0xf]
      %v3074 = vld [vmem:[%s2950 + $0x14] sm:$0x1]
      %v3075 = vld [vmem:[%s2950 + $0x18] sm:$0xf]
      %v3076 = vld [vmem:[%s2950 + $0x1c] sm:$0x1]
      %v3077 = vld [vmem:[%s2950 + $0x20] sm:$0xf]
      %v3078 = vld [vmem:[%s2950 + $0x24] sm:$0x1]
      %v3079 = vld [vmem:[%s2950 + $0x28] sm:$0xf]
      %v3080 = vld [vmem:[%s2950 + $0x2c] sm:$0x1]
      %v3081 = vld [vmem:[%s2950 + $0x30] sm:$0xf]
      %v3082 = vld [vmem:[%s2950 + $0x34] sm:$0x1]
      %v3083 = vld [vmem:[%s2950 + $0x38] sm:$0xf]
      %v3084 = vld [vmem:[%s2950 + $0x3c] sm:$0x1]
      %v3086 = vshrl.u32 %v3069, 16
      %v3088 = vrot.slane %v3086, 4
      %v3089 = vshll.u32 %v3069, 16
      %v3091 = vrot.slane %v3089, 5
      %v3092 = vor.u32 %v3088, %v3091
      %v3093 = vrot.slane %v3092, 4
      %v3095 = vshll.u32 %v3070, 16
      %v3097 = vrot.slane %v3095, 5
      %v3098 = vsel %vm1019, %v3093, %v3097
      %v3100 = vshrl.u32 %v3071, 16
      %v3102 = vrot.slane %v3100, 4
      %v3103 = vshll.u32 %v3071, 16
      %v3105 = vrot.slane %v3103, 5
      %v3106 = vor.u32 %v3102, %v3105
      %v3107 = vrot.slane %v3106, 4
      %v3109 = vshll.u32 %v3072, 16
      %v3111 = vrot.slane %v3109, 5
      %v3112 = vsel %vm1019, %v3107, %v3111
      %v3114 = vshrl.u32 %v3073, 16
      %v3116 = vrot.slane %v3114, 4
      %v3117 = vshll.u32 %v3073, 16
      %v3119 = vrot.slane %v3117, 5
      %v3120 = vor.u32 %v3116, %v3119
      %v3121 = vrot.slane %v3120, 4
      %v3123 = vshll.u32 %v3074, 16
      %v3125 = vrot.slane %v3123, 5
      %v3126 = vsel %vm1019, %v3121, %v3125
      %v3128 = vshrl.u32 %v3075, 16
      %v3130 = vrot.slane %v3128, 4
      %v3131 = vshll.u32 %v3075, 16
      %v3133 = vrot.slane %v3131, 5
      %v3134 = vor.u32 %v3130, %v3133
      %v3135 = vrot.slane %v3134, 4
      %v3137 = vshll.u32 %v3076, 16
      %v3139 = vrot.slane %v3137, 5
      %v3140 = vsel %vm1019, %v3135, %v3139
      %v3142 = vshrl.u32 %v3077, 16
      %v3144 = vrot.slane %v3142, 4
      %v3145 = vshll.u32 %v3077, 16
      %v3147 = vrot.slane %v3145, 5
      %v3148 = vor.u32 %v3144, %v3147
      %v3149 = vrot.slane %v3148, 4
      %v3151 = vshll.u32 %v3078, 16
      %v3153 = vrot.slane %v3151, 5
      %v3154 = vsel %vm1019, %v3149, %v3153
      %v3156 = vshrl.u32 %v3079, 16
      %v3158 = vrot.slane %v3156, 4
      %v3159 = vshll.u32 %v3079, 16
      %v3161 = vrot.slane %v3159, 5
      %v3162 = vor.u32 %v3158, %v3161
      %v3163 = vrot.slane %v3162, 4
      %v3165 = vshll.u32 %v3080, 16
      %v3167 = vrot.slane %v3165, 5
      %v3168 = vsel %vm1019, %v3163, %v3167
      %v3170 = vshrl.u32 %v3081, 16
      %v3172 = vrot.slane %v3170, 4
      %v3173 = vshll.u32 %v3081, 16
      %v3175 = vrot.slane %v3173, 5
      %v3176 = vor.u32 %v3172, %v3175
      %v3177 = vrot.slane %v3176, 4
      %v3179 = vshll.u32 %v3082, 16
      %v3181 = vrot.slane %v3179, 5
      %v3182 = vsel %vm1019, %v3177, %v3181
      %v3184 = vshrl.u32 %v3083, 16
      %v3186 = vrot.slane %v3184, 4
      %v3187 = vshll.u32 %v3083, 16
      %v3189 = vrot.slane %v3187, 5
      %v3190 = vor.u32 %v3186, %v3189
      %v3191 = vrot.slane %v3190, 4
      %v3193 = vshll.u32 %v3084, 16
      %v3195 = vrot.slane %v3193, 5
      %v3196 = vsel %vm1019, %v3191, %v3195
      %s3197 = scalar_lea.vmem %s2, 44
      %v3198 = vld [vmem:[%s3197] sm:$0xf]
      %v3199 = vunpack.c.l.b16 %v3098
      %v3200 = vunpack.c.l.b16 %v3112
      %v3201 = vunpack.c.l.b16 %v3126
      %v3202 = vunpack.c.l.b16 %v3140
      %v3203 = vunpack.c.l.b16 %v3154
      %v3204 = vunpack.c.l.b16 %v3168
      %v3205 = vunpack.c.l.b16 %v3182
      %v3206 = vunpack.c.l.b16 %v3196
      %v3207 = vpack.c.b16 %v3200, %v3199
      %v3208 = vpack.c.b16 %v3202, %v3201
      %v3209 = vpack.c.b16 %v3204, %v3203
      %v3210 = vpack.c.b16 %v3206, %v3205
      %v3212 = vsel %vm1146, %v3207, 0
      %v3215 = vsel %vm1146, %v3208, 0
      %v3218 = vsel %vm1146, %v3209, 0
      %v3221 = vsel %vm1146, %v3210, 0
      %v3224 = vsel %vm1159, %v3198, 0
      %3226 = vmatprep.subr.bf16.mxu0 0
      %3227 = vmatpush1.bf16.msra.mxu0 0
      %3228 = vmatprep.subr.bf16.mxu0 0
      %3229 = vmatpush1.bf16.msra.mxu0 0
      %3230 = vmatprep.subr.bf16.mxu0 0
      %3231 = vmatpush1.bf16.msra.mxu0 0
      %3232 = vmatprep.subr.bf16.mxu0 0
      %3233 = vmatpush1.bf16.msra.mxu0 0
      %3234 = vmatprep.subr.bf16.mxu0 0
      %3235 = vmatpush1.bf16.msra.mxu0 0
      %3236 = vmatprep.subr.bf16.mxu0 0
      %3237 = vmatpush1.bf16.msra.mxu0 0
      %3238 = vmatprep.subr.bf16.mxu0 0
      %3239 = vmatpush1.bf16.msra.mxu0 0
      %3240 = vmatprep.subr.bf16.mxu0 0
      %3241 = vmatpush1.bf16.msra.mxu0 %v3224
      %3242 = vmatprep.subr.bf16.mxu0 0
      %3243 = vmatpush2.bf16.msra.mxu0 0
      %3244 = vmatprep.subr.bf16.mxu0 0
      %3245 = vmatpush2.bf16.msra.mxu0 0
      %3246 = vmatprep.subr.bf16.mxu0 0
      %3247 = vmatpush2.bf16.msra.mxu0 0
      %3248 = vmatprep.subr.bf16.mxu0 0
      %3249 = vmatpush2.bf16.msra.mxu0 0
      %3250 = vmatprep.subr.bf16.mxu0 0
      %3251 = vmatpush2.bf16.msra.mxu0 0
      %3252 = vmatprep.subr.bf16.mxu0 0
      %3253 = vmatpush2.bf16.msra.mxu0 0
      %3254 = vmatprep.subr.bf16.mxu0 0
      %3255 = vmatpush2.bf16.msra.mxu0 0
      %3256 = vmatprep.subr.bf16.mxu0 0
      %3257 = vmatpush2.bf16.msra.mxu0 0
      %3258 = vmatprep.mubr.bf16.mxu0 0
      %3259 = vmatmul.mubr.bf16.gmra.mxu0 %v3212
      %v3260 = vpop.f32.mrf.mxu0
      %v3261 = vadd.f32 0.0, %v3260
      %v3262 = vpop.f32.mrf.mxu0
      %v3263 = vpop.f32.mrf.mxu0
      %v3264 = vadd.f32 0.0, %v3263
      %v3265 = vpop.f32.mrf.mxu0
      %3266 = vmatprep.mubr.bf16.mxu0 0
      %3267 = vmatmul.mubr.bf16.gmra.mxu0 %v3215
      %v3268 = vpop.f32.mrf.mxu0
      %v3269 = vadd.f32 0.0, %v3268
      %v3270 = vpop.f32.mrf.mxu0
      %v3271 = vpop.f32.mrf.mxu0
      %v3272 = vadd.f32 0.0, %v3271
      %v3273 = vpop.f32.mrf.mxu0
      %3274 = vmatprep.mubr.bf16.mxu0 0
      %3275 = vmatmul.mubr.bf16.gmra.mxu0 %v3218
      %v3276 = vpop.f32.mrf.mxu0
      %v3277 = vadd.f32 0.0, %v3276
      %v3278 = vpop.f32.mrf.mxu0
      %v3279 = vpop.f32.mrf.mxu0
      %v3280 = vadd.f32 0.0, %v3279
      %v3281 = vpop.f32.mrf.mxu0
      %3282 = vmatprep.mubr.bf16.mxu0 0
      %3283 = vmatmul.mubr.bf16.gmra.mxu0 %v3221
      %v3284 = vpop.f32.mrf.mxu0
      %v3285 = vadd.f32 0.0, %v3284
      %v3286 = vpop.f32.mrf.mxu0
      %v3287 = vpop.f32.mrf.mxu0
      %v3288 = vadd.f32 0.0, %v3287
      %v3289 = vpop.f32.mrf.mxu0
      %3290 = vdwg.mxu0
      %v3291 = vadd.f32 %v3061, %v3261
      %v3292 = vadd.f32 %v3062, %v3264
      %v3293 = vadd.f32 %v3063, %v3269
      %v3294 = vadd.f32 %v3064, %v3272
      %v3295 = vadd.f32 %v3065, %v3277
      %v3296 = vadd.f32 %v3066, %v3280
      %v3297 = vadd.f32 %v3067, %v3285
      %v3298 = vadd.f32 %v3068, %v3288
      %v3299 = vpack.c.bf16 %v3292, %v3291
      %v3300 = vpack.c.bf16 %v3294, %v3293
      %v3301 = vpack.c.bf16 %v3296, %v3295
      %v3302 = vpack.c.bf16 %v3298, %v3297
      %v3307 = vunpack.c.l.b16 %v3299
      %v3308 = vunpack.c.h.b16 %v3299
      %v3309 = vunpack.c.l.b16 %v3300
      %v3310 = vunpack.c.h.b16 %v3300
      %v3311 = vunpack.c.l.b16 %v3301
      %v3312 = vunpack.c.h.b16 %v3301
      %v3313 = vunpack.c.l.b16 %v3302
      %v3314 = vunpack.c.h.b16 %v3302
      %v3315 = vpack.c.b16 %v3307, %v3307
      %v3316 = vpack.c.b16 %v3308, %v3308
      %v3317 = vpack.c.b16 %v3309, %v3309
      %v3318 = vpack.c.b16 %v3310, %v3310
      %v3319 = vpack.c.b16 %v3311, %v3311
      %v3320 = vpack.c.b16 %v3312, %v3312
      %v3321 = vpack.c.b16 %v3313, %v3313
      %v3322 = vpack.c.b16 %v3314, %v3314
      %s3331 = scalar_lea.vmem %s204, 64
      %3332 = vst.msk [vmem:[%s3331] sm:$0xf] %vm1708, %v3315
      %3333 = vst.msk [vmem:[%s3331 + $0x4] sm:$0xf] %vm1708, %v3316
      %3334 = vst.msk [vmem:[%s3331 + $0x8] sm:$0xf] %vm1708, %v3317
      %3335 = vst.msk [vmem:[%s3331 + $0xc] sm:$0xf] %vm1708, %v3318
      %3336 = vst.msk [vmem:[%s3331 + $0x10] sm:$0xf] %vm1708, %v3319
      %3337 = vst.msk [vmem:[%s3331 + $0x14] sm:$0xf] %vm1708, %v3320
      %3338 = vst.msk [vmem:[%s3331 + $0x18] sm:$0xf] %vm1708, %v3321
      %3339 = vst.msk [vmem:[%s3331 + $0x1c] sm:$0xf] %vm1708, %v3322
      %v3340 = vsel %vm1717, %v3291, 0.0
      %v3341 = vsel %vm1717, %v3292, 0.0
      %v3342 = vadd.f32 %v3340, %v3341
      %v3343 = vsel %vm1717, %v3293, 0.0
      %v3344 = vadd.f32 %v3342, %v3343
      %v3345 = vsel %vm1717, %v3294, 0.0
      %v3346 = vadd.f32 %v3344, %v3345
      %v3347 = vsel %vm1717, %v3295, 0.0
      %v3348 = vadd.f32 %v3346, %v3347
      %v3349 = vsel %vm1717, %v3296, 0.0
      %v3350 = vadd.f32 %v3348, %v3349
      %v3351 = vsel %vm1717, %v3297, 0.0
      %v3352 = vadd.f32 %v3350, %v3351
      %v3353 = vsel %vm1717, %v3298, 0.0
      %v3354 = vadd.f32 %v3352, %v3353
      %v3355 = vrot.slane %v3354, 4
      %v3356 = vadd.f32 %v3354, %v3355
      %v3357 = vrot.slane %v3356, 2
      %v3358 = vadd.f32 %v3356, %v3357
      %v3359 = vrot.slane %v3358, 1
      %v3360 = vadd.f32 %v3358, %v3359
      %v3361 = vadd.f32 %v2595, %v3360
      %v3362 = vmul.f32 %v3291, %v3291
      %v3363 = vmul.f32 %v3292, %v3292
      %v3364 = vmul.f32 %v3293, %v3293
      %v3365 = vmul.f32 %v3294, %v3294
      %v3366 = vmul.f32 %v3295, %v3295
      %v3367 = vmul.f32 %v3296, %v3296
      %v3368 = vmul.f32 %v3297, %v3297
      %v3369 = vmul.f32 %v3298, %v3298
      %v3370 = vsel %vm1717, %v3362, 0.0
      %v3371 = vsel %vm1717, %v3363, 0.0
      %v3372 = vadd.f32 %v3370, %v3371
      %v3373 = vsel %vm1717, %v3364, 0.0
      %v3374 = vadd.f32 %v3372, %v3373
      %v3375 = vsel %vm1717, %v3365, 0.0
      %v3376 = vadd.f32 %v3374, %v3375
      %v3377 = vsel %vm1717, %v3366, 0.0
      %v3378 = vadd.f32 %v3376, %v3377
      %v3379 = vsel %vm1717, %v3367, 0.0
      %v3380 = vadd.f32 %v3378, %v3379
      %v3381 = vsel %vm1717, %v3368, 0.0
      %v3382 = vadd.f32 %v3380, %v3381
      %v3383 = vsel %vm1717, %v3369, 0.0
      %v3384 = vadd.f32 %v3382, %v3383
      %v3385 = vrot.slane %v3384, 4
      %v3386 = vadd.f32 %v3384, %v3385
      %v3387 = vrot.slane %v3386, 2
      %v3388 = vadd.f32 %v3386, %v3387
      %v3389 = vrot.slane %v3388, 1
      %v3390 = vadd.f32 %v3388, %v3389
      %v3391 = vadd.f32 %v2625, %v3390
      %v3392 = vld [vmem:[%s945] sm:$0xf]
      %v3393 = vld [vmem:[%s945 + $0x4] sm:$0x1]
      %v3394 = vld [vmem:[%s945 + $0x8] sm:$0xf]
      %v3395 = vld [vmem:[%s945 + $0xc] sm:$0x1]
      %v3396 = vld [vmem:[%s945 + $0x10] sm:$0xf]
      %v3397 = vld [vmem:[%s945 + $0x14] sm:$0x1]
      %v3398 = vld [vmem:[%s945 + $0x18] sm:$0xf]
      %v3399 = vld [vmem:[%s945 + $0x1c] sm:$0x1]
      %v3400 = vld [vmem:[%s945 + $0x20] sm:$0xf]
      %v3401 = vld [vmem:[%s945 + $0x24] sm:$0x1]
      %v3402 = vld [vmem:[%s945 + $0x28] sm:$0xf]
      %v3403 = vld [vmem:[%s945 + $0x2c] sm:$0x1]
      %v3404 = vld [vmem:[%s945 + $0x30] sm:$0xf]
      %v3405 = vld [vmem:[%s945 + $0x34] sm:$0x1]
      %v3406 = vld [vmem:[%s945 + $0x38] sm:$0xf]
      %v3407 = vld [vmem:[%s945 + $0x3c] sm:$0x1]
      %v3409 = vshrl.u32 %v3392, 16
      %v3411 = vrot.slane %v3409, 4
      %v3412 = vshll.u32 %v3392, 16
      %v3414 = vrot.slane %v3412, 5
      %v3415 = vor.u32 %v3411, %v3414
      %v3416 = vrot.slane %v3415, 4
      %v3418 = vshll.u32 %v3393, 16
      %v3420 = vrot.slane %v3418, 5
      %v3421 = vsel %vm1019, %v3416, %v3420
      %v3423 = vshrl.u32 %v3394, 16
      %v3425 = vrot.slane %v3423, 4
      %v3426 = vshll.u32 %v3394, 16
      %v3428 = vrot.slane %v3426, 5
      %v3429 = vor.u32 %v3425, %v3428
      %v3430 = vrot.slane %v3429, 4
      %v3432 = vshll.u32 %v3395, 16
      %v3434 = vrot.slane %v3432, 5
      %v3435 = vsel %vm1019, %v3430, %v3434
      %v3437 = vshrl.u32 %v3396, 16
      %v3439 = vrot.slane %v3437, 4
      %v3440 = vshll.u32 %v3396, 16
      %v3442 = vrot.slane %v3440, 5
      %v3443 = vor.u32 %v3439, %v3442
      %v3444 = vrot.slane %v3443, 4
      %v3446 = vshll.u32 %v3397, 16
      %v3448 = vrot.slane %v3446, 5
      %v3449 = vsel %vm1019, %v3444, %v3448
      %v3451 = vshrl.u32 %v3398, 16
      %v3453 = vrot.slane %v3451, 4
      %v3454 = vshll.u32 %v3398, 16
      %v3456 = vrot.slane %v3454, 5
      %v3457 = vor.u32 %v3453, %v3456
      %v3458 = vrot.slane %v3457, 4
      %v3460 = vshll.u32 %v3399, 16
      %v3462 = vrot.slane %v3460, 5
      %v3463 = vsel %vm1019, %v3458, %v3462
      %v3465 = vshrl.u32 %v3400, 16
      %v3467 = vrot.slane %v3465, 4
      %v3468 = vshll.u32 %v3400, 16
      %v3470 = vrot.slane %v3468, 5
      %v3471 = vor.u32 %v3467, %v3470
      %v3472 = vrot.slane %v3471, 4
      %v3474 = vshll.u32 %v3401, 16
      %v3476 = vrot.slane %v3474, 5
      %v3477 = vsel %vm1019, %v3472, %v3476
      %v3479 = vshrl.u32 %v3402, 16
      %v3481 = vrot.slane %v3479, 4
      %v3482 = vshll.u32 %v3402, 16
      %v3484 = vrot.slane %v3482, 5
      %v3485 = vor.u32 %v3481, %v3484
      %v3486 = vrot.slane %v3485, 4
      %v3488 = vshll.u32 %v3403, 16
      %v3490 = vrot.slane %v3488, 5
      %v3491 = vsel %vm1019, %v3486, %v3490
      %v3493 = vshrl.u32 %v3404, 16
      %v3495 = vrot.slane %v3493, 4
      %v3496 = vshll.u32 %v3404, 16
      %v3498 = vrot.slane %v3496, 5
      %v3499 = vor.u32 %v3495, %v3498
      %v3500 = vrot.slane %v3499, 4
      %v3502 = vshll.u32 %v3405, 16
      %v3504 = vrot.slane %v3502, 5
      %v3505 = vsel %vm1019, %v3500, %v3504
      %v3507 = vshrl.u32 %v3406, 16
      %v3509 = vrot.slane %v3507, 4
      %v3510 = vshll.u32 %v3406, 16
      %v3512 = vrot.slane %v3510, 5
      %v3513 = vor.u32 %v3509, %v3512
      %v3514 = vrot.slane %v3513, 4
      %v3516 = vshll.u32 %v3407, 16
      %v3518 = vrot.slane %v3516, 5
      %v3519 = vsel %vm1019, %v3514, %v3518
      %s3520 = scalar_lea.vmem %s2, 48
      %v3521 = vld [vmem:[%s3520] sm:$0xf]
      %v3522 = vld [vmem:[%s945] sm:$0xe]
      %v3523 = vld [vmem:[%s945 + $0x8] sm:$0xe]
      %v3524 = vld [vmem:[%s945 + $0x10] sm:$0xe]
      %v3525 = vld [vmem:[%s945 + $0x18] sm:$0xe]
      %v3526 = vld [vmem:[%s945 + $0x20] sm:$0xe]
      %v3527 = vld [vmem:[%s945 + $0x28] sm:$0xe]
      %v3528 = vld [vmem:[%s945 + $0x30] sm:$0xe]
      %v3529 = vld [vmem:[%s945 + $0x38] sm:$0xe]
      %v3546 = vrot.slane %v3522, 5
      %v3547 = vrot.slane %v3546, 4
      %v3548 = vrot.slane %v3393, 5
      %v3549 = vsel %vm1926, %v3547, %v3548
      %v3550 = vrot.slane %v3523, 5
      %v3551 = vrot.slane %v3550, 4
      %v3552 = vrot.slane %v3395, 5
      %v3553 = vsel %vm1926, %v3551, %v3552
      %v3554 = vrot.slane %v3524, 5
      %v3555 = vrot.slane %v3554, 4
      %v3556 = vrot.slane %v3397, 5
      %v3557 = vsel %vm1926, %v3555, %v3556
      %v3558 = vrot.slane %v3525, 5
      %v3559 = vrot.slane %v3558, 4
      %v3560 = vrot.slane %v3399, 5
      %v3561 = vsel %vm1926, %v3559, %v3560
      %v3562 = vrot.slane %v3526, 5
      %v3563 = vrot.slane %v3562, 4
      %v3564 = vrot.slane %v3401, 5
      %v3565 = vsel %vm1926, %v3563, %v3564
      %v3566 = vrot.slane %v3527, 5
      %v3567 = vrot.slane %v3566, 4
      %v3568 = vrot.slane %v3403, 5
      %v3569 = vsel %vm1926, %v3567, %v3568
      %v3570 = vrot.slane %v3528, 5
      %v3571 = vrot.slane %v3570, 4
      %v3572 = vrot.slane %v3405, 5
      %v3573 = vsel %vm1926, %v3571, %v3572
      %v3574 = vrot.slane %v3529, 5
      %v3575 = vrot.slane %v3574, 4
      %v3576 = vrot.slane %v3407, 5
      %v3577 = vsel %vm1926, %v3575, %v3576
      %s3578 = scalar_lea.vmem %s2, 52
      %v3579 = vld [vmem:[%s3578] sm:$0xf]
      %v3580 = vunpack.c.l.b16 %v3549
      %v3581 = vunpack.c.l.b16 %v3553
      %v3582 = vunpack.c.l.b16 %v3557
      %v3583 = vunpack.c.l.b16 %v3561
      %v3584 = vunpack.c.l.b16 %v3565
      %v3585 = vunpack.c.l.b16 %v3569
      %v3586 = vunpack.c.l.b16 %v3573
      %v3587 = vunpack.c.l.b16 %v3577
      %v3588 = vpack.c.b16 %v3581, %v3580
      %v3589 = vpack.c.b16 %v3583, %v3582
      %v3590 = vpack.c.b16 %v3585, %v3584
      %v3591 = vpack.c.b16 %v3587, %v3586
      %v3593 = vsel %vm1146, %v3588, 0
      %v3596 = vsel %vm1146, %v3589, 0
      %v3599 = vsel %vm1146, %v3590, 0
      %v3602 = vsel %vm1146, %v3591, 0
      %v3605 = vsel %vm1159, %v3579, 0
      %3607 = vmatprep.subr.bf16.mxu0 0
      %3608 = vmatpush1.bf16.msra.mxu0 0
      %3609 = vmatprep.subr.bf16.mxu0 0
      %3610 = vmatpush1.bf16.msra.mxu0 0
      %3611 = vmatprep.subr.bf16.mxu0 0
      %3612 = vmatpush1.bf16.msra.mxu0 0
      %3613 = vmatprep.subr.bf16.mxu0 0
      %3614 = vmatpush1.bf16.msra.mxu0 0
      %3615 = vmatprep.subr.bf16.mxu0 0
      %3616 = vmatpush1.bf16.msra.mxu0 0
      %3617 = vmatprep.subr.bf16.mxu0 0
      %3618 = vmatpush1.bf16.msra.mxu0 0
      %3619 = vmatprep.subr.bf16.mxu0 0
      %3620 = vmatpush1.bf16.msra.mxu0 0
      %3621 = vmatprep.subr.bf16.mxu0 0
      %3622 = vmatpush1.bf16.msra.mxu0 %v3605
      %3623 = vmatprep.subr.bf16.mxu0 0
      %3624 = vmatpush2.bf16.msra.mxu0 0
      %3625 = vmatprep.subr.bf16.mxu0 0
      %3626 = vmatpush2.bf16.msra.mxu0 0
      %3627 = vmatprep.subr.bf16.mxu0 0
      %3628 = vmatpush2.bf16.msra.mxu0 0
      %3629 = vmatprep.subr.bf16.mxu0 0
      %3630 = vmatpush2.bf16.msra.mxu0 0
      %3631 = vmatprep.subr.bf16.mxu0 0
      %3632 = vmatpush2.bf16.msra.mxu0 0
      %3633 = vmatprep.subr.bf16.mxu0 0
      %3634 = vmatpush2.bf16.msra.mxu0 0
      %3635 = vmatprep.subr.bf16.mxu0 0
      %3636 = vmatpush2.bf16.msra.mxu0 0
      %3637 = vmatprep.subr.bf16.mxu0 0
      %3638 = vmatpush2.bf16.msra.mxu0 0
      %3639 = vmatprep.mubr.bf16.mxu0 0
      %3640 = vmatmul.mubr.bf16.gmra.mxu0 %v3593
      %v3641 = vpop.f32.mrf.mxu0
      %v3642 = vadd.f32 0.0, %v3641
      %v3643 = vpop.f32.mrf.mxu0
      %v3644 = vpop.f32.mrf.mxu0
      %v3645 = vadd.f32 0.0, %v3644
      %v3646 = vpop.f32.mrf.mxu0
      %3647 = vmatprep.mubr.bf16.mxu0 0
      %3648 = vmatmul.mubr.bf16.gmra.mxu0 %v3596
      %v3649 = vpop.f32.mrf.mxu0
      %v3650 = vadd.f32 0.0, %v3649
      %v3651 = vpop.f32.mrf.mxu0
      %v3652 = vpop.f32.mrf.mxu0
      %v3653 = vadd.f32 0.0, %v3652
      %v3654 = vpop.f32.mrf.mxu0
      %3655 = vmatprep.mubr.bf16.mxu0 0
      %3656 = vmatmul.mubr.bf16.gmra.mxu0 %v3599
      %v3657 = vpop.f32.mrf.mxu0
      %v3658 = vadd.f32 0.0, %v3657
      %v3659 = vpop.f32.mrf.mxu0
      %v3660 = vpop.f32.mrf.mxu0
      %v3661 = vadd.f32 0.0, %v3660
      %v3662 = vpop.f32.mrf.mxu0
      %3663 = vmatprep.mubr.bf16.mxu0 0
      %3664 = vmatmul.mubr.bf16.gmra.mxu0 %v3602
      %v3665 = vpop.f32.mrf.mxu0
      %v3666 = vadd.f32 0.0, %v3665
      %v3667 = vpop.f32.mrf.mxu0
      %v3668 = vpop.f32.mrf.mxu0
      %v3669 = vadd.f32 0.0, %v3668
      %v3670 = vpop.f32.mrf.mxu0
      %3671 = vdwg.mxu0
      %v3672 = vunpack.c.l.b16 %v3421
      %v3673 = vunpack.c.l.b16 %v3435
      %v3674 = vunpack.c.l.b16 %v3449
      %v3675 = vunpack.c.l.b16 %v3463
      %v3676 = vunpack.c.l.b16 %v3477
      %v3677 = vunpack.c.l.b16 %v3491
      %v3678 = vunpack.c.l.b16 %v3505
      %v3679 = vunpack.c.l.b16 %v3519
      %v3680 = vpack.c.b16 %v3673, %v3672
      %v3681 = vpack.c.b16 %v3675, %v3674
      %v3682 = vpack.c.b16 %v3677, %v3676
      %v3683 = vpack.c.b16 %v3679, %v3678
      %v3685 = vsel %vm1146, %v3680, 0
      %v3688 = vsel %vm1146, %v3681, 0
      %v3691 = vsel %vm1146, %v3682, 0
      %v3694 = vsel %vm1146, %v3683, 0
      %v3697 = vsel %vm1159, %v3521, 0
      %3699 = vmatprep.subr.bf16.mxu0 0
      %3700 = vmatpush1.bf16.msra.mxu0 0
      %3701 = vmatprep.subr.bf16.mxu0 0
      %3702 = vmatpush1.bf16.msra.mxu0 0
      %3703 = vmatprep.subr.bf16.mxu0 0
      %3704 = vmatpush1.bf16.msra.mxu0 0
      %3705 = vmatprep.subr.bf16.mxu0 0
      %3706 = vmatpush1.bf16.msra.mxu0 0
      %3707 = vmatprep.subr.bf16.mxu0 0
      %3708 = vmatpush1.bf16.msra.mxu0 0
      %3709 = vmatprep.subr.bf16.mxu0 0
      %3710 = vmatpush1.bf16.msra.mxu0 0
      %3711 = vmatprep.subr.bf16.mxu0 0
      %3712 = vmatpush1.bf16.msra.mxu0 0
      %3713 = vmatprep.subr.bf16.mxu0 0
      %3714 = vmatpush1.bf16.msra.mxu0 %v3697
      %3715 = vmatprep.subr.bf16.mxu0 0
      %3716 = vmatpush2.bf16.msra.mxu0 0
      %3717 = vmatprep.subr.bf16.mxu0 0
      %3718 = vmatpush2.bf16.msra.mxu0 0
      %3719 = vmatprep.subr.bf16.mxu0 0
      %3720 = vmatpush2.bf16.msra.mxu0 0
      %3721 = vmatprep.subr.bf16.mxu0 0
      %3722 = vmatpush2.bf16.msra.mxu0 0
      %3723 = vmatprep.subr.bf16.mxu0 0
      %3724 = vmatpush2.bf16.msra.mxu0 0
      %3725 = vmatprep.subr.bf16.mxu0 0
      %3726 = vmatpush2.bf16.msra.mxu0 0
      %3727 = vmatprep.subr.bf16.mxu0 0
      %3728 = vmatpush2.bf16.msra.mxu0 0
      %3729 = vmatprep.subr.bf16.mxu0 0
      %3730 = vmatpush2.bf16.msra.mxu0 0
      %3731 = vmatprep.mubr.bf16.mxu0 0
      %3732 = vmatmul.mubr.bf16.gmra.mxu0 %v3685
      %v3733 = vpop.f32.mrf.mxu0
      %v3734 = vadd.f32 %v3642, %v3733
      %v3735 = vpop.f32.mrf.mxu0
      %v3736 = vpop.f32.mrf.mxu0
      %v3737 = vadd.f32 %v3645, %v3736
      %v3738 = vpop.f32.mrf.mxu0
      %3739 = vmatprep.mubr.bf16.mxu0 0
      %3740 = vmatmul.mubr.bf16.gmra.mxu0 %v3688
      %v3741 = vpop.f32.mrf.mxu0
      %v3742 = vadd.f32 %v3650, %v3741
      %v3743 = vpop.f32.mrf.mxu0
      %v3744 = vpop.f32.mrf.mxu0
      %v3745 = vadd.f32 %v3653, %v3744
      %v3746 = vpop.f32.mrf.mxu0
      %3747 = vmatprep.mubr.bf16.mxu0 0
      %3748 = vmatmul.mubr.bf16.gmra.mxu0 %v3691
      %v3749 = vpop.f32.mrf.mxu0
      %v3750 = vadd.f32 %v3658, %v3749
      %v3751 = vpop.f32.mrf.mxu0
      %v3752 = vpop.f32.mrf.mxu0
      %v3753 = vadd.f32 %v3661, %v3752
      %v3754 = vpop.f32.mrf.mxu0
      %3755 = vmatprep.mubr.bf16.mxu0 0
      %3756 = vmatmul.mubr.bf16.gmra.mxu0 %v3694
      %v3757 = vpop.f32.mrf.mxu0
      %v3758 = vadd.f32 %v3666, %v3757
      %v3759 = vpop.f32.mrf.mxu0
      %v3760 = vpop.f32.mrf.mxu0
      %v3761 = vadd.f32 %v3669, %v3760
      %v3762 = vpop.f32.mrf.mxu0
      %3763 = vdwg.mxu0
      %v3764 = vld [vmem:[%s2950] sm:$0xf]
      %v3765 = vld [vmem:[%s2950 + $0x4] sm:$0x1]
      %v3766 = vld [vmem:[%s2950 + $0x8] sm:$0xf]
      %v3767 = vld [vmem:[%s2950 + $0xc] sm:$0x1]
      %v3768 = vld [vmem:[%s2950 + $0x10] sm:$0xf]
      %v3769 = vld [vmem:[%s2950 + $0x14] sm:$0x1]
      %v3770 = vld [vmem:[%s2950 + $0x18] sm:$0xf]
      %v3771 = vld [vmem:[%s2950 + $0x1c] sm:$0x1]
      %v3772 = vld [vmem:[%s2950 + $0x20] sm:$0xf]
      %v3773 = vld [vmem:[%s2950 + $0x24] sm:$0x1]
      %v3774 = vld [vmem:[%s2950 + $0x28] sm:$0xf]
      %v3775 = vld [vmem:[%s2950 + $0x2c] sm:$0x1]
      %v3776 = vld [vmem:[%s2950 + $0x30] sm:$0xf]
      %v3777 = vld [vmem:[%s2950 + $0x34] sm:$0x1]
      %v3778 = vld [vmem:[%s2950 + $0x38] sm:$0xf]
      %v3779 = vld [vmem:[%s2950 + $0x3c] sm:$0x1]
      %v3781 = vshrl.u32 %v3764, 16
      %v3783 = vrot.slane %v3781, 4
      %v3784 = vshll.u32 %v3764, 16
      %v3786 = vrot.slane %v3784, 5
      %v3787 = vor.u32 %v3783, %v3786
      %v3788 = vrot.slane %v3787, 4
      %v3790 = vshll.u32 %v3765, 16
      %v3792 = vrot.slane %v3790, 5
      %v3793 = vsel %vm1019, %v3788, %v3792
      %v3795 = vshrl.u32 %v3766, 16
      %v3797 = vrot.slane %v3795, 4
      %v3798 = vshll.u32 %v3766, 16
      %v3800 = vrot.slane %v3798, 5
      %v3801 = vor.u32 %v3797, %v3800
      %v3802 = vrot.slane %v3801, 4
      %v3804 = vshll.u32 %v3767, 16
      %v3806 = vrot.slane %v3804, 5
      %v3807 = vsel %vm1019, %v3802, %v3806
      %v3809 = vshrl.u32 %v3768, 16
      %v3811 = vrot.slane %v3809, 4
      %v3812 = vshll.u32 %v3768, 16
      %v3814 = vrot.slane %v3812, 5
      %v3815 = vor.u32 %v3811, %v3814
      %v3816 = vrot.slane %v3815, 4
      %v3818 = vshll.u32 %v3769, 16
      %v3820 = vrot.slane %v3818, 5
      %v3821 = vsel %vm1019, %v3816, %v3820
      %v3823 = vshrl.u32 %v3770, 16
      %v3825 = vrot.slane %v3823, 4
      %v3826 = vshll.u32 %v3770, 16
      %v3828 = vrot.slane %v3826, 5
      %v3829 = vor.u32 %v3825, %v3828
      %v3830 = vrot.slane %v3829, 4
      %v3832 = vshll.u32 %v3771, 16
      %v3834 = vrot.slane %v3832, 5
      %v3835 = vsel %vm1019, %v3830, %v3834
      %v3837 = vshrl.u32 %v3772, 16
      %v3839 = vrot.slane %v3837, 4
      %v3840 = vshll.u32 %v3772, 16
      %v3842 = vrot.slane %v3840, 5
      %v3843 = vor.u32 %v3839, %v3842
      %v3844 = vrot.slane %v3843, 4
      %v3846 = vshll.u32 %v3773, 16
      %v3848 = vrot.slane %v3846, 5
      %v3849 = vsel %vm1019, %v3844, %v3848
      %v3851 = vshrl.u32 %v3774, 16
      %v3853 = vrot.slane %v3851, 4
      %v3854 = vshll.u32 %v3774, 16
      %v3856 = vrot.slane %v3854, 5
      %v3857 = vor.u32 %v3853, %v3856
      %v3858 = vrot.slane %v3857, 4
      %v3860 = vshll.u32 %v3775, 16
      %v3862 = vrot.slane %v3860, 5
      %v3863 = vsel %vm1019, %v3858, %v3862
      %v3865 = vshrl.u32 %v3776, 16
      %v3867 = vrot.slane %v3865, 4
      %v3868 = vshll.u32 %v3776, 16
      %v3870 = vrot.slane %v3868, 5
      %v3871 = vor.u32 %v3867, %v3870
      %v3872 = vrot.slane %v3871, 4
      %v3874 = vshll.u32 %v3777, 16
      %v3876 = vrot.slane %v3874, 5
      %v3877 = vsel %vm1019, %v3872, %v3876
      %v3879 = vshrl.u32 %v3778, 16
      %v3881 = vrot.slane %v3879, 4
      %v3882 = vshll.u32 %v3778, 16
      %v3884 = vrot.slane %v3882, 5
      %v3885 = vor.u32 %v3881, %v3884
      %v3886 = vrot.slane %v3885, 4
      %v3888 = vshll.u32 %v3779, 16
      %v3890 = vrot.slane %v3888, 5
      %v3891 = vsel %vm1019, %v3886, %v3890
      %s3892 = scalar_lea.vmem %s2, 56
      %v3893 = vld [vmem:[%s3892] sm:$0xf]
      %v3894 = vunpack.c.l.b16 %v3793
      %v3895 = vunpack.c.l.b16 %v3807
      %v3896 = vunpack.c.l.b16 %v3821
      %v3897 = vunpack.c.l.b16 %v3835
      %v3898 = vunpack.c.l.b16 %v3849
      %v3899 = vunpack.c.l.b16 %v3863
      %v3900 = vunpack.c.l.b16 %v3877
      %v3901 = vunpack.c.l.b16 %v3891
      %v3902 = vpack.c.b16 %v3895, %v3894
      %v3903 = vpack.c.b16 %v3897, %v3896
      %v3904 = vpack.c.b16 %v3899, %v3898
      %v3905 = vpack.c.b16 %v3901, %v3900
      %v3907 = vsel %vm1146, %v3902, 0
      %v3910 = vsel %vm1146, %v3903, 0
      %v3913 = vsel %vm1146, %v3904, 0
      %v3916 = vsel %vm1146, %v3905, 0
      %v3919 = vsel %vm1159, %v3893, 0
      %3921 = vmatprep.subr.bf16.mxu0 0
      %3922 = vmatpush1.bf16.msra.mxu0 0
      %3923 = vmatprep.subr.bf16.mxu0 0
      %3924 = vmatpush1.bf16.msra.mxu0 0
      %3925 = vmatprep.subr.bf16.mxu0 0
      %3926 = vmatpush1.bf16.msra.mxu0 0
      %3927 = vmatprep.subr.bf16.mxu0 0
      %3928 = vmatpush1.bf16.msra.mxu0 0
      %3929 = vmatprep.subr.bf16.mxu0 0
      %3930 = vmatpush1.bf16.msra.mxu0 0
      %3931 = vmatprep.subr.bf16.mxu0 0
      %3932 = vmatpush1.bf16.msra.mxu0 0
      %3933 = vmatprep.subr.bf16.mxu0 0
      %3934 = vmatpush1.bf16.msra.mxu0 0
      %3935 = vmatprep.subr.bf16.mxu0 0
      %3936 = vmatpush1.bf16.msra.mxu0 %v3919
      %3937 = vmatprep.subr.bf16.mxu0 0
      %3938 = vmatpush2.bf16.msra.mxu0 0
      %3939 = vmatprep.subr.bf16.mxu0 0
      %3940 = vmatpush2.bf16.msra.mxu0 0
      %3941 = vmatprep.subr.bf16.mxu0 0
      %3942 = vmatpush2.bf16.msra.mxu0 0
      %3943 = vmatprep.subr.bf16.mxu0 0
      %3944 = vmatpush2.bf16.msra.mxu0 0
      %3945 = vmatprep.subr.bf16.mxu0 0
      %3946 = vmatpush2.bf16.msra.mxu0 0
      %3947 = vmatprep.subr.bf16.mxu0 0
      %3948 = vmatpush2.bf16.msra.mxu0 0
      %3949 = vmatprep.subr.bf16.mxu0 0
      %3950 = vmatpush2.bf16.msra.mxu0 0
      %3951 = vmatprep.subr.bf16.mxu0 0
      %3952 = vmatpush2.bf16.msra.mxu0 0
      %3953 = vmatprep.mubr.bf16.mxu0 0
      %3954 = vmatmul.mubr.bf16.gmra.mxu0 %v3907
      %v3955 = vpop.f32.mrf.mxu0
      %v3956 = vadd.f32 0.0, %v3955
      %v3957 = vpop.f32.mrf.mxu0
      %v3958 = vpop.f32.mrf.mxu0
      %v3959 = vadd.f32 0.0, %v3958
      %v3960 = vpop.f32.mrf.mxu0
      %3961 = vmatprep.mubr.bf16.mxu0 0
      %3962 = vmatmul.mubr.bf16.gmra.mxu0 %v3910
      %v3963 = vpop.f32.mrf.mxu0
      %v3964 = vadd.f32 0.0, %v3963
      %v3965 = vpop.f32.mrf.mxu0
      %v3966 = vpop.f32.mrf.mxu0
      %v3967 = vadd.f32 0.0, %v3966
      %v3968 = vpop.f32.mrf.mxu0
      %3969 = vmatprep.mubr.bf16.mxu0 0
      %3970 = vmatmul.mubr.bf16.gmra.mxu0 %v3913
      %v3971 = vpop.f32.mrf.mxu0
      %v3972 = vadd.f32 0.0, %v3971
      %v3973 = vpop.f32.mrf.mxu0
      %v3974 = vpop.f32.mrf.mxu0
      %v3975 = vadd.f32 0.0, %v3974
      %v3976 = vpop.f32.mrf.mxu0
      %3977 = vmatprep.mubr.bf16.mxu0 0
      %3978 = vmatmul.mubr.bf16.gmra.mxu0 %v3916
      %v3979 = vpop.f32.mrf.mxu0
      %v3980 = vadd.f32 0.0, %v3979
      %v3981 = vpop.f32.mrf.mxu0
      %v3982 = vpop.f32.mrf.mxu0
      %v3983 = vadd.f32 0.0, %v3982
      %v3984 = vpop.f32.mrf.mxu0
      %3985 = vdwg.mxu0
      %v3986 = vadd.f32 %v3734, %v3956
      %v3987 = vadd.f32 %v3737, %v3959
      %v3988 = vadd.f32 %v3742, %v3964
      %v3989 = vadd.f32 %v3745, %v3967
      %v3990 = vadd.f32 %v3750, %v3972
      %v3991 = vadd.f32 %v3753, %v3975
      %v3992 = vadd.f32 %v3758, %v3980
      %v3993 = vadd.f32 %v3761, %v3983
      %v3994 = vld [vmem:[%s2950] sm:$0xe]
      %v3995 = vld [vmem:[%s2950 + $0x8] sm:$0xe]
      %v3996 = vld [vmem:[%s2950 + $0x10] sm:$0xe]
      %v3997 = vld [vmem:[%s2950 + $0x18] sm:$0xe]
      %v3998 = vld [vmem:[%s2950 + $0x20] sm:$0xe]
      %v3999 = vld [vmem:[%s2950 + $0x28] sm:$0xe]
      %v4000 = vld [vmem:[%s2950 + $0x30] sm:$0xe]
      %v4001 = vld [vmem:[%s2950 + $0x38] sm:$0xe]
      %v4018 = vrot.slane %v3994, 5
      %v4019 = vrot.slane %v4018, 4
      %v4020 = vrot.slane %v3765, 5
      %v4021 = vsel %vm1926, %v4019, %v4020
      %v4022 = vrot.slane %v3995, 5
      %v4023 = vrot.slane %v4022, 4
      %v4024 = vrot.slane %v3767, 5
      %v4025 = vsel %vm1926, %v4023, %v4024
      %v4026 = vrot.slane %v3996, 5
      %v4027 = vrot.slane %v4026, 4
      %v4028 = vrot.slane %v3769, 5
      %v4029 = vsel %vm1926, %v4027, %v4028
      %v4030 = vrot.slane %v3997, 5
      %v4031 = vrot.slane %v4030, 4
      %v4032 = vrot.slane %v3771, 5
      %v4033 = vsel %vm1926, %v4031, %v4032
      %v4034 = vrot.slane %v3998, 5
      %v4035 = vrot.slane %v4034, 4
      %v4036 = vrot.slane %v3773, 5
      %v4037 = vsel %vm1926, %v4035, %v4036
      %v4038 = vrot.slane %v3999, 5
      %v4039 = vrot.slane %v4038, 4
      %v4040 = vrot.slane %v3775, 5
      %v4041 = vsel %vm1926, %v4039, %v4040
      %v4042 = vrot.slane %v4000, 5
      %v4043 = vrot.slane %v4042, 4
      %v4044 = vrot.slane %v3777, 5
      %v4045 = vsel %vm1926, %v4043, %v4044
      %v4046 = vrot.slane %v4001, 5
      %v4047 = vrot.slane %v4046, 4
      %v4048 = vrot.slane %v3779, 5
      %v4049 = vsel %vm1926, %v4047, %v4048
      %s4050 = scalar_lea.vmem %s2, 60
      %v4051 = vld [vmem:[%s4050] sm:$0xf]
      %v4052 = vunpack.c.l.b16 %v4021
      %v4053 = vunpack.c.l.b16 %v4025
      %v4054 = vunpack.c.l.b16 %v4029
      %v4055 = vunpack.c.l.b16 %v4033
      %v4056 = vunpack.c.l.b16 %v4037
      %v4057 = vunpack.c.l.b16 %v4041
      %v4058 = vunpack.c.l.b16 %v4045
      %v4059 = vunpack.c.l.b16 %v4049
      %v4060 = vpack.c.b16 %v4053, %v4052
      %v4061 = vpack.c.b16 %v4055, %v4054
      %v4062 = vpack.c.b16 %v4057, %v4056
      %v4063 = vpack.c.b16 %v4059, %v4058
      %v4065 = vsel %vm1146, %v4060, 0
      %v4068 = vsel %vm1146, %v4061, 0
      %v4071 = vsel %vm1146, %v4062, 0
      %v4074 = vsel %vm1146, %v4063, 0
      %v4077 = vsel %vm1159, %v4051, 0
      %4079 = vmatprep.subr.bf16.mxu0 0
      %4080 = vmatpush1.bf16.msra.mxu0 0
      %4081 = vmatprep.subr.bf16.mxu0 0
      %4082 = vmatpush1.bf16.msra.mxu0 0
      %4083 = vmatprep.subr.bf16.mxu0 0
      %4084 = vmatpush1.bf16.msra.mxu0 0
      %4085 = vmatprep.subr.bf16.mxu0 0
      %4086 = vmatpush1.bf16.msra.mxu0 0
      %4087 = vmatprep.subr.bf16.mxu0 0
      %4088 = vmatpush1.bf16.msra.mxu0 0
      %4089 = vmatprep.subr.bf16.mxu0 0
      %4090 = vmatpush1.bf16.msra.mxu0 0
      %4091 = vmatprep.subr.bf16.mxu0 0
      %4092 = vmatpush1.bf16.msra.mxu0 0
      %4093 = vmatprep.subr.bf16.mxu0 0
      %4094 = vmatpush1.bf16.msra.mxu0 %v4077
      %4095 = vmatprep.subr.bf16.mxu0 0
      %4096 = vmatpush2.bf16.msra.mxu0 0
      %4097 = vmatprep.subr.bf16.mxu0 0
      %4098 = vmatpush2.bf16.msra.mxu0 0
      %4099 = vmatprep.subr.bf16.mxu0 0
      %4100 = vmatpush2.bf16.msra.mxu0 0
      %4101 = vmatprep.subr.bf16.mxu0 0
      %4102 = vmatpush2.bf16.msra.mxu0 0
      %4103 = vmatprep.subr.bf16.mxu0 0
      %4104 = vmatpush2.bf16.msra.mxu0 0
      %4105 = vmatprep.subr.bf16.mxu0 0
      %4106 = vmatpush2.bf16.msra.mxu0 0
      %4107 = vmatprep.subr.bf16.mxu0 0
      %4108 = vmatpush2.bf16.msra.mxu0 0
      %4109 = vmatprep.subr.bf16.mxu0 0
      %4110 = vmatpush2.bf16.msra.mxu0 0
      %4111 = vmatprep.mubr.bf16.mxu0 0
      %4112 = vmatmul.mubr.bf16.gmra.mxu0 %v4065
      %v4113 = vpop.f32.mrf.mxu0
      %v4114 = vadd.f32 0.0, %v4113
      %v4115 = vpop.f32.mrf.mxu0
      %v4116 = vpop.f32.mrf.mxu0
      %v4117 = vadd.f32 0.0, %v4116
      %v4118 = vpop.f32.mrf.mxu0
      %4119 = vmatprep.mubr.bf16.mxu0 0
      %4120 = vmatmul.mubr.bf16.gmra.mxu0 %v4068
      %v4121 = vpop.f32.mrf.mxu0
      %v4122 = vadd.f32 0.0, %v4121
      %v4123 = vpop.f32.mrf.mxu0
      %v4124 = vpop.f32.mrf.mxu0
      %v4125 = vadd.f32 0.0, %v4124
      %v4126 = vpop.f32.mrf.mxu0
      %4127 = vmatprep.mubr.bf16.mxu0 0
      %4128 = vmatmul.mubr.bf16.gmra.mxu0 %v4071
      %v4129 = vpop.f32.mrf.mxu0
      %v4130 = vadd.f32 0.0, %v4129
      %v4131 = vpop.f32.mrf.mxu0
      %v4132 = vpop.f32.mrf.mxu0
      %v4133 = vadd.f32 0.0, %v4132
      %v4134 = vpop.f32.mrf.mxu0
      %4135 = vmatprep.mubr.bf16.mxu0 0
      %4136 = vmatmul.mubr.bf16.gmra.mxu0 %v4074
      %v4137 = vpop.f32.mrf.mxu0
      %v4138 = vadd.f32 0.0, %v4137
      %v4139 = vpop.f32.mrf.mxu0
      %v4140 = vpop.f32.mrf.mxu0
      %v4141 = vadd.f32 0.0, %v4140
      %v4142 = vpop.f32.mrf.mxu0
      %4143 = vdwg.mxu0
      %v4144 = vadd.f32 %v3986, %v4114
      %v4145 = vadd.f32 %v3987, %v4117
      %v4146 = vadd.f32 %v3988, %v4122
      %v4147 = vadd.f32 %v3989, %v4125
      %v4148 = vadd.f32 %v3990, %v4130
      %v4149 = vadd.f32 %v3991, %v4133
      %v4150 = vadd.f32 %v3992, %v4138
      %v4151 = vadd.f32 %v3993, %v4141
      %v4152 = vpack.c.bf16 %v4145, %v4144
      %v4153 = vpack.c.bf16 %v4147, %v4146
      %v4154 = vpack.c.bf16 %v4149, %v4148
      %v4155 = vpack.c.bf16 %v4151, %v4150
      %v4160 = vunpack.c.l.b16 %v4152
      %v4161 = vunpack.c.h.b16 %v4152
      %v4162 = vunpack.c.l.b16 %v4153
      %v4163 = vunpack.c.h.b16 %v4153
      %v4164 = vunpack.c.l.b16 %v4154
      %v4165 = vunpack.c.h.b16 %v4154
      %v4166 = vunpack.c.l.b16 %v4155
      %v4167 = vunpack.c.h.b16 %v4155
      %v4168 = vpack.c.b16 %v4160, %v4160
      %v4169 = vpack.c.b16 %v4161, %v4161
      %v4170 = vpack.c.b16 %v4162, %v4162
      %v4171 = vpack.c.b16 %v4163, %v4163
      %v4172 = vpack.c.b16 %v4164, %v4164
      %v4173 = vpack.c.b16 %v4165, %v4165
      %v4174 = vpack.c.b16 %v4166, %v4166
      %v4175 = vpack.c.b16 %v4167, %v4167
      %s4184 = scalar_lea.vmem %s204, 96
      %4185 = vst.msk [vmem:[%s4184] sm:$0xf] %vm1708, %v4168
      %4186 = vst.msk [vmem:[%s4184 + $0x4] sm:$0xf] %vm1708, %v4169
      %4187 = vst.msk [vmem:[%s4184 + $0x8] sm:$0xf] %vm1708, %v4170
      %4188 = vst.msk [vmem:[%s4184 + $0xc] sm:$0xf] %vm1708, %v4171
      %4189 = vst.msk [vmem:[%s4184 + $0x10] sm:$0xf] %vm1708, %v4172
      %4190 = vst.msk [vmem:[%s4184 + $0x14] sm:$0xf] %vm1708, %v4173
      %4191 = vst.msk [vmem:[%s4184 + $0x18] sm:$0xf] %vm1708, %v4174
      %4192 = vst.msk [vmem:[%s4184 + $0x1c] sm:$0xf] %vm1708, %v4175
      %v4193 = vsel %vm1717, %v4144, 0.0
      %v4194 = vsel %vm1717, %v4145, 0.0
      %v4195 = vadd.f32 %v4193, %v4194
      %v4196 = vsel %vm1717, %v4146, 0.0
      %v4197 = vadd.f32 %v4195, %v4196
      %v4198 = vsel %vm1717, %v4147, 0.0
      %v4199 = vadd.f32 %v4197, %v4198
      %v4200 = vsel %vm1717, %v4148, 0.0
      %v4201 = vadd.f32 %v4199, %v4200
      %v4202 = vsel %vm1717, %v4149, 0.0
      %v4203 = vadd.f32 %v4201, %v4202
      %v4204 = vsel %vm1717, %v4150, 0.0
      %v4205 = vadd.f32 %v4203, %v4204
      %v4206 = vsel %vm1717, %v4151, 0.0
      %v4207 = vadd.f32 %v4205, %v4206
      %v4208 = vrot.slane %v4207, 4
      %v4209 = vadd.f32 %v4207, %v4208
      %v4210 = vrot.slane %v4209, 2
      %v4211 = vadd.f32 %v4209, %v4210
      %v4212 = vrot.slane %v4211, 1
      %v4213 = vadd.f32 %v4211, %v4212
      %v4214 = vadd.f32 %v3361, %v4213
      %v4215 = vmul.f32 %v4144, %v4144
      %v4216 = vmul.f32 %v4145, %v4145
      %v4217 = vmul.f32 %v4146, %v4146
      %v4218 = vmul.f32 %v4147, %v4147
      %v4219 = vmul.f32 %v4148, %v4148
      %v4220 = vmul.f32 %v4149, %v4149
      %v4221 = vmul.f32 %v4150, %v4150
      %v4222 = vmul.f32 %v4151, %v4151
      %v4223 = vsel %vm1717, %v4215, 0.0
      %v4224 = vsel %vm1717, %v4216, 0.0
      %v4225 = vadd.f32 %v4223, %v4224
      %v4226 = vsel %vm1717, %v4217, 0.0
      %v4227 = vadd.f32 %v4225, %v4226
      %v4228 = vsel %vm1717, %v4218, 0.0
      %v4229 = vadd.f32 %v4227, %v4228
      %v4230 = vsel %vm1717, %v4219, 0.0
      %v4231 = vadd.f32 %v4229, %v4230
      %v4232 = vsel %vm1717, %v4220, 0.0
      %v4233 = vadd.f32 %v4231, %v4232
      %v4234 = vsel %vm1717, %v4221, 0.0
      %v4235 = vadd.f32 %v4233, %v4234
      %v4236 = vsel %vm1717, %v4222, 0.0
      %v4237 = vadd.f32 %v4235, %v4236
      %v4238 = vrot.slane %v4237, 4
      %v4239 = vadd.f32 %v4237, %v4238
      %v4240 = vrot.slane %v4239, 2
      %v4241 = vadd.f32 %v4239, %v4240
      %v4242 = vrot.slane %v4241, 1
      %v4243 = vadd.f32 %v4241, %v4242
      %v4244 = vadd.f32 %v3391, %v4243
      %vm4245 = vcmask 24576
      %4246 = vst.msk [vmem:[%s208] sm:$0x1] %vm4245, %v4214
      %4247 = vst.msk [vmem:[%s208 + $0x1] sm:$0x1] %vm4245, %v4244
      %p4248 = scmp.lt.s32.totalorder %s16, 1
      %s4249 = scalar_select %p4248, %s16, 1
      %s4250 = smul.addr %s4249, 32
      %s4251 = smul.addr %s4250, 4
      %s4252 = scalar_lea.vmem %s3, %s4251
      %p4253 = scmp.lt.s32.totalorder %s16, 1
      %s4254 = scalar_select %p4253, %s16, 1
      %s4255 = smul.addr %s4254, 2
      %s4256 = scalar_lea.vmem %s4, %s4255
      // Predicated region
      $region33: #{unet_innermost_forward.1} parent=31 // pred_check
        %p4257 = pneg %p102
      $region34: #{unet_innermost_forward.1} parent=31 // pred_check_branch
        %4259 = sbr.rel (%p4257) target = $region36
      $region35: #{unet_innermost_forward.1} parent=31 // pred_region
        _
      $region36: #{unet_innermost_forward.1} parent=31 // pred_fallthru
        _
      // Predicated region
      $region37: #{unet_innermost_forward.1} parent=31 // pred_check
        %p4260 = pneg %p128
      $region38: #{unet_innermost_forward.1} parent=31 // pred_check_branch
        %4262 = sbr.rel (%p4260) target = $region40
      $region39: #{unet_innermost_forward.1} parent=31 // pred_region
        _
      $region40: #{unet_innermost_forward.1} parent=31 // pred_fallthru
        _
    $region32: #{unet_innermost_forward.1} parent=5 // pred_fallthru
      _
    %p4263 = scmp.le.s32.totalorder 2, %s11
    // Predicated region
    $region41: #{unet_innermost_forward.1} parent=5 // pred_check
      %p4264 = pneg %p4263
    $region42: #{unet_innermost_forward.1} parent=5 // pred_check_branch
      %4266 = sbr.rel (%p4264) target = $region44
    $region43: #{unet_innermost_forward.1} parent=5 // pred_region
      %s4267 = ssub.s32 %s11, 2
      // Predicated region
      $region45: #{unet_innermost_forward.1} parent=43 // pred_check
        %p4268 = pneg %p108
      $region46: #{unet_innermost_forward.1} parent=43 // pred_check_branch
        %4270 = sbr.rel (%p4268) target = $region48
      $region47: #{unet_innermost_forward.1} parent=43 // pred_region
        %p4271 = scmp.lt.s32.totalorder %s17, 1
        %s4272 = scalar_select %p4271, %s17, 1
        %s4273 = smul.addr %s4272, 32
        %s4274 = smul.addr %s4273, 4
        %s4275 = scalar_lea.vmem %s3, %s4274
      $region48: #{unet_innermost_forward.1} parent=43 // pred_fallthru
        _
      // Predicated region
      $region49: #{unet_innermost_forward.1} parent=43 // pred_check
        %p4276 = pneg %p134
      $region50: #{unet_innermost_forward.1} parent=43 // pred_check_branch
        %4278 = sbr.rel (%p4276) target = $region52
      $region51: #{unet_innermost_forward.1} parent=43 // pred_region
        %p4279 = scmp.lt.s32.totalorder %s17, 1
        %s4280 = scalar_select %p4279, %s17, 1
        %s4281 = smul.addr %s4280, 2
        %s4282 = scalar_lea.vmem %s4, %s4281
      $region52: #{unet_innermost_forward.1} parent=43 // pred_fallthru
        _
    $region44: #{unet_innermost_forward.1} parent=5 // pred_fallthru
      _
  $region6: #{unet_innermost_forward.1} parent=0 // loop_footer
    %s15 = sadd.s32 1, %s11
  $region7: #{unet_innermost_forward.1} parent=0 // loop_footer_branch
    %10 = sbr.rel target = $region3
  $region8: #{unet_innermost_forward.1} parent=0 // loop_exit
    _

</llo_original>
